<compile_context>
chip_gen: v7x
topology: tpu7x:2x2x1
jax: 0.10.0
libtpu: 0.0.40
codegen_flags: <defaults>
</compile_context>

<pallas_src>
import functools

import jax
import jax.numpy as jnp
import numpy as np
from jax import lax
from jax.experimental import pallas as pl
from jax.experimental.pallas import tpu as pltpu


# ----------------------------------------------------------------------------
# In-kernel helpers (traced inside Pallas kernels)
# ----------------------------------------------------------------------------
def _group_bcast(s, groups, cg):
    """Per-channel row (1, C) -> per-group sum, broadcast back to (1, C)."""
    if cg == 1:                      # groups == C (the module's config): identity
        return s
    C = s.shape[-1]
    cidx = lax.broadcasted_iota(jnp.int32, (C, groups), 0) // cg
    gidx = lax.broadcasted_iota(jnp.int32, (C, groups), 1)
    M = (cidx == gidx).astype(s.dtype)                       # (C, G)
    gidx2 = lax.broadcasted_iota(jnp.int32, (groups, C), 0)
    cidx2 = lax.broadcasted_iota(jnp.int32, (groups, C), 1) // cg
    Mt = (gidx2 == cidx2).astype(s.dtype)                    # (G, C)
    sg = jnp.dot(s, M, preferred_element_type=jnp.float32)
    return jnp.dot(sg, Mt, preferred_element_type=jnp.float32)


def _gn_relu(y, gamma, beta, B, T, groups, eps):
    """GroupNorm (per batch, per group over T x C/G) + affine + ReLU.

    y: (B*T, C) float32, batch-major rows.  gamma/beta: (1, C) float32.
    Two-pass (centered) variance to avoid E[x^2]-E[x]^2 cancellation.
    """
    _, C = y.shape
    cg = C // groups
    inv_n = 1.0 / float(T * cg)
    outs = []
    for b in range(B):                                       # static unroll (small B)
        yb = y[b * T:(b + 1) * T, :]
        mean_c = _group_bcast(jnp.sum(yb, axis=0, keepdims=True), groups, cg) * inv_n
        d = yb - mean_c
        var_c = _group_bcast(jnp.sum(d * d, axis=0, keepdims=True), groups, cg) * inv_n
        inv = lax.rsqrt(var_c + eps)
        outs.append(jnp.maximum(d * inv * gamma + beta, 0.0))
    return outs[0] if B == 1 else jnp.concatenate(outs, axis=0)


def _conv3_cols(x, T):
    """In-VMEM im2col for a k=3, stride=1, 'same' temporal conv, batch folded
    into the row axis.  x: (B*T, C) -> (B*T, 3C) = [x[t-1], x[t], x[t+1]],
    zero-padded at per-sequence boundaries (mask handles batch edges)."""
    BT, C = x.shape
    t_in_b = lax.broadcasted_iota(jnp.int32, (BT, 1), 0) % T
    zrow = jnp.zeros((1, C), x.dtype)
    prev_raw = jnp.concatenate([zrow, x[:BT - 1, :]], axis=0)
    next_raw = jnp.concatenate([x[1:, :], zrow], axis=0)
    prev = jnp.where(t_in_b == 0, jnp.zeros_like(x), prev_raw)
    nxt = jnp.where(t_in_b == T - 1, jnp.zeros_like(x), next_raw)
    return jnp.concatenate([prev, x, nxt], axis=-1)


# ----------------------------------------------------------------------------
# Pallas kernels
# ----------------------------------------------------------------------------
def _conv_gn_relu_kernel(x_ref, w_ref, b_ref, g_ref, be_ref, o_ref, *,
                         B, T, groups, eps, compute_dtype):
    """(conv as matmul) + bias + GroupNorm + ReLU, whole batch in one block."""
    x = x_ref[...].astype(compute_dtype)                     # (B*T, K)
    w = w_ref[...].astype(compute_dtype)                     # (K, C)
    y = jnp.dot(x, w, preferred_element_type=jnp.float32) + b_ref[...]
    out = _gn_relu(y, g_ref[...], be_ref[...], B, T, groups, eps)
    o_ref[...] = out.astype(o_ref.dtype)


def _tower_branch_kernel(feat_ref, wt_ref, bt_ref, gt_ref, bet_ref, wh_ref, bh_ref,
                         o_ref, *, B, T, groups, eps, compute_dtype):
    """One prediction branch per grid step (0 = loc tower + exp head,
    1 = conf tower + head): two (conv3 + GN + ReLU) layers + one conv3 head,
    all intermediates resident in VMEM."""
    x = feat_ref[...].astype(jnp.float32)                    # (B*T, C)
    for j in range(2):                                       # static: tower depth 2
        cols = _conv3_cols(x, T).astype(compute_dtype)
        y = jnp.dot(cols, wt_ref[0, j].astype(compute_dtype),
                    preferred_element_type=jnp.float32) + bt_ref[0, j]
        x = _gn_relu(y, gt_ref[0, j], bet_ref[0, j], B, T, groups, eps)
    cols = _conv3_cols(x, T).astype(compute_dtype)
    y = jnp.dot(cols, wh_ref[0].astype(compute_dtype),
                preferred_element_type=jnp.float32) + bh_ref[0]   # (B*T, W)

    # ScaleExp: scale already folded into the loc head weight/bias by the wrapper.
    @pl.when(pl.program_id(0) == 0)
    def _():
        o_ref[0] = jnp.exp(y).astype(o_ref.dtype)

    @pl.when(pl.program_id(0) == 1)
    def _():
        o_ref[0] = y.astype(o_ref.dtype)


# ----------------------------------------------------------------------------
# Pallas wrappers
# ----------------------------------------------------------------------------
def conv_gn_relu(x_cols, w_flat, bias, gamma, beta, *, B, T, groups,
                 eps=1e-5, compute_dtype=jnp.float32, out_dtype=jnp.float32):
    BT, K = x_cols.shape
    C = w_flat.shape[1]
    kernel = functools.partial(_conv_gn_relu_kernel, B=B, T=T, groups=groups,
                               eps=eps, compute_dtype=compute_dtype)
    return pl.pallas_call(
        kernel,
        out_shape=jax.ShapeDtypeStruct((BT, C), out_dtype),
        grid=(1,),
        in_specs=[
            pl.BlockSpec((BT, K), lambda i: (0, 0)),
            pl.BlockSpec((K, C), lambda i: (0, 0)),
            pl.BlockSpec((1, C), lambda i: (0, 0)),
            pl.BlockSpec((1, C), lambda i: (0, 0)),
            pl.BlockSpec((1, C), lambda i: (0, 0)),
        ],
        out_specs=pl.BlockSpec((BT, C), lambda i: (0, 0)),
        compiler_params=pltpu.CompilerParams(dimension_semantics=("arbitrary",)),
    )(x_cols, w_flat,
      bias.reshape(1, C).astype(jnp.float32),
      gamma.reshape(1, C).astype(jnp.float32),
      beta.reshape(1, C).astype(jnp.float32))


def tower_and_heads(feat2, wt, bt, gt, bet, wh, bh, *, B, T, groups,
                    eps=1e-5, compute_dtype=jnp.float32):
    BT, C = feat2.shape
    K3, W = wh.shape[1], wh.shape[2]
    kernel = functools.partial(_tower_branch_kernel, B=B, T=T, groups=groups,
                               eps=eps, compute_dtype=compute_dtype)
    return pl.pallas_call(
        kernel,
        out_shape=jax.ShapeDtypeStruct((2, BT, W), jnp.float32),
        grid=(2,),   # branch axis: 0 = loc, 1 = conf -> megacore-parallel on v7x
        in_specs=[
            pl.BlockSpec((BT, C), lambda br: (0, 0)),
            pl.BlockSpec((1, 2, K3, C), lambda br: (br, 0, 0, 0)),
            pl.BlockSpec((1, 2, 1, C), lambda br: (br, 0, 0, 0)),
            pl.BlockSpec((1, 2, 1, C), lambda br: (br, 0, 0, 0)),
            pl.BlockSpec((1, 2, 1, C), lambda br: (br, 0, 0, 0)),
            pl.BlockSpec((1, K3, W), lambda br: (br, 0, 0)),
            pl.BlockSpec((1, 1, W), lambda br: (br, 0, 0)),
        ],
        out_specs=pl.BlockSpec((1, BT, W), lambda br: (br, 0, 0)),
        compiler_params=pltpu.CompilerParams(dimension_semantics=("parallel",)),
    )(feat2, wt, bt, gt, bet, wh, bh)


# ----------------------------------------------------------------------------
# Glue: im2col (Unit1D 'same' padding semantics) and weight flattening
# ----------------------------------------------------------------------------
def im2col_1d(x_btc, k, stride):
    """x_btc: (B, T, C) channels-last.  Matches Unit1D compute_pad exactly."""
    B, T, C = x_btc.shape
    if T % stride == 0:
        pad = max(k - stride, 0)
    else:
        pad = max(k - T % stride, 0)
    pf = pad // 2
    pb = pad - pf
    xp = jnp.pad(x_btc, ((0, 0), (pf, pb), (0, 0)))
    T_out = (T + pad - k) // stride + 1
    cols = [xp[:, d:d + stride * T_out:stride, :] for d in range(k)]
    return jnp.concatenate(cols, axis=-1)                    # (B, T_out, k*C)


def flatten_conv1d_w(w):
    """PyTorch conv1d weight (Cout, Cin, k) -> (k*Cin, Cout), im2col order."""
    co, ci, k = w.shape
    return jnp.transpose(w, (2, 1, 0)).reshape(k * ci, co)


def _rowvec(v):
    return jnp.reshape(v, (1, -1))


def _pad_cols(a, width):
    return a if a.shape[-1] == width else jnp.pad(a, ((0, 0), (0, width - a.shape[-1])))


# ----------------------------------------------------------------------------
# Full forward (eval mode)
# ----------------------------------------------------------------------------
def coarse_pyramid_forward(params, x, *, feat_t, layer_num, num_classes,
                           groups=32, eps=1e-5, compute_dtype=jnp.float32):
    B, Cin, T, H, W = x.shape
    w3 = params['stem_w']                                    # (Cout, Cin, 1, kh, kw)
    Cout = w3.shape[0]
    assert H == w3.shape[3] and W == w3.shape[4], "spatial_valid conv must reduce HxW to 1x1"
    cd = compute_dtype

    # ---- stem: Unit3D (1,k,k) spatial-valid conv -> GroupNorm -> ReLU -------
    x_cols = jnp.transpose(x, (0, 2, 1, 3, 4)).reshape(B * T, Cin * H * W).astype(cd)
    stem_wf = jnp.transpose(w3.reshape(Cout, -1)).astype(cd)       # (Cin*kh*kw, Cout)
    feat2 = conv_gn_relu(x_cols, stem_wf, params['stem_b'], params['stem_gn_g'],
                         params['stem_gn_b'], B=B, T=T, groups=groups, eps=eps,
                         compute_dtype=cd, out_dtype=cd)

    # ---- pyramid: k=3 stride-2 conv -> GroupNorm -> ReLU per level ----------
    levels = []
    t_cur = T
    feat3 = feat2.reshape(B, t_cur, Cout)
    for i in range(layer_num):
        cols = im2col_1d(feat3, 3, 2)
        t_cur = cols.shape[1]
        feat2 = conv_gn_relu(cols.reshape(B * t_cur, 3 * Cout),
                             flatten_conv1d_w(params[f'pyr_w_{i}']).astype(cd),
                             params[f'pyr_b_{i}'], params[f'pyr_gn_g_{i}'],
                             params[f'pyr_gn_b_{i}'], B=B, T=t_cur, groups=groups,
                             eps=eps, compute_dtype=cd, out_dtype=cd)
        feat3 = feat2.reshape(B, t_cur, Cout)
        levels.append((feat2, t_cur))

    # ---- shared tower/head weights: flatten & stack ONCE (hoisted) ----------
    wt = jnp.stack([
        jnp.stack([flatten_conv1d_w(params['loct_w_0']),
                   flatten_conv1d_w(params['loct_w_1'])]),
        jnp.stack([flatten_conv1d_w(params['conft_w_0']),
                   flatten_conv1d_w(params['conft_w_1'])]),
    ]).astype(cd)                                                   # (2, 2, 3C, C)
    bt = jnp.stack([jnp.stack([_rowvec(params['loct_b_0']), _rowvec(params['loct_b_1'])]),
                    jnp.stack([_rowvec(params['conft_b_0']), _rowvec(params['conft_b_1'])])])
    gt = jnp.stack([jnp.stack([_rowvec(params['loct_gn_g_0']), _rowvec(params['loct_gn_g_1'])]),
                    jnp.stack([_rowvec(params['conft_gn_g_0']), _rowvec(params['conft_gn_g_1'])])])
    bet = jnp.stack([jnp.stack([_rowvec(params['loct_gn_b_0']), _rowvec(params['loct_gn_b_1'])]),
                     jnp.stack([_rowvec(params['conft_gn_b_0']), _rowvec(params['conft_gn_b_1'])])])
    loc_wf = flatten_conv1d_w(params['loc_head_w'])                 # (3C, 2)
    conf_wf = flatten_conv1d_w(params['conf_head_w'])               # (3C, num_classes)
    w_max = max(2, num_classes)

    locs, confs = [], []
    for i, (f2, t_i) in enumerate(levels):
        s = params['scales'][i]          # ScaleExp: exp(y*s) == exp(x@(w*s) + b*s)
        wh = jnp.stack([_pad_cols(loc_wf * s, w_max),
                        _pad_cols(conf_wf, w_max)]).astype(cd)      # (2, 3C, w_max)
        bh = jnp.stack([_pad_cols(_rowvec(params['loc_head_b'] * s), w_max),
                        _pad_cols(_rowvec(params['conf_head_b']), w_max)]
                       ).astype(jnp.float32)                        # (2, 1, w_max)
        out = tower_and_heads(f2, wt, bt, gt, bet, wh, bh,
                              B=B, T=t_i, groups=groups, eps=eps, compute_dtype=cd)
        locs.append(out[0, :, :2].reshape(B, t_i, 2))
        confs.append(out[1, :, :num_classes].reshape(B, t_i, num_classes))

    loc = jnp.concatenate(locs, axis=1)
    conf = jnp.concatenate(confs, axis=1)

    # priors exactly as the PyTorch module builds them from feat_t
    # (feat_t must equal the first pyramid level's temporal size for the priors
    #  to correspond 1:1 with the predictions, as in the intended config).
    pr, t = [], feat_t
    for _ in range(layer_num):
        pr.append(((jnp.arange(t, dtype=jnp.float32) + 0.5) / t).reshape(-1, 1))
        t //= 2
    priors = jnp.concatenate(pr, axis=0)[None, :, :]
    return loc, conf, priors


# ----------------------------------------------------------------------------
# Pure-JAX reference mirroring the PyTorch semantics (NCT layout)
# ----------------------------------------------------------------------------
def _ref_conv1d(x_nct, w, b, stride):
    B, C, T = x_nct.shape
    k = w.shape[2]
    if T % stride == 0:
        pad = max(k - stride, 0)
    else:
        pad = max(k - T % stride, 0)
    pf = pad // 2
    pb = pad - pf
    xp = jnp.pad(x_nct, ((0, 0), (0, 0), (pf, pb)))
    T_out = (T + pad - k) // stride + 1
    win = jnp.stack([xp[:, :, d:d + stride * T_out:stride] for d in range(k)], axis=-1)
    out = jnp.einsum('bctd,ocd->bot', win, w,
                     precision=jax.lax.Precision.HIGHEST) + b[None, :, None]
    return out


def _ref_gn(x, g, b, G, eps=1e-5):
    B, C, T = x.shape
    xg = x.reshape(B, G, C // G, T)
    m = xg.mean(axis=(2, 3), keepdims=True)
    v = xg.var(axis=(2, 3), keepdims=True)
    xn = ((xg - m) / jnp.sqrt(v + eps)).reshape(B, C, T)
    return xn * g[None, :, None] + b[None, :, None]


def ref_forward(params, x, *, layer_num, groups=32):
    w3 = params['stem_w']
    y = jnp.einsum('bcthw,ochw->bot', x, w3[:, :, 0],
                   precision=jax.lax.Precision.HIGHEST) + params['stem_b'][None, :, None]
    feat = jax.nn.relu(_ref_gn(y, params['stem_gn_g'], params['stem_gn_b'], groups))
    pyr = []
    for i in range(layer_num):
        z = _ref_conv1d(feat, params[f'pyr_w_{i}'], params[f'pyr_b_{i}'], 2)
        feat = jax.nn.relu(_ref_gn(z, params[f'pyr_gn_g_{i}'], params[f'pyr_gn_b_{i}'], groups))
        pyr.append(feat)
    locs, confs = [], []
    for i, f in enumerate(pyr):
        lf, cf = f, f
        for j in range(2):
            lf = jax.nn.relu(_ref_gn(_ref_conv1d(lf, params[f'loct_w_{j}'],
                                                 params[f'loct_b_{j}'], 1),
                                     params[f'loct_gn_g_{j}'], params[f'loct_gn_b_{j}'], groups))
            cf = jax.nn.relu(_ref_gn(_ref_conv1d(cf, params[f'conft_w_{j}'],
                                                 params[f'conft_b_{j}'], 1),
                                     params[f'conft_gn_g_{j}'], params[f'conft_gn_b_{j}'], groups))
        l = jnp.exp(_ref_conv1d(lf, params['loc_head_w'], params['loc_head_b'], 1)
                    * params['scales'][i])
        c = _ref_conv1d(cf, params['conf_head_w'], params['conf_head_b'], 1)
        locs.append(jnp.transpose(l, (0, 2, 1)))
        confs.append(jnp.transpose(c, (0, 2, 1)))
    return jnp.concatenate(locs, axis=1), jnp.concatenate(confs, axis=1)


# ----------------------------------------------------------------------------
# Deterministic parameter init (matches nn.Module parameter shapes)
# ----------------------------------------------------------------------------
def init_params(key, Cin, Cout, k_spatial, num_classes, layer_num):
    keys = iter(jax.random.split(key, 128))

    def nrm(shape, s=0.1):
        return s * jax.random.normal(next(keys), shape, jnp.float32)

    p = {}
    p['stem_w'] = nrm((Cout, Cin, 1, k_spatial, k_spatial))
    p['stem_b'] = nrm((Cout,), 0.05)
    p['stem_gn_g'] = 1.0 + nrm((Cout,))
    p['stem_gn_b'] = nrm((Cout,))
    for i in range(layer_num):
        p[f'pyr_w_{i}'] = nrm((Cout, Cout, 3))
        p[f'pyr_b_{i}'] = nrm((Cout,), 0.05)
        p[f'pyr_gn_g_{i}'] = 1.0 + nrm((Cout,))
        p[f'pyr_gn_b_{i}'] = nrm((Cout,))
    for j in range(2):
        p[f'loct_w_{j}'] = nrm((Cout, Cout, 3))
        p[f'loct_b_{j}'] = nrm((Cout,), 0.05)
        p[f'loct_gn_g_{j}'] = 1.0 + nrm((Cout,))
        p[f'loct_gn_b_{j}'] = nrm((Cout,))
        p[f'conft_w_{j}'] = nrm((Cout, Cout, 3))
        p[f'conft_b_{j}'] = nrm((Cout,), 0.05)
        p[f'conft_gn_g_{j}'] = 1.0 + nrm((Cout,))
        p[f'conft_gn_b_{j}'] = nrm((Cout,))
    p['loc_head_w'] = nrm((2, Cout, 3))
    p['loc_head_b'] = nrm((2,), 0.05)
    p['conf_head_w'] = nrm((num_classes, Cout, 3))
    p['conf_head_b'] = nrm((num_classes,), 0.05)
    p['scales'] = jnp.ones((layer_num,), jnp.float32)        # ScaleExp(init_value=1.0)
    return p


# ----------------------------------------------------------------------------
if __name__ == "__main__":
    # small, consistent shapes: feat_channels=[4], kernel_shapes=[4],
    # out_channels=32 (GroupNorm(32, 32)), num_classes=8, layer_num=2.
    B, Cin, T, HW = 2, 4, 16, 4
    Cout, num_classes, layer_num, groups = 32, 8, 2, 32
    feat_t = T // 2        # first pyramid level's temporal size -> priors align 1:1

    key = jax.random.PRNGKey(0)
    kx, kp = jax.random.split(key)
    x = jax.random.normal(kx, (B, Cin, T, HW, HW), jnp.float32)
    params = init_params(kp, Cin, Cout, HW, num_classes, layer_num)

    n_pred = T // 2 + T // 4

    fwd_f32 = jax.jit(functools.partial(
        coarse_pyramid_forward, feat_t=feat_t, layer_num=layer_num,
        num_classes=num_classes, groups=groups, compute_dtype=jnp.float32))
    loc, conf, priors = fwd_f32(params, x)
    jax.block_until_ready((loc, conf, priors))

    assert loc.shape == (B, n_pred, 2), loc.shape
    assert conf.shape == (B, n_pred, num_classes), conf.shape
    assert priors.shape == (1, n_pred, 1), priors.shape

    loc_ref, conf_ref = ref_forward(params, x, layer_num=layer_num, groups=groups)
    np.testing.assert_allclose(np.asarray(loc), np.asarray(loc_ref), rtol=2e-2, atol=2e-2)
    np.testing.assert_allclose(np.asarray(conf), np.asarray(conf_ref), rtol=2e-2, atol=2e-2)

    # bf16 MXU path (v6e/v7x): activations/weights bf16, GN stats + exp in f32.
    fwd_bf16 = jax.jit(functools.partial(
        coarse_pyramid_forward, feat_t=feat_t, layer_num=layer_num,
        num_classes=num_classes, groups=groups, compute_dtype=jnp.bfloat16))
    loc16, conf16, _ = fwd_bf16(params, x)
    jax.block_until_ready((loc16, conf16))
    assert loc16.shape == loc.shape and conf16.shape == conf.shape
    np.testing.assert_allclose(np.asarray(loc16), np.asarray(loc_ref), rtol=0.3, atol=0.3)
    np.testing.assert_allclose(np.asarray(conf16), np.asarray(conf_ref), rtol=0.3, atol=0.3)

    print("KERNEL_OK")
</pallas_src>

<mosaic_0001>
module attributes {stable_mosaic.version = 11 : i64} {
  func.func @_conv_gn_relu_kernel(%arg0: i32, %arg1: memref<32x64xf32, #tpu.memory_space<vmem>>, %arg2: memref<64x32xf32, #tpu.memory_space<vmem>>, %arg3: memref<1x32xf32, #tpu.memory_space<vmem>>, %arg4: memref<1x32xf32, #tpu.memory_space<vmem>>, %arg5: memref<1x32xf32, #tpu.memory_space<vmem>>, %arg6: memref<32x32xf32, #tpu.memory_space<vmem>>) attributes {dimension_semantics = [#tpu.dimension_semantics<arbitrary>], iteration_bounds = array<i64: 1>, scalar_prefetch = 0 : i64, scratch_operands = 0 : i64, tpu.core_type = #tpu.core_type<tc>, window_params = [{pipeline_mode = #tpu.pipeline_mode<synchronous>, transform_indices = @transform_0, window_bounds = array<i64: 32, 64>}, {pipeline_mode = #tpu.pipeline_mode<synchronous>, transform_indices = @transform_1, window_bounds = array<i64: 64, 32>}, {pipeline_mode = #tpu.pipeline_mode<synchronous>, transform_indices = @transform_2, window_bounds = array<i64: 1, 32>}, {pipeline_mode = #tpu.pipeline_mode<synchronous>, transform_indices = @transform_3, window_bounds = array<i64: 1, 32>}, {pipeline_mode = #tpu.pipeline_mode<synchronous>, transform_indices = @transform_4, window_bounds = array<i64: 1, 32>}, {pipeline_mode = #tpu.pipeline_mode<synchronous>, transform_indices = @transform_5, window_bounds = array<i64: 32, 32>}]} {
    %c0 = arith.constant 0 : index
    %c0_0 = arith.constant 0 : index
    %0 = vector.load %arg1[%c0, %c0_0] : memref<32x64xf32, #tpu.memory_space<vmem>>, vector<32x64xf32>
    %c0_1 = arith.constant 0 : index
    %c0_2 = arith.constant 0 : index
    %1 = vector.load %arg2[%c0_1, %c0_2] : memref<64x32xf32, #tpu.memory_space<vmem>>, vector<64x32xf32>
    %cst = arith.constant dense<0.000000e+00> : vector<32x32xf32>
    %2 = tpu.matmul %0, %1, %cst {dimension_numbers = #tpu.dot_dimension_numbers<[1], [0], [0], [1], [0, 0, 1, 1], [], []>} : vector<32x64xf32>, vector<64x32xf32>, vector<32x32xf32> -> vector<32x32xf32>
    %c0_3 = arith.constant 0 : index
    %c0_4 = arith.constant 0 : index
    %3 = vector.load %arg3[%c0_3, %c0_4] : memref<1x32xf32, #tpu.memory_space<vmem>>, vector<1x32xf32>
    %4 = vector.broadcast %3 : vector<1x32xf32> to vector<32x32xf32>
    %5 = arith.addf %2, %4 : vector<32x32xf32>
    %c0_5 = arith.constant 0 : index
    %c0_6 = arith.constant 0 : index
    %6 = vector.load %arg4[%c0_5, %c0_6] : memref<1x32xf32, #tpu.memory_space<vmem>>, vector<1x32xf32>
    %c0_7 = arith.constant 0 : index
    %c0_8 = arith.constant 0 : index
    %7 = vector.load %arg5[%c0_7, %c0_8] : memref<1x32xf32, #tpu.memory_space<vmem>>, vector<1x32xf32>
    %8 = vector.extract_strided_slice %5 {offsets = [0, 0], sizes = [16, 32], strides = [1, 1]} : vector<32x32xf32> to vector<16x32xf32>
    %cst_9 = arith.constant dense<0.000000e+00> : vector<32xf32>
    %9 = vector.multi_reduction <add>, %8, %cst_9 [0] : vector<16x32xf32> to vector<32xf32>
    %10 = vector.shape_cast %9 : vector<32xf32> to vector<1x32xf32>
    %cst_10 = arith.constant 6.250000e-02 : f32
    %11 = vector.broadcast %cst_10 : f32 to vector<1x32xf32>
    %12 = arith.mulf %10, %11 : vector<1x32xf32>
    %13 = vector.broadcast %12 : vector<1x32xf32> to vector<16x32xf32>
    %14 = arith.subf %8, %13 : vector<16x32xf32>
    %15 = arith.mulf %14, %14 : vector<16x32xf32>
    %cst_11 = arith.constant dense<0.000000e+00> : vector<32xf32>
    %16 = vector.multi_reduction <add>, %15, %cst_11 [0] : vector<16x32xf32> to vector<32xf32>
    %17 = vector.shape_cast %16 : vector<32xf32> to vector<1x32xf32>
    %cst_12 = arith.constant 6.250000e-02 : f32
    %18 = vector.broadcast %cst_12 : f32 to vector<1x32xf32>
    %19 = arith.mulf %17, %18 : vector<1x32xf32>
    %cst_13 = arith.constant 9.99999974E-6 : f32
    %20 = vector.broadcast %cst_13 : f32 to vector<1x32xf32>
    %21 = arith.addf %19, %20 : vector<1x32xf32>
    %22 = math.rsqrt %21 : vector<1x32xf32>
    %23 = vector.broadcast %22 : vector<1x32xf32> to vector<16x32xf32>
    %24 = arith.mulf %14, %23 : vector<16x32xf32>
    %25 = vector.broadcast %6 : vector<1x32xf32> to vector<16x32xf32>
    %26 = arith.mulf %24, %25 : vector<16x32xf32>
    %27 = vector.broadcast %7 : vector<1x32xf32> to vector<16x32xf32>
    %28 = arith.addf %26, %27 : vector<16x32xf32>
    %cst_14 = arith.constant 0.000000e+00 : f32
    %29 = vector.broadcast %cst_14 : f32 to vector<16x32xf32>
    %30 = arith.maximumf %28, %29 : vector<16x32xf32>
    %31 = vector.extract_strided_slice %5 {offsets = [16, 0], sizes = [16, 32], strides = [1, 1]} : vector<32x32xf32> to vector<16x32xf32>
    %cst_15 = arith.constant dense<0.000000e+00> : vector<32xf32>
    %32 = vector.multi_reduction <add>, %31, %cst_15 [0] : vector<16x32xf32> to vector<32xf32>
    %33 = vector.shape_cast %32 : vector<32xf32> to vector<1x32xf32>
    %cst_16 = arith.constant 6.250000e-02 : f32
    %34 = vector.broadcast %cst_16 : f32 to vector<1x32xf32>
    %35 = arith.mulf %33, %34 : vector<1x32xf32>
    %36 = vector.broadcast %35 : vector<1x32xf32> to vector<16x32xf32>
    %37 = arith.subf %31, %36 : vector<16x32xf32>
    %38 = arith.mulf %37, %37 : vector<16x32xf32>
    %cst_17 = arith.constant dense<0.000000e+00> : vector<32xf32>
    %39 = vector.multi_reduction <add>, %38, %cst_17 [0] : vector<16x32xf32> to vector<32xf32>
    %40 = vector.shape_cast %39 : vector<32xf32> to vector<1x32xf32>
    %cst_18 = arith.constant 6.250000e-02 : f32
    %41 = vector.broadcast %cst_18 : f32 to vector<1x32xf32>
    %42 = arith.mulf %40, %41 : vector<1x32xf32>
    %cst_19 = arith.constant 9.99999974E-6 : f32
    %43 = vector.broadcast %cst_19 : f32 to vector<1x32xf32>
    %44 = arith.addf %42, %43 : vector<1x32xf32>
    %45 = math.rsqrt %44 : vector<1x32xf32>
    %46 = vector.broadcast %45 : vector<1x32xf32> to vector<16x32xf32>
    %47 = arith.mulf %37, %46 : vector<16x32xf32>
    %48 = vector.broadcast %6 : vector<1x32xf32> to vector<16x32xf32>
    %49 = arith.mulf %47, %48 : vector<16x32xf32>
    %50 = vector.broadcast %7 : vector<1x32xf32> to vector<16x32xf32>
    %51 = arith.addf %49, %50 : vector<16x32xf32>
    %cst_20 = arith.constant 0.000000e+00 : f32
    %52 = vector.broadcast %cst_20 : f32 to vector<16x32xf32>
    %53 = arith.maximumf %51, %52 : vector<16x32xf32>
    %54 = tpu.concatenate %30, %53 in 0 : vector<16x32xf32>, vector<16x32xf32> -> vector<32x32xf32>
    %c0_21 = arith.constant 0 : index
    %c0_22 = arith.constant 0 : index
    %55 = vector.load %arg6[%c0_21, %c0_22] : memref<32x32xf32, #tpu.memory_space<vmem>>, vector<32x32xf32>
    tpu.vector_store %arg6[%c0_21, %c0_22], %54 {strides = array<i32>} : memref<32x32xf32, #tpu.memory_space<vmem>>, vector<32x32xf32>,
    return
  }
  func.func @transform_0(%arg0: i32) -> (i32, i32) {
    %c0_i32 = arith.constant 0 : i32
    %c0_i32_0 = arith.constant 0 : i32
    %c0_i32_1 = arith.constant 0 : i32
    return %c0_i32, %c0_i32_0 : i32, i32
  }
  func.func @transform_1(%arg0: i32) -> (i32, i32) {
    %c0_i32 = arith.constant 0 : i32
    %c0_i32_0 = arith.constant 0 : i32
    %c0_i32_1 = arith.constant 0 : i32
    return %c0_i32, %c0_i32_0 : i32, i32
  }
  func.func @transform_2(%arg0: i32) -> (i32, i32) {
    %c0_i32 = arith.constant 0 : i32
    %c0_i32_0 = arith.constant 0 : i32
    %c0_i32_1 = arith.constant 0 : i32
    return %c0_i32, %c0_i32_0 : i32, i32
  }
  func.func @transform_3(%arg0: i32) -> (i32, i32) {
    %c0_i32 = arith.constant 0 : i32
    %c0_i32_0 = arith.constant 0 : i32
    %c0_i32_1 = arith.constant 0 : i32
    return %c0_i32, %c0_i32_0 : i32, i32
  }
  func.func @transform_4(%arg0: i32) -> (i32, i32) {
    %c0_i32 = arith.constant 0 : i32
    %c0_i32_0 = arith.constant 0 : i32
    %c0_i32_1 = arith.constant 0 : i32
    return %c0_i32, %c0_i32_0 : i32, i32
  }
  func.func @transform_5(%arg0: i32) -> (i32, i32) {
    %c0_i32 = arith.constant 0 : i32
    %c0_i32_0 = arith.constant 0 : i32
    %c0_i32_1 = arith.constant 0 : i32
    return %c0_i32, %c0_i32_0 : i32, i32
  }
}

module attributes {stable_mosaic.version = 11 : i64} {
  func.func @_conv_gn_relu_kernel(%arg0: i32, %arg1: memref<16x96xf32, #tpu.memory_space<vmem>>, %arg2: memref<96x32xf32, #tpu.memory_space<vmem>>, %arg3: memref<1x32xf32, #tpu.memory_space<vmem>>, %arg4: memref<1x32xf32, #tpu.memory_space<vmem>>, %arg5: memref<1x32xf32, #tpu.memory_space<vmem>>, %arg6: memref<16x32xf32, #tpu.memory_space<vmem>>) attributes {dimension_semantics = [#tpu.dimension_semantics<arbitrary>], iteration_bounds = array<i64: 1>, scalar_prefetch = 0 : i64, scratch_operands = 0 : i64, tpu.core_type = #tpu.core_type<tc>, window_params = [{pipeline_mode = #tpu.pipeline_mode<synchronous>, transform_indices = @transform_0, window_bounds = array<i64: 16, 96>}, {pipeline_mode = #tpu.pipeline_mode<synchronous>, transform_indices = @transform_1, window_bounds = array<i64: 96, 32>}, {pipeline_mode = #tpu.pipeline_mode<synchronous>, transform_indices = @transform_2, window_bounds = array<i64: 1, 32>}, {pipeline_mode = #tpu.pipeline_mode<synchronous>, transform_indices = @transform_3, window_bounds = array<i64: 1, 32>}, {pipeline_mode = #tpu.pipeline_mode<synchronous>, transform_indices = @transform_4, window_bounds = array<i64: 1, 32>}, {pipeline_mode = #tpu.pipeline_mode<synchronous>, transform_indices = @transform_5, window_bounds = array<i64: 16, 32>}]} {
    %c0 = arith.constant 0 : index
    %c0_0 = arith.constant 0 : index
    %0 = vector.load %arg1[%c0, %c0_0] : memref<16x96xf32, #tpu.memory_space<vmem>>, vector<16x96xf32>
    %c0_1 = arith.constant 0 : index
    %c0_2 = arith.constant 0 : index
    %1 = vector.load %arg2[%c0_1, %c0_2] : memref<96x32xf32, #tpu.memory_space<vmem>>, vector<96x32xf32>
    %cst = arith.constant dense<0.000000e+00> : vector<16x32xf32>
    %2 = tpu.matmul %0, %1, %cst {dimension_numbers = #tpu.dot_dimension_numbers<[1], [0], [0], [1], [0, 0, 1, 1], [], []>} : vector<16x96xf32>, vector<96x32xf32>, vector<16x32xf32> -> vector<16x32xf32>
    %c0_3 = arith.constant 0 : index
    %c0_4 = arith.constant 0 : index
    %3 = vector.load %arg3[%c0_3, %c0_4] : memref<1x32xf32, #tpu.memory_space<vmem>>, vector<1x32xf32>
    %4 = vector.broadcast %3 : vector<1x32xf32> to vector<16x32xf32>
    %5 = arith.addf %2, %4 : vector<16x32xf32>
    %c0_5 = arith.constant 0 : index
    %c0_6 = arith.constant 0 : index
    %6 = vector.load %arg4[%c0_5, %c0_6] : memref<1x32xf32, #tpu.memory_space<vmem>>, vector<1x32xf32>
    %c0_7 = arith.constant 0 : index
    %c0_8 = arith.constant 0 : index
    %7 = vector.load %arg5[%c0_7, %c0_8] : memref<1x32xf32, #tpu.memory_space<vmem>>, vector<1x32xf32>
    %8 = vector.extract_strided_slice %5 {offsets = [0, 0], sizes = [8, 32], strides = [1, 1]} : vector<16x32xf32> to vector<8x32xf32>
    %cst_9 = arith.constant dense<0.000000e+00> : vector<32xf32>
    %9 = vector.multi_reduction <add>, %8, %cst_9 [0] : vector<8x32xf32> to vector<32xf32>
    %10 = vector.shape_cast %9 : vector<32xf32> to vector<1x32xf32>
    %cst_10 = arith.constant 1.250000e-01 : f32
    %11 = vector.broadcast %cst_10 : f32 to vector<1x32xf32>
    %12 = arith.mulf %10, %11 : vector<1x32xf32>
    %13 = vector.broadcast %12 : vector<1x32xf32> to vector<8x32xf32>
    %14 = arith.subf %8, %13 : vector<8x32xf32>
    %15 = arith.mulf %14, %14 : vector<8x32xf32>
    %cst_11 = arith.constant dense<0.000000e+00> : vector<32xf32>
    %16 = vector.multi_reduction <add>, %15, %cst_11 [0] : vector<8x32xf32> to vector<32xf32>
    %17 = vector.shape_cast %16 : vector<32xf32> to vector<1x32xf32>
    %cst_12 = arith.constant 1.250000e-01 : f32
    %18 = vector.broadcast %cst_12 : f32 to vector<1x32xf32>
    %19 = arith.mulf %17, %18 : vector<1x32xf32>
    %cst_13 = arith.constant 9.99999974E-6 : f32
    %20 = vector.broadcast %cst_13 : f32 to vector<1x32xf32>
    %21 = arith.addf %19, %20 : vector<1x32xf32>
    %22 = math.rsqrt %21 : vector<1x32xf32>
    %23 = vector.broadcast %22 : vector<1x32xf32> to vector<8x32xf32>
    %24 = arith.mulf %14, %23 : vector<8x32xf32>
    %25 = vector.broadcast %6 : vector<1x32xf32> to vector<8x32xf32>
    %26 = arith.mulf %24, %25 : vector<8x32xf32>
    %27 = vector.broadcast %7 : vector<1x32xf32> to vector<8x32xf32>
    %28 = arith.addf %26, %27 : vector<8x32xf32>
    %cst_14 = arith.constant 0.000000e+00 : f32
    %29 = vector.broadcast %cst_14 : f32 to vector<8x32xf32>
    %30 = arith.maximumf %28, %29 : vector<8x32xf32>
    %31 = vector.extract_strided_slice %5 {offsets = [8, 0], sizes = [8, 32], strides = [1, 1]} : vector<16x32xf32> to vector<8x32xf32>
    %cst_15 = arith.constant dense<0.000000e+00> : vector<32xf32>
    %32 = vector.multi_reduction <add>, %31, %cst_15 [0] : vector<8x32xf32> to vector<32xf32>
    %33 = vector.shape_cast %32 : vector<32xf32> to vector<1x32xf32>
    %cst_16 = arith.constant 1.250000e-01 : f32
    %34 = vector.broadcast %cst_16 : f32 to vector<1x32xf32>
    %35 = arith.mulf %33, %34 : vector<1x32xf32>
    %36 = vector.broadcast %35 : vector<1x32xf32> to vector<8x32xf32>
    %37 = arith.subf %31, %36 : vector<8x32xf32>
    %38 = arith.mulf %37, %37 : vector<8x32xf32>
    %cst_17 = arith.constant dense<0.000000e+00> : vector<32xf32>
    %39 = vector.multi_reduction <add>, %38, %cst_17 [0] : vector<8x32xf32> to vector<32xf32>
    %40 = vector.shape_cast %39 : vector<32xf32> to vector<1x32xf32>
    %cst_18 = arith.constant 1.250000e-01 : f32
    %41 = vector.broadcast %cst_18 : f32 to vector<1x32xf32>
    %42 = arith.mulf %40, %41 : vector<1x32xf32>
    %cst_19 = arith.constant 9.99999974E-6 : f32
    %43 = vector.broadcast %cst_19 : f32 to vector<1x32xf32>
    %44 = arith.addf %42, %43 : vector<1x32xf32>
    %45 = math.rsqrt %44 : vector<1x32xf32>
    %46 = vector.broadcast %45 : vector<1x32xf32> to vector<8x32xf32>
    %47 = arith.mulf %37, %46 : vector<8x32xf32>
    %48 = vector.broadcast %6 : vector<1x32xf32> to vector<8x32xf32>
    %49 = arith.mulf %47, %48 : vector<8x32xf32>
    %50 = vector.broadcast %7 : vector<1x32xf32> to vector<8x32xf32>
    %51 = arith.addf %49, %50 : vector<8x32xf32>
    %cst_20 = arith.constant 0.000000e+00 : f32
    %52 = vector.broadcast %cst_20 : f32 to vector<8x32xf32>
    %53 = arith.maximumf %51, %52 : vector<8x32xf32>
    %54 = tpu.concatenate %30, %53 in 0 : vector<8x32xf32>, vector<8x32xf32> -> vector<16x32xf32>
    %c0_21 = arith.constant 0 : index
    %c0_22 = arith.constant 0 : index
    %55 = vector.load %arg6[%c0_21, %c0_22] : memref<16x32xf32, #tpu.memory_space<vmem>>, vector<16x32xf32>
    tpu.vector_store %arg6[%c0_21, %c0_22], %54 {strides = array<i32>} : memref<16x32xf32, #tpu.memory_space<vmem>>, vector<16x32xf32>,
    return
  }
  func.func @transform_0(%arg0: i32) -> (i32, i32) {
    %c0_i32 = arith.constant 0 : i32
    %c0_i32_0 = arith.constant 0 : i32
    %c0_i32_1 = arith.constant 0 : i32
    return %c0_i32, %c0_i32_0 : i32, i32
  }
  func.func @transform_1(%arg0: i32) -> (i32, i32) {
    %c0_i32 = arith.constant 0 : i32
    %c0_i32_0 = arith.constant 0 : i32
    %c0_i32_1 = arith.constant 0 : i32
    return %c0_i32, %c0_i32_0 : i32, i32
  }
  func.func @transform_2(%arg0: i32) -> (i32, i32) {
    %c0_i32 = arith.constant 0 : i32
    %c0_i32_0 = arith.constant 0 : i32
    %c0_i32_1 = arith.constant 0 : i32
    return %c0_i32, %c0_i32_0 : i32, i32
  }
  func.func @transform_3(%arg0: i32) -> (i32, i32) {
    %c0_i32 = arith.constant 0 : i32
    %c0_i32_0 = arith.constant 0 : i32
    %c0_i32_1 = arith.constant 0 : i32
    return %c0_i32, %c0_i32_0 : i32, i32
  }
  func.func @transform_4(%arg0: i32) -> (i32, i32) {
    %c0_i32 = arith.constant 0 : i32
    %c0_i32_0 = arith.constant 0 : i32
    %c0_i32_1 = arith.constant 0 : i32
    return %c0_i32, %c0_i32_0 : i32, i32
  }
  func.func @transform_5(%arg0: i32) -> (i32, i32) {
    %c0_i32 = arith.constant 0 : i32
    %c0_i32_0 = arith.constant 0 : i32
    %c0_i32_1 = arith.constant 0 : i32
    return %c0_i32, %c0_i32_0 : i32, i32
  }
}

module attributes {stable_mosaic.version = 11 : i64} {
  func.func @_conv_gn_relu_kernel(%arg0: i32, %arg1: memref<8x96xf32, #tpu.memory_space<vmem>>, %arg2: memref<96x32xf32, #tpu.memory_space<vmem>>, %arg3: memref<1x32xf32, #tpu.memory_space<vmem>>, %arg4: memref<1x32xf32, #tpu.memory_space<vmem>>, %arg5: memref<1x32xf32, #tpu.memory_space<vmem>>, %arg6: memref<8x32xf32, #tpu.memory_space<vmem>>) attributes {dimension_semantics = [#tpu.dimension_semantics<arbitrary>], iteration_bounds = array<i64: 1>, scalar_prefetch = 0 : i64, scratch_operands = 0 : i64, tpu.core_type = #tpu.core_type<tc>, window_params = [{pipeline_mode = #tpu.pipeline_mode<synchronous>, transform_indices = @transform_0, window_bounds = array<i64: 8, 96>}, {pipeline_mode = #tpu.pipeline_mode<synchronous>, transform_indices = @transform_1, window_bounds = array<i64: 96, 32>}, {pipeline_mode = #tpu.pipeline_mode<synchronous>, transform_indices = @transform_2, window_bounds = array<i64: 1, 32>}, {pipeline_mode = #tpu.pipeline_mode<synchronous>, transform_indices = @transform_3, window_bounds = array<i64: 1, 32>}, {pipeline_mode = #tpu.pipeline_mode<synchronous>, transform_indices = @transform_4, window_bounds = array<i64: 1, 32>}, {pipeline_mode = #tpu.pipeline_mode<synchronous>, transform_indices = @transform_5, window_bounds = array<i64: 8, 32>}]} {
    %c0 = arith.constant 0 : index
    %c0_0 = arith.constant 0 : index
    %0 = vector.load %arg1[%c0, %c0_0] : memref<8x96xf32, #tpu.memory_space<vmem>>, vector<8x96xf32>
    %c0_1 = arith.constant 0 : index
    %c0_2 = arith.constant 0 : index
    %1 = vector.load %arg2[%c0_1, %c0_2] : memref<96x32xf32, #tpu.memory_space<vmem>>, vector<96x32xf32>
    %cst = arith.constant dense<0.000000e+00> : vector<8x32xf32>
    %2 = tpu.matmul %0, %1, %cst {dimension_numbers = #tpu.dot_dimension_numbers<[1], [0], [0], [1], [0, 0, 1, 1], [], []>} : vector<8x96xf32>, vector<96x32xf32>, vector<8x32xf32> -> vector<8x32xf32>
    %c0_3 = arith.constant 0 : index
    %c0_4 = arith.constant 0 : index
    %3 = vector.load %arg3[%c0_3, %c0_4] : memref<1x32xf32, #tpu.memory_space<vmem>>, vector<1x32xf32>
    %4 = vector.broadcast %3 : vector<1x32xf32> to vector<8x32xf32>
    %5 = arith.addf %2, %4 : vector<8x32xf32>
    %c0_5 = arith.constant 0 : index
    %c0_6 = arith.constant 0 : index
    %6 = vector.load %arg4[%c0_5, %c0_6] : memref<1x32xf32, #tpu.memory_space<vmem>>, vector<1x32xf32>
    %c0_7 = arith.constant 0 : index
    %c0_8 = arith.constant 0 : index
    %7 = vector.load %arg5[%c0_7, %c0_8] : memref<1x32xf32, #tpu.memory_space<vmem>>, vector<1x32xf32>
    %8 = vector.extract_strided_slice %5 {offsets = [0, 0], sizes = [4, 32], strides = [1, 1]} : vector<8x32xf32> to vector<4x32xf32>
    %cst_9 = arith.constant dense<0.000000e+00> : vector<32xf32>
    %9 = vector.multi_reduction <add>, %8, %cst_9 [0] : vector<4x32xf32> to vector<32xf32>
    %10 = vector.shape_cast %9 : vector<32xf32> to vector<1x32xf32>
    %cst_10 = arith.constant 2.500000e-01 : f32
    %11 = vector.broadcast %cst_10 : f32 to vector<1x32xf32>
    %12 = arith.mulf %10, %11 : vector<1x32xf32>
    %13 = vector.broadcast %12 : vector<1x32xf32> to vector<4x32xf32>
    %14 = arith.subf %8, %13 : vector<4x32xf32>
    %15 = arith.mulf %14, %14 : vector<4x32xf32>
    %cst_11 = arith.constant dense<0.000000e+00> : vector<32xf32>
    %16 = vector.multi_reduction <add>, %15, %cst_11 [0] : vector<4x32xf32> to vector<32xf32>
    %17 = vector.shape_cast %16 : vector<32xf32> to vector<1x32xf32>
    %cst_12 = arith.constant 2.500000e-01 : f32
    %18 = vector.broadcast %cst_12 : f32 to vector<1x32xf32>
    %19 = arith.mulf %17, %18 : vector<1x32xf32>
    %cst_13 = arith.constant 9.99999974E-6 : f32
    %20 = vector.broadcast %cst_13 : f32 to vector<1x32xf32>
    %21 = arith.addf %19, %20 : vector<1x32xf32>
    %22 = math.rsqrt %21 : vector<1x32xf32>
    %23 = vector.broadcast %22 : vector<1x32xf32> to vector<4x32xf32>
    %24 = arith.mulf %14, %23 : vector<4x32xf32>
    %25 = vector.broadcast %6 : vector<1x32xf32> to vector<4x32xf32>
    %26 = arith.mulf %24, %25 : vector<4x32xf32>
    %27 = vector.broadcast %7 : vector<1x32xf32> to vector<4x32xf32>
    %28 = arith.addf %26, %27 : vector<4x32xf32>
    %cst_14 = arith.constant 0.000000e+00 : f32
    %29 = vector.broadcast %cst_14 : f32 to vector<4x32xf32>
    %30 = arith.maximumf %28, %29 : vector<4x32xf32>
    %31 = vector.extract_strided_slice %5 {offsets = [4, 0], sizes = [4, 32], strides = [1, 1]} : vector<8x32xf32> to vector<4x32xf32>
    %cst_15 = arith.constant dense<0.000000e+00> : vector<32xf32>
    %32 = vector.multi_reduction <add>, %31, %cst_15 [0] : vector<4x32xf32> to vector<32xf32>
    %33 = vector.shape_cast %32 : vector<32xf32> to vector<1x32xf32>
    %cst_16 = arith.constant 2.500000e-01 : f32
    %34 = vector.broadcast %cst_16 : f32 to vector<1x32xf32>
    %35 = arith.mulf %33, %34 : vector<1x32xf32>
    %36 = vector.broadcast %35 : vector<1x32xf32> to vector<4x32xf32>
    %37 = arith.subf %31, %36 : vector<4x32xf32>
    %38 = arith.mulf %37, %37 : vector<4x32xf32>
    %cst_17 = arith.constant dense<0.000000e+00> : vector<32xf32>
    %39 = vector.multi_reduction <add>, %38, %cst_17 [0] : vector<4x32xf32> to vector<32xf32>
    %40 = vector.shape_cast %39 : vector<32xf32> to vector<1x32xf32>
    %cst_18 = arith.constant 2.500000e-01 : f32
    %41 = vector.broadcast %cst_18 : f32 to vector<1x32xf32>
    %42 = arith.mulf %40, %41 : vector<1x32xf32>
    %cst_19 = arith.constant 9.99999974E-6 : f32
    %43 = vector.broadcast %cst_19 : f32 to vector<1x32xf32>
    %44 = arith.addf %42, %43 : vector<1x32xf32>
    %45 = math.rsqrt %44 : vector<1x32xf32>
    %46 = vector.broadcast %45 : vector<1x32xf32> to vector<4x32xf32>
    %47 = arith.mulf %37, %46 : vector<4x32xf32>
    %48 = vector.broadcast %6 : vector<1x32xf32> to vector<4x32xf32>
    %49 = arith.mulf %47, %48 : vector<4x32xf32>
    %50 = vector.broadcast %7 : vector<1x32xf32> to vector<4x32xf32>
    %51 = arith.addf %49, %50 : vector<4x32xf32>
    %cst_20 = arith.constant 0.000000e+00 : f32
    %52 = vector.broadcast %cst_20 : f32 to vector<4x32xf32>
    %53 = arith.maximumf %51, %52 : vector<4x32xf32>
    %54 = tpu.concatenate %30, %53 in 0 : vector<4x32xf32>, vector<4x32xf32> -> vector<8x32xf32>
    %c0_21 = arith.constant 0 : index
    %c0_22 = arith.constant 0 : index
    %55 = vector.load %arg6[%c0_21, %c0_22] : memref<8x32xf32, #tpu.memory_space<vmem>>, vector<8x32xf32>
    tpu.vector_store %arg6[%c0_21, %c0_22], %54 {strides = array<i32>} : memref<8x32xf32, #tpu.memory_space<vmem>>, vector<8x32xf32>,
    return
  }
  func.func @transform_0(%arg0: i32) -> (i32, i32) {
    %c0_i32 = arith.constant 0 : i32
    %c0_i32_0 = arith.constant 0 : i32
    %c0_i32_1 = arith.constant 0 : i32
    return %c0_i32, %c0_i32_0 : i32, i32
  }
  func.func @transform_1(%arg0: i32) -> (i32, i32) {
    %c0_i32 = arith.constant 0 : i32
    %c0_i32_0 = arith.constant 0 : i32
    %c0_i32_1 = arith.constant 0 : i32
    return %c0_i32, %c0_i32_0 : i32, i32
  }
  func.func @transform_2(%arg0: i32) -> (i32, i32) {
    %c0_i32 = arith.constant 0 : i32
    %c0_i32_0 = arith.constant 0 : i32
    %c0_i32_1 = arith.constant 0 : i32
    return %c0_i32, %c0_i32_0 : i32, i32
  }
  func.func @transform_3(%arg0: i32) -> (i32, i32) {
    %c0_i32 = arith.constant 0 : i32
    %c0_i32_0 = arith.constant 0 : i32
    %c0_i32_1 = arith.constant 0 : i32
    return %c0_i32, %c0_i32_0 : i32, i32
  }
  func.func @transform_4(%arg0: i32) -> (i32, i32) {
    %c0_i32 = arith.constant 0 : i32
    %c0_i32_0 = arith.constant 0 : i32
    %c0_i32_1 = arith.constant 0 : i32
    return %c0_i32, %c0_i32_0 : i32, i32
  }
  func.func @transform_5(%arg0: i32) -> (i32, i32) {
    %c0_i32 = arith.constant 0 : i32
    %c0_i32_0 = arith.constant 0 : i32
    %c0_i32_1 = arith.constant 0 : i32
    return %c0_i32, %c0_i32_0 : i32, i32
  }
}

module attributes {stable_mosaic.version = 11 : i64} {
  func.func @_tower_branch_kernel(%arg0: i32, %arg1: memref<8x32xf32, #tpu.memory_space<vmem>>, %arg2: memref<1x2x96x32xf32, #tpu.memory_space<vmem>>, %arg3: memref<1x2x1x32xf32, #tpu.memory_space<vmem>>, %arg4: memref<1x2x1x32xf32, #tpu.memory_space<vmem>>, %arg5: memref<1x2x1x32xf32, #tpu.memory_space<vmem>>, %arg6: memref<1x96x8xf32, #tpu.memory_space<vmem>>, %arg7: memref<1x1x8xf32, #tpu.memory_space<vmem>>, %arg8: memref<1x8x8xf32, #tpu.memory_space<vmem>>) attributes {dimension_semantics = [#tpu.dimension_semantics<parallel>], iteration_bounds = array<i64: 2>, scalar_prefetch = 0 : i64, scratch_operands = 0 : i64, tpu.core_type = #tpu.core_type<tc>, window_params = [{pipeline_mode = #tpu.pipeline_mode<synchronous>, transform_indices = @transform_0, window_bounds = array<i64: 8, 32>}, {transform_indices = @transform_1, window_bounds = array<i64: 1, 2, 96, 32>}, {transform_indices = @transform_2, window_bounds = array<i64: 1, 2, 1, 32>}, {transform_indices = @transform_3, window_bounds = array<i64: 1, 2, 1, 32>}, {transform_indices = @transform_4, window_bounds = array<i64: 1, 2, 1, 32>}, {transform_indices = @transform_5, window_bounds = array<i64: 1, 96, 8>}, {transform_indices = @transform_6, window_bounds = array<i64: 1, 1, 8>}, {transform_indices = @transform_7, window_bounds = array<i64: 1, 8, 8>}]} {
    %c0 = arith.constant 0 : index
    %c0_0 = arith.constant 0 : index
    %0 = vector.load %arg1[%c0, %c0_0] : memref<8x32xf32, #tpu.memory_space<vmem>>, vector<8x32xf32>
    %1 = tpu.iota {dimensions = array<i32: 0>} : vector<8x1xi32>
    %c4_i32 = arith.constant 4 : i32
    %c0_i32 = arith.constant 0 : i32
    %2 = arith.cmpi eq, %c4_i32, %c0_i32 : i32
    %c1_i32 = arith.constant 1 : i32
    %3 = arith.select %2, %c1_i32, %c4_i32 : i32
    %4 = vector.broadcast %3 : i32 to vector<8x1xi32>
    %5 = arith.remsi %1, %4 : vector<8x1xi32>
    %c0_i32_1 = arith.constant 0 : i32
    %6 = vector.broadcast %c0_i32_1 : i32 to vector<8x1xi32>
    %7 = arith.cmpi ne, %5, %6 : vector<8x1xi32>
    %c0_i32_2 = arith.constant 0 : i32
    %8 = vector.broadcast %c0_i32_2 : i32 to vector<8x1xi32>
    %9 = arith.cmpi slt, %5, %8 : vector<8x1xi32>
    %c0_i32_3 = arith.constant 0 : i32
    %10 = arith.cmpi slt, %3, %c0_i32_3 : i32
    %11 = vector.broadcast %10 : i1 to vector<8x1xi1>
    %12 = vector.broadcast %11 : vector<8x1xi1> to vector<8x1xi1>
    %13 = arith.xori %9, %12 : vector<8x1xi1>
    %14 = arith.andi %13, %7 : vector<8x1xi1>
    %15 = vector.broadcast %3 : i32 to vector<8x1xi32>
    %16 = arith.addi %5, %15 : vector<8x1xi32>
    %17 = arith.select %14, %16, %5 : vector<8x1xi1>, vector<8x1xi32>
    %cst = arith.constant 0.000000e+00 : f32
    %18 = vector.broadcast %cst : f32 to vector<1x32xf32>
    %19 = vector.extract_strided_slice %0 {offsets = [0, 0], sizes = [7, 32], strides = [1, 1]} : vector<8x32xf32> to vector<7x32xf32>
    %20 = tpu.concatenate %18, %19 in 0 : vector<1x32xf32>, vector<7x32xf32> -> vector<8x32xf32>
    %21 = vector.extract_strided_slice %0 {offsets = [1, 0], sizes = [7, 32], strides = [1, 1]} : vector<8x32xf32> to vector<7x32xf32>
    %22 = tpu.concatenate %21, %18 in 0 : vector<7x32xf32>, vector<1x32xf32> -> vector<8x32xf32>
    %c0_i32_4 = arith.constant 0 : i32
    %23 = vector.broadcast %c0_i32_4 : i32 to vector<8x1xi32>
    %24 = arith.cmpi eq, %17, %23 : vector<8x1xi32>
    %cst_5 = arith.constant 0.000000e+00 : f32
    %25 = vector.broadcast %cst_5 : f32 to vector<8x32xf32>
    %26 = vector.shape_cast %24 : vector<8x1xi1> to vector<8x1xi1>
    %27 = vector.broadcast %26 : vector<8x1xi1> to vector<8x32xi1>
    %28 = arith.select %27, %25, %20 : vector<8x32xi1>, vector<8x32xf32>
    %c3_i32 = arith.constant 3 : i32
    %29 = vector.broadcast %c3_i32 : i32 to vector<8x1xi32>
    %30 = arith.cmpi eq, %17, %29 : vector<8x1xi32>
    %cst_6 = arith.constant 0.000000e+00 : f32
    %31 = vector.broadcast %cst_6 : f32 to vector<8x32xf32>
    %32 = vector.shape_cast %30 : vector<8x1xi1> to vector<8x1xi1>
    %33 = vector.broadcast %32 : vector<8x1xi1> to vector<8x32xi1>
    %34 = arith.select %33, %31, %22 : vector<8x32xi1>, vector<8x32xf32>
    %35 = tpu.concatenate %28, %0, %34 in 1 : vector<8x32xf32>, vector<8x32xf32>, vector<8x32xf32> -> vector<8x96xf32>
    %c0_7 = arith.constant 0 : index
    %c0_8 = arith.constant 0 : index
    %c0_9 = arith.constant 0 : index
    %c0_10 = arith.constant 0 : index
    %36 = vector.load %arg2[%c0_7, %c0_8, %c0_9, %c0_10] : memref<1x2x96x32xf32, #tpu.memory_space<vmem>>, vector<1x1x96x32xf32>
    %37 = vector.shape_cast %36 : vector<1x1x96x32xf32> to vector<96x32xf32>
    %cst_11 = arith.constant dense<0.000000e+00> : vector<8x32xf32>
    %38 = tpu.matmul %35, %37, %cst_11 {dimension_numbers = #tpu.dot_dimension_numbers<[1], [0], [0], [1], [0, 0, 1, 1], [], []>} : vector<8x96xf32>, vector<96x32xf32>, vector<8x32xf32> -> vector<8x32xf32>
    %c0_12 = arith.constant 0 : index
    %c0_13 = arith.constant 0 : index
    %c0_14 = arith.constant 0 : index
    %c0_15 = arith.constant 0 : index
    %39 = vector.load %arg3[%c0_12, %c0_13, %c0_14, %c0_15] : memref<1x2x1x32xf32, #tpu.memory_space<vmem>>, vector<1x1x1x32xf32>
    %40 = vector.shape_cast %39 : vector<1x1x1x32xf32> to vector<1x32xf32>
    %41 = vector.broadcast %40 : vector<1x32xf32> to vector<8x32xf32>
    %42 = arith.addf %38, %41 : vector<8x32xf32>
    %c0_16 = arith.constant 0 : index
    %c0_17 = arith.constant 0 : index
    %c0_18 = arith.constant 0 : index
    %c0_19 = arith.constant 0 : index
    %43 = vector.load %arg4[%c0_16, %c0_17, %c0_18, %c0_19] : memref<1x2x1x32xf32, #tpu.memory_space<vmem>>, vector<1x1x1x32xf32>
    %44 = vector.shape_cast %43 : vector<1x1x1x32xf32> to vector<1x32xf32>
    %c0_20 = arith.constant 0 : index
    %c0_21 = arith.constant 0 : index
    %c0_22 = arith.constant 0 : index
    %c0_23 = arith.constant 0 : index
    %45 = vector.load %arg5[%c0_20, %c0_21, %c0_22, %c0_23] : memref<1x2x1x32xf32, #tpu.memory_space<vmem>>, vector<1x1x1x32xf32>
    %46 = vector.shape_cast %45 : vector<1x1x1x32xf32> to vector<1x32xf32>
    %47 = vector.extract_strided_slice %42 {offsets = [0, 0], sizes = [4, 32], strides = [1, 1]} : vector<8x32xf32> to vector<4x32xf32>
    %cst_24 = arith.constant dense<0.000000e+00> : vector<32xf32>
    %48 = vector.multi_reduction <add>, %47, %cst_24 [0] : vector<4x32xf32> to vector<32xf32>
    %49 = vector.shape_cast %48 : vector<32xf32> to vector<1x32xf32>
    %cst_25 = arith.constant 2.500000e-01 : f32
    %50 = vector.broadcast %cst_25 : f32 to vector<1x32xf32>
    %51 = arith.mulf %49, %50 : vector<1x32xf32>
    %52 = vector.broadcast %51 : vector<1x32xf32> to vector<4x32xf32>
    %53 = arith.subf %47, %52 : vector<4x32xf32>
    %54 = arith.mulf %53, %53 : vector<4x32xf32>
    %cst_26 = arith.constant dense<0.000000e+00> : vector<32xf32>
    %55 = vector.multi_reduction <add>, %54, %cst_26 [0] : vector<4x32xf32> to vector<32xf32>
    %56 = vector.shape_cast %55 : vector<32xf32> to vector<1x32xf32>
    %cst_27 = arith.constant 2.500000e-01 : f32
    %57 = vector.broadcast %cst_27 : f32 to vector<1x32xf32>
    %58 = arith.mulf %56, %57 : vector<1x32xf32>
    %cst_28 = arith.constant 9.99999974E-6 : f32
    %59 = vector.broadcast %cst_28 : f32 to vector<1x32xf32>
    %60 = arith.addf %58, %59 : vector<1x32xf32>
    %61 = math.rsqrt %60 : vector<1x32xf32>
    %62 = vector.broadcast %61 : vector<1x32xf32> to vector<4x32xf32>
    %63 = arith.mulf %53, %62 : vector<4x32xf32>
    %64 = vector.broadcast %44 : vector<1x32xf32> to vector<4x32xf32>
    %65 = arith.mulf %63, %64 : vector<4x32xf32>
    %66 = vector.broadcast %46 : vector<1x32xf32> to vector<4x32xf32>
    %67 = arith.addf %65, %66 : vector<4x32xf32>
    %cst_29 = arith.constant 0.000000e+00 : f32
    %68 = vector.broadcast %cst_29 : f32 to vector<4x32xf32>
    %69 = arith.maximumf %67, %68 : vector<4x32xf32>
    %70 = vector.extract_strided_slice %42 {offsets = [4, 0], sizes = [4, 32], strides = [1, 1]} : vector<8x32xf32> to vector<4x32xf32>
    %cst_30 = arith.constant dense<0.000000e+00> : vector<32xf32>
    %71 = vector.multi_reduction <add>, %70, %cst_30 [0] : vector<4x32xf32> to vector<32xf32>
    %72 = vector.shape_cast %71 : vector<32xf32> to vector<1x32xf32>
    %cst_31 = arith.constant 2.500000e-01 : f32
    %73 = vector.broadcast %cst_31 : f32 to vector<1x32xf32>
    %74 = arith.mulf %72, %73 : vector<1x32xf32>
    %75 = vector.broadcast %74 : vector<1x32xf32> to vector<4x32xf32>
    %76 = arith.subf %70, %75 : vector<4x32xf32>
    %77 = arith.mulf %76, %76 : vector<4x32xf32>
    %cst_32 = arith.constant dense<0.000000e+00> : vector<32xf32>
    %78 = vector.multi_reduction <add>, %77, %cst_32 [0] : vector<4x32xf32> to vector<32xf32>
    %79 = vector.shape_cast %78 : vector<32xf32> to vector<1x32xf32>
    %cst_33 = arith.constant 2.500000e-01 : f32
    %80 = vector.broadcast %cst_33 : f32 to vector<1x32xf32>
    %81 = arith.mulf %79, %80 : vector<1x32xf32>
    %cst_34 = arith.constant 9.99999974E-6 : f32
    %82 = vector.broadcast %cst_34 : f32 to vector<1x32xf32>
    %83 = arith.addf %81, %82 : vector<1x32xf32>
    %84 = math.rsqrt %83 : vector<1x32xf32>
    %85 = vector.broadcast %84 : vector<1x32xf32> to vector<4x32xf32>
    %86 = arith.mulf %76, %85 : vector<4x32xf32>
    %87 = vector.broadcast %44 : vector<1x32xf32> to vector<4x32xf32>
    %88 = arith.mulf %86, %87 : vector<4x32xf32>
    %89 = vector.broadcast %46 : vector<1x32xf32> to vector<4x32xf32>
    %90 = arith.addf %88, %89 : vector<4x32xf32>
    %cst_35 = arith.constant 0.000000e+00 : f32
    %91 = vector.broadcast %cst_35 : f32 to vector<4x32xf32>
    %92 = arith.maximumf %90, %91 : vector<4x32xf32>
    %93 = tpu.concatenate %69, %92 in 0 : vector<4x32xf32>, vector<4x32xf32> -> vector<8x32xf32>
    %94 = tpu.iota {dimensions = array<i32: 0>} : vector<8x1xi32>
    %c4_i32_36 = arith.constant 4 : i32
    %c0_i32_37 = arith.constant 0 : i32
    %95 = arith.cmpi eq, %c4_i32_36, %c0_i32_37 : i32
    %c1_i32_38 = arith.constant 1 : i32
    %96 = arith.select %95, %c1_i32_38, %c4_i32_36 : i32
    %97 = vector.broadcast %96 : i32 to vector<8x1xi32>
    %98 = arith.remsi %94, %97 : vector<8x1xi32>
    %c0_i32_39 = arith.constant 0 : i32
    %99 = vector.broadcast %c0_i32_39 : i32 to vector<8x1xi32>
    %100 = arith.cmpi ne, %98, %99 : vector<8x1xi32>
    %c0_i32_40 = arith.constant 0 : i32
    %101 = vector.broadcast %c0_i32_40 : i32 to vector<8x1xi32>
    %102 = arith.cmpi slt, %98, %101 : vector<8x1xi32>
    %c0_i32_41 = arith.constant 0 : i32
    %103 = arith.cmpi slt, %96, %c0_i32_41 : i32
    %104 = vector.broadcast %103 : i1 to vector<8x1xi1>
    %105 = vector.broadcast %104 : vector<8x1xi1> to vector<8x1xi1>
    %106 = arith.xori %102, %105 : vector<8x1xi1>
    %107 = arith.andi %106, %100 : vector<8x1xi1>
    %108 = vector.broadcast %96 : i32 to vector<8x1xi32>
    %109 = arith.addi %98, %108 : vector<8x1xi32>
    %110 = arith.select %107, %109, %98 : vector<8x1xi1>, vector<8x1xi32>
    %cst_42 = arith.constant 0.000000e+00 : f32
    %111 = vector.broadcast %cst_42 : f32 to vector<1x32xf32>
    %112 = vector.extract_strided_slice %93 {offsets = [0, 0], sizes = [7, 32], strides = [1, 1]} : vector<8x32xf32> to vector<7x32xf32>
    %113 = tpu.concatenate %111, %112 in 0 : vector<1x32xf32>, vector<7x32xf32> -> vector<8x32xf32>
    %114 = vector.extract_strided_slice %93 {offsets = [1, 0], sizes = [7, 32], strides = [1, 1]} : vector<8x32xf32> to vector<7x32xf32>
    %115 = tpu.concatenate %114, %111 in 0 : vector<7x32xf32>, vector<1x32xf32> -> vector<8x32xf32>
    %c0_i32_43 = arith.constant 0 : i32
    %116 = vector.broadcast %c0_i32_43 : i32 to vector<8x1xi32>
    %117 = arith.cmpi eq, %110, %116 : vector<8x1xi32>
    %cst_44 = arith.constant 0.000000e+00 : f32
    %118 = vector.broadcast %cst_44 : f32 to vector<8x32xf32>
    %119 = vector.shape_cast %117 : vector<8x1xi1> to vector<8x1xi1>
    %120 = vector.broadcast %119 : vector<8x1xi1> to vector<8x32xi1>
    %121 = arith.select %120, %118, %113 : vector<8x32xi1>, vector<8x32xf32>
    %c3_i32_45 = arith.constant 3 : i32
    %122 = vector.broadcast %c3_i32_45 : i32 to vector<8x1xi32>
    %123 = arith.cmpi eq, %110, %122 : vector<8x1xi32>
    %cst_46 = arith.constant 0.000000e+00 : f32
    %124 = vector.broadcast %cst_46 : f32 to vector<8x32xf32>
    %125 = vector.shape_cast %123 : vector<8x1xi1> to vector<8x1xi1>
    %126 = vector.broadcast %125 : vector<8x1xi1> to vector<8x32xi1>
    %127 = arith.select %126, %124, %115 : vector<8x32xi1>, vector<8x32xf32>
    %128 = tpu.concatenate %121, %93, %127 in 1 : vector<8x32xf32>, vector<8x32xf32>, vector<8x32xf32> -> vector<8x96xf32>
    %c0_47 = arith.constant 0 : index
    %c1 = arith.constant 1 : index
    %c0_48 = arith.constant 0 : index
    %c0_49 = arith.constant 0 : index
    %129 = vector.load %arg2[%c0_47, %c1, %c0_48, %c0_49] : memref<1x2x96x32xf32, #tpu.memory_space<vmem>>, vector<1x1x96x32xf32>
    %130 = vector.shape_cast %129 : vector<1x1x96x32xf32> to vector<96x32xf32>
    %cst_50 = arith.constant dense<0.000000e+00> : vector<8x32xf32>
    %131 = tpu.matmul %128, %130, %cst_50 {dimension_numbers = #tpu.dot_dimension_numbers<[1], [0], [0], [1], [0, 0, 1, 1], [], []>} : vector<8x96xf32>, vector<96x32xf32>, vector<8x32xf32> -> vector<8x32xf32>
    %c0_51 = arith.constant 0 : index
    %c1_52 = arith.constant 1 : index
    %c0_53 = arith.constant 0 : index
    %c0_54 = arith.constant 0 : index
    %132 = vector.load %arg3[%c0_51, %c1_52, %c0_53, %c0_54] : memref<1x2x1x32xf32, #tpu.memory_space<vmem>>, vector<1x1x1x32xf32>
    %133 = vector.shape_cast %132 : vector<1x1x1x32xf32> to vector<1x32xf32>
    %134 = vector.broadcast %133 : vector<1x32xf32> to vector<8x32xf32>
    %135 = arith.addf %131, %134 : vector<8x32xf32>
    %c0_55 = arith.constant 0 : index
    %c1_56 = arith.constant 1 : index
    %c0_57 = arith.constant 0 : index
    %c0_58 = arith.constant 0 : index
    %136 = vector.load %arg4[%c0_55, %c1_56, %c0_57, %c0_58] : memref<1x2x1x32xf32, #tpu.memory_space<vmem>>, vector<1x1x1x32xf32>
    %137 = vector.shape_cast %136 : vector<1x1x1x32xf32> to vector<1x32xf32>
    %c0_59 = arith.constant 0 : index
    %c1_60 = arith.constant 1 : index
    %c0_61 = arith.constant 0 : index
    %c0_62 = arith.constant 0 : index
    %138 = vector.load %arg5[%c0_59, %c1_60, %c0_61, %c0_62] : memref<1x2x1x32xf32, #tpu.memory_space<vmem>>, vector<1x1x1x32xf32>
    %139 = vector.shape_cast %138 : vector<1x1x1x32xf32> to vector<1x32xf32>
    %140 = vector.extract_strided_slice %135 {offsets = [0, 0], sizes = [4, 32], strides = [1, 1]} : vector<8x32xf32> to vector<4x32xf32>
    %cst_63 = arith.constant dense<0.000000e+00> : vector<32xf32>
    %141 = vector.multi_reduction <add>, %140, %cst_63 [0] : vector<4x32xf32> to vector<32xf32>
    %142 = vector.shape_cast %141 : vector<32xf32> to vector<1x32xf32>
    %cst_64 = arith.constant 2.500000e-01 : f32
    %143 = vector.broadcast %cst_64 : f32 to vector<1x32xf32>
    %144 = arith.mulf %142, %143 : vector<1x32xf32>
    %145 = vector.broadcast %144 : vector<1x32xf32> to vector<4x32xf32>
    %146 = arith.subf %140, %145 : vector<4x32xf32>
    %147 = arith.mulf %146, %146 : vector<4x32xf32>
    %cst_65 = arith.constant dense<0.000000e+00> : vector<32xf32>
    %148 = vector.multi_reduction <add>, %147, %cst_65 [0] : vector<4x32xf32> to vector<32xf32>
    %149 = vector.shape_cast %148 : vector<32xf32> to vector<1x32xf32>
    %cst_66 = arith.constant 2.500000e-01 : f32
    %150 = vector.broadcast %cst_66 : f32 to vector<1x32xf32>
    %151 = arith.mulf %149, %150 : vector<1x32xf32>
    %cst_67 = arith.constant 9.99999974E-6 : f32
    %152 = vector.broadcast %cst_67 : f32 to vector<1x32xf32>
    %153 = arith.addf %151, %152 : vector<1x32xf32>
    %154 = math.rsqrt %153 : vector<1x32xf32>
    %155 = vector.broadcast %154 : vector<1x32xf32> to vector<4x32xf32>
    %156 = arith.mulf %146, %155 : vector<4x32xf32>
    %157 = vector.broadcast %137 : vector<1x32xf32> to vector<4x32xf32>
    %158 = arith.mulf %156, %157 : vector<4x32xf32>
    %159 = vector.broadcast %139 : vector<1x32xf32> to vector<4x32xf32>
    %160 = arith.addf %158, %159 : vector<4x32xf32>
    %cst_68 = arith.constant 0.000000e+00 : f32
    %161 = vector.broadcast %cst_68 : f32 to vector<4x32xf32>
    %162 = arith.maximumf %160, %161 : vector<4x32xf32>
    %163 = vector.extract_strided_slice %135 {offsets = [4, 0], sizes = [4, 32], strides = [1, 1]} : vector<8x32xf32> to vector<4x32xf32>
    %cst_69 = arith.constant dense<0.000000e+00> : vector<32xf32>
    %164 = vector.multi_reduction <add>, %163, %cst_69 [0] : vector<4x32xf32> to vector<32xf32>
    %165 = vector.shape_cast %164 : vector<32xf32> to vector<1x32xf32>
    %cst_70 = arith.constant 2.500000e-01 : f32
    %166 = vector.broadcast %cst_70 : f32 to vector<1x32xf32>
    %167 = arith.mulf %165, %166 : vector<1x32xf32>
    %168 = vector.broadcast %167 : vector<1x32xf32> to vector<4x32xf32>
    %169 = arith.subf %163, %168 : vector<4x32xf32>
    %170 = arith.mulf %169, %169 : vector<4x32xf32>
    %cst_71 = arith.constant dense<0.000000e+00> : vector<32xf32>
    %171 = vector.multi_reduction <add>, %170, %cst_71 [0] : vector<4x32xf32> to vector<32xf32>
    %172 = vector.shape_cast %171 : vector<32xf32> to vector<1x32xf32>
    %cst_72 = arith.constant 2.500000e-01 : f32
    %173 = vector.broadcast %cst_72 : f32 to vector<1x32xf32>
    %174 = arith.mulf %172, %173 : vector<1x32xf32>
    %cst_73 = arith.constant 9.99999974E-6 : f32
    %175 = vector.broadcast %cst_73 : f32 to vector<1x32xf32>
    %176 = arith.addf %174, %175 : vector<1x32xf32>
    %177 = math.rsqrt %176 : vector<1x32xf32>
    %178 = vector.broadcast %177 : vector<1x32xf32> to vector<4x32xf32>
    %179 = arith.mulf %169, %178 : vector<4x32xf32>
    %180 = vector.broadcast %137 : vector<1x32xf32> to vector<4x32xf32>
    %181 = arith.mulf %179, %180 : vector<4x32xf32>
    %182 = vector.broadcast %139 : vector<1x32xf32> to vector<4x32xf32>
    %183 = arith.addf %181, %182 : vector<4x32xf32>
    %cst_74 = arith.constant 0.000000e+00 : f32
    %184 = vector.broadcast %cst_74 : f32 to vector<4x32xf32>
    %185 = arith.maximumf %183, %184 : vector<4x32xf32>
    %186 = tpu.concatenate %162, %185 in 0 : vector<4x32xf32>, vector<4x32xf32> -> vector<8x32xf32>
    %187 = tpu.iota {dimensions = array<i32: 0>} : vector<8x1xi32>
    %c4_i32_75 = arith.constant 4 : i32
    %c0_i32_76 = arith.constant 0 : i32
    %188 = arith.cmpi eq, %c4_i32_75, %c0_i32_76 : i32
    %c1_i32_77 = arith.constant 1 : i32
    %189 = arith.select %188, %c1_i32_77, %c4_i32_75 : i32
    %190 = vector.broadcast %189 : i32 to vector<8x1xi32>
    %191 = arith.remsi %187, %190 : vector<8x1xi32>
    %c0_i32_78 = arith.constant 0 : i32
    %192 = vector.broadcast %c0_i32_78 : i32 to vector<8x1xi32>
    %193 = arith.cmpi ne, %191, %192 : vector<8x1xi32>
    %c0_i32_79 = arith.constant 0 : i32
    %194 = vector.broadcast %c0_i32_79 : i32 to vector<8x1xi32>
    %195 = arith.cmpi slt, %191, %194 : vector<8x1xi32>
    %c0_i32_80 = arith.constant 0 : i32
    %196 = arith.cmpi slt, %189, %c0_i32_80 : i32
    %197 = vector.broadcast %196 : i1 to vector<8x1xi1>
    %198 = vector.broadcast %197 : vector<8x1xi1> to vector<8x1xi1>
    %199 = arith.xori %195, %198 : vector<8x1xi1>
    %200 = arith.andi %199, %193 : vector<8x1xi1>
    %201 = vector.broadcast %189 : i32 to vector<8x1xi32>
    %202 = arith.addi %191, %201 : vector<8x1xi32>
    %203 = arith.select %200, %202, %191 : vector<8x1xi1>, vector<8x1xi32>
    %cst_81 = arith.constant 0.000000e+00 : f32
    %204 = vector.broadcast %cst_81 : f32 to vector<1x32xf32>
    %205 = vector.extract_strided_slice %186 {offsets = [0, 0], sizes = [7, 32], strides = [1, 1]} : vector<8x32xf32> to vector<7x32xf32>
    %206 = tpu.concatenate %204, %205 in 0 : vector<1x32xf32>, vector<7x32xf32> -> vector<8x32xf32>
    %207 = vector.extract_strided_slice %186 {offsets = [1, 0], sizes = [7, 32], strides = [1, 1]} : vector<8x32xf32> to vector<7x32xf32>
    %208 = tpu.concatenate %207, %204 in 0 : vector<7x32xf32>, vector<1x32xf32> -> vector<8x32xf32>
    %c0_i32_82 = arith.constant 0 : i32
    %209 = vector.broadcast %c0_i32_82 : i32 to vector<8x1xi32>
    %210 = arith.cmpi eq, %203, %209 : vector<8x1xi32>
    %cst_83 = arith.constant 0.000000e+00 : f32
    %211 = vector.broadcast %cst_83 : f32 to vector<8x32xf32>
    %212 = vector.shape_cast %210 : vector<8x1xi1> to vector<8x1xi1>
    %213 = vector.broadcast %212 : vector<8x1xi1> to vector<8x32xi1>
    %214 = arith.select %213, %211, %206 : vector<8x32xi1>, vector<8x32xf32>
    %c3_i32_84 = arith.constant 3 : i32
    %215 = vector.broadcast %c3_i32_84 : i32 to vector<8x1xi32>
    %216 = arith.cmpi eq, %203, %215 : vector<8x1xi32>
    %cst_85 = arith.constant 0.000000e+00 : f32
    %217 = vector.broadcast %cst_85 : f32 to vector<8x32xf32>
    %218 = vector.shape_cast %216 : vector<8x1xi1> to vector<8x1xi1>
    %219 = vector.broadcast %218 : vector<8x1xi1> to vector<8x32xi1>
    %220 = arith.select %219, %217, %208 : vector<8x32xi1>, vector<8x32xf32>
    %221 = tpu.concatenate %214, %186, %220 in 1 : vector<8x32xf32>, vector<8x32xf32>, vector<8x32xf32> -> vector<8x96xf32>
    %c0_86 = arith.constant 0 : index
    %c0_87 = arith.constant 0 : index
    %c0_88 = arith.constant 0 : index
    %222 = vector.load %arg6[%c0_86, %c0_87, %c0_88] : memref<1x96x8xf32, #tpu.memory_space<vmem>>, vector<1x96x8xf32>
    %223 = vector.shape_cast %222 : vector<1x96x8xf32> to vector<96x8xf32>
    %cst_89 = arith.constant dense<0.000000e+00> : vector<8x8xf32>
    %224 = tpu.matmul %221, %223, %cst_89 {dimension_numbers = #tpu.dot_dimension_numbers<[1], [0], [0], [1], [0, 0, 1, 1], [], []>} : vector<8x96xf32>, vector<96x8xf32>, vector<8x8xf32> -> vector<8x8xf32>
    %c0_90 = arith.constant 0 : index
    %c0_91 = arith.constant 0 : index
    %c0_92 = arith.constant 0 : index
    %225 = vector.load %arg7[%c0_90, %c0_91, %c0_92] : memref<1x1x8xf32, #tpu.memory_space<vmem>>, vector<1x1x8xf32>
    %226 = vector.shape_cast %225 : vector<1x1x8xf32> to vector<1x8xf32>
    %227 = vector.broadcast %226 : vector<1x8xf32> to vector<8x8xf32>
    %228 = arith.addf %224, %227 : vector<8x8xf32>
    %c0_i32_93 = arith.constant 0 : i32
    %229 = arith.cmpi eq, %arg0, %c0_i32_93 : i32
    %230 = arith.extui %229 : i1 to i32
    %c0_i32_94 = arith.constant 0 : i32
    %231 = arith.cmpi ne, %230, %c0_i32_94 : i32
    scf.if %231 {
      %235 = math.exp %228 : vector<8x8xf32>
      %c0_97 = arith.constant 0 : index
      %c0_98 = arith.constant 0 : index
      %c0_99 = arith.constant 0 : index
      %236 = vector.load %arg8[%c0_97, %c0_98, %c0_99] : memref<1x8x8xf32, #tpu.memory_space<vmem>>, vector<1x8x8xf32>
      %237 = vector.shape_cast %236 : vector<1x8x8xf32> to vector<8x8xf32>
      %238 = vector.shape_cast %235 : vector<8x8xf32> to vector<1x8x8xf32>
      tpu.vector_store %arg8[%c0_97, %c0_98, %c0_99], %238 {strides = array<i32>} : memref<1x8x8xf32, #tpu.memory_space<vmem>>, vector<1x8x8xf32>,
    } else {
    }
    %c1_i32_95 = arith.constant 1 : i32
    %232 = arith.cmpi eq, %arg0, %c1_i32_95 : i32
    %233 = arith.extui %232 : i1 to i32
    %c0_i32_96 = arith.constant 0 : i32
    %234 = arith.cmpi ne, %233, %c0_i32_96 : i32
    scf.if %234 {
      %c0_97 = arith.constant 0 : index
      %c0_98 = arith.constant 0 : index
      %c0_99 = arith.constant 0 : index
      %235 = vector.load %arg8[%c0_97, %c0_98, %c0_99] : memref<1x8x8xf32, #tpu.memory_space<vmem>>, vector<1x8x8xf32>
      %236 = vector.shape_cast %235 : vector<1x8x8xf32> to vector<8x8xf32>
      %237 = vector.shape_cast %228 : vector<8x8xf32> to vector<1x8x8xf32>
      tpu.vector_store %arg8[%c0_97, %c0_98, %c0_99], %237 {strides = array<i32>} : memref<1x8x8xf32, #tpu.memory_space<vmem>>, vector<1x8x8xf32>,
    } else {
    }
    return
  }
  func.func @transform_0(%arg0: i32) -> (i32, i32) {
    %c0_i32 = arith.constant 0 : i32
    %c0_i32_0 = arith.constant 0 : i32
    %c0_i32_1 = arith.constant 0 : i32
    return %c0_i32, %c0_i32_0 : i32, i32
  }
  func.func @transform_1(%arg0: i32) -> (i32, i32, i32, i32) {
    %c0_i32 = arith.constant 0 : i32
    %c0_i32_0 = arith.constant 0 : i32
    %c0_i32_1 = arith.constant 0 : i32
    %c0_i32_2 = arith.constant 0 : i32
    return %arg0, %c0_i32, %c0_i32_0, %c0_i32_1 : i32, i32, i32, i32
  }
  func.func @transform_2(%arg0: i32) -> (i32, i32, i32, i32) {
    %c0_i32 = arith.constant 0 : i32
    %c0_i32_0 = arith.constant 0 : i32
    %c0_i32_1 = arith.constant 0 : i32
    %c0_i32_2 = arith.constant 0 : i32
    return %arg0, %c0_i32, %c0_i32_0, %c0_i32_1 : i32, i32, i32, i32
  }
  func.func @transform_3(%arg0: i32) -> (i32, i32, i32, i32) {
    %c0_i32 = arith.constant 0 : i32
    %c0_i32_0 = arith.constant 0 : i32
    %c0_i32_1 = arith.constant 0 : i32
    %c0_i32_2 = arith.constant 0 : i32
    return %arg0, %c0_i32, %c0_i32_0, %c0_i32_1 : i32, i32, i32, i32
  }
  func.func @transform_4(%arg0: i32) -> (i32, i32, i32, i32) {
    %c0_i32 = arith.constant 0 : i32
    %c0_i32_0 = arith.constant 0 : i32
    %c0_i32_1 = arith.constant 0 : i32
    %c0_i32_2 = arith.constant 0 : i32
    return %arg0, %c0_i32, %c0_i32_0, %c0_i32_1 : i32, i32, i32, i32
  }
  func.func @transform_5(%arg0: i32) -> (i32, i32, i32) {
    %c0_i32 = arith.constant 0 : i32
    %c0_i32_0 = arith.constant 0 : i32
    %c0_i32_1 = arith.constant 0 : i32
    return %arg0, %c0_i32, %c0_i32_0 : i32, i32, i32
  }
  func.func @transform_6(%arg0: i32) -> (i32, i32, i32) {
    %c0_i32 = arith.constant 0 : i32
    %c0_i32_0 = arith.constant 0 : i32
    %c0_i32_1 = arith.constant 0 : i32
    return %arg0, %c0_i32, %c0_i32_0 : i32, i32, i32
  }
  func.func @transform_7(%arg0: i32) -> (i32, i32, i32) {
    %c0_i32 = arith.constant 0 : i32
    %c0_i32_0 = arith.constant 0 : i32
    %c0_i32_1 = arith.constant 0 : i32
    return %arg0, %c0_i32, %c0_i32_0 : i32, i32, i32
  }
}

module attributes {stable_mosaic.version = 11 : i64} {
  func.func @_tower_branch_kernel(%arg0: i32, %arg1: memref<16x32xf32, #tpu.memory_space<vmem>>, %arg2: memref<1x2x96x32xf32, #tpu.memory_space<vmem>>, %arg3: memref<1x2x1x32xf32, #tpu.memory_space<vmem>>, %arg4: memref<1x2x1x32xf32, #tpu.memory_space<vmem>>, %arg5: memref<1x2x1x32xf32, #tpu.memory_space<vmem>>, %arg6: memref<1x96x8xf32, #tpu.memory_space<vmem>>, %arg7: memref<1x1x8xf32, #tpu.memory_space<vmem>>, %arg8: memref<1x16x8xf32, #tpu.memory_space<vmem>>) attributes {dimension_semantics = [#tpu.dimension_semantics<parallel>], iteration_bounds = array<i64: 2>, scalar_prefetch = 0 : i64, scratch_operands = 0 : i64, tpu.core_type = #tpu.core_type<tc>, window_params = [{pipeline_mode = #tpu.pipeline_mode<synchronous>, transform_indices = @transform_0, window_bounds = array<i64: 16, 32>}, {transform_indices = @transform_1, window_bounds = array<i64: 1, 2, 96, 32>}, {transform_indices = @transform_2, window_bounds = array<i64: 1, 2, 1, 32>}, {transform_indices = @transform_3, window_bounds = array<i64: 1, 2, 1, 32>}, {transform_indices = @transform_4, window_bounds = array<i64: 1, 2, 1, 32>}, {transform_indices = @transform_5, window_bounds = array<i64: 1, 96, 8>}, {transform_indices = @transform_6, window_bounds = array<i64: 1, 1, 8>}, {transform_indices = @transform_7, window_bounds = array<i64: 1, 16, 8>}]} {
    %c0 = arith.constant 0 : index
    %c0_0 = arith.constant 0 : index
    %0 = vector.load %arg1[%c0, %c0_0] : memref<16x32xf32, #tpu.memory_space<vmem>>, vector<16x32xf32>
    %1 = tpu.iota {dimensions = array<i32: 0>} : vector<16x1xi32>
    %c8_i32 = arith.constant 8 : i32
    %c0_i32 = arith.constant 0 : i32
    %2 = arith.cmpi eq, %c8_i32, %c0_i32 : i32
    %c1_i32 = arith.constant 1 : i32
    %3 = arith.select %2, %c1_i32, %c8_i32 : i32
    %4 = vector.broadcast %3 : i32 to vector<16x1xi32>
    %5 = arith.remsi %1, %4 : vector<16x1xi32>
    %c0_i32_1 = arith.constant 0 : i32
    %6 = vector.broadcast %c0_i32_1 : i32 to vector<16x1xi32>
    %7 = arith.cmpi ne, %5, %6 : vector<16x1xi32>
    %c0_i32_2 = arith.constant 0 : i32
    %8 = vector.broadcast %c0_i32_2 : i32 to vector<16x1xi32>
    %9 = arith.cmpi slt, %5, %8 : vector<16x1xi32>
    %c0_i32_3 = arith.constant 0 : i32
    %10 = arith.cmpi slt, %3, %c0_i32_3 : i32
    %11 = vector.broadcast %10 : i1 to vector<16x1xi1>
    %12 = vector.broadcast %11 : vector<16x1xi1> to vector<16x1xi1>
    %13 = arith.xori %9, %12 : vector<16x1xi1>
    %14 = arith.andi %13, %7 : vector<16x1xi1>
    %15 = vector.broadcast %3 : i32 to vector<16x1xi32>
    %16 = arith.addi %5, %15 : vector<16x1xi32>
    %17 = arith.select %14, %16, %5 : vector<16x1xi1>, vector<16x1xi32>
    %cst = arith.constant 0.000000e+00 : f32
    %18 = vector.broadcast %cst : f32 to vector<1x32xf32>
    %19 = vector.extract_strided_slice %0 {offsets = [0, 0], sizes = [15, 32], strides = [1, 1]} : vector<16x32xf32> to vector<15x32xf32>
    %20 = tpu.concatenate %18, %19 in 0 : vector<1x32xf32>, vector<15x32xf32> -> vector<16x32xf32>
    %21 = vector.extract_strided_slice %0 {offsets = [1, 0], sizes = [15, 32], strides = [1, 1]} : vector<16x32xf32> to vector<15x32xf32>
    %22 = tpu.concatenate %21, %18 in 0 : vector<15x32xf32>, vector<1x32xf32> -> vector<16x32xf32>
    %c0_i32_4 = arith.constant 0 : i32
    %23 = vector.broadcast %c0_i32_4 : i32 to vector<16x1xi32>
    %24 = arith.cmpi eq, %17, %23 : vector<16x1xi32>
    %cst_5 = arith.constant 0.000000e+00 : f32
    %25 = vector.broadcast %cst_5 : f32 to vector<16x32xf32>
    %26 = vector.shape_cast %24 : vector<16x1xi1> to vector<16x1xi1>
    %27 = vector.broadcast %26 : vector<16x1xi1> to vector<16x32xi1>
    %28 = arith.select %27, %25, %20 : vector<16x32xi1>, vector<16x32xf32>
    %c7_i32 = arith.constant 7 : i32
    %29 = vector.broadcast %c7_i32 : i32 to vector<16x1xi32>
    %30 = arith.cmpi eq, %17, %29 : vector<16x1xi32>
    %cst_6 = arith.constant 0.000000e+00 : f32
    %31 = vector.broadcast %cst_6 : f32 to vector<16x32xf32>
    %32 = vector.shape_cast %30 : vector<16x1xi1> to vector<16x1xi1>
    %33 = vector.broadcast %32 : vector<16x1xi1> to vector<16x32xi1>
    %34 = arith.select %33, %31, %22 : vector<16x32xi1>, vector<16x32xf32>
    %35 = tpu.concatenate %28, %0, %34 in 1 : vector<16x32xf32>, vector<16x32xf32>, vector<16x32xf32> -> vector<16x96xf32>
    %c0_7 = arith.constant 0 : index
    %c0_8 = arith.constant 0 : index
    %c0_9 = arith.constant 0 : index
    %c0_10 = arith.constant 0 : index
    %36 = vector.load %arg2[%c0_7, %c0_8, %c0_9, %c0_10] : memref<1x2x96x32xf32, #tpu.memory_space<vmem>>, vector<1x1x96x32xf32>
    %37 = vector.shape_cast %36 : vector<1x1x96x32xf32> to vector<96x32xf32>
    %cst_11 = arith.constant dense<0.000000e+00> : vector<16x32xf32>
    %38 = tpu.matmul %35, %37, %cst_11 {dimension_numbers = #tpu.dot_dimension_numbers<[1], [0], [0], [1], [0, 0, 1, 1], [], []>} : vector<16x96xf32>, vector<96x32xf32>, vector<16x32xf32> -> vector<16x32xf32>
    %c0_12 = arith.constant 0 : index
    %c0_13 = arith.constant 0 : index
    %c0_14 = arith.constant 0 : index
    %c0_15 = arith.constant 0 : index
    %39 = vector.load %arg3[%c0_12, %c0_13, %c0_14, %c0_15] : memref<1x2x1x32xf32, #tpu.memory_space<vmem>>, vector<1x1x1x32xf32>
    %40 = vector.shape_cast %39 : vector<1x1x1x32xf32> to vector<1x32xf32>
    %41 = vector.broadcast %40 : vector<1x32xf32> to vector<16x32xf32>
    %42 = arith.addf %38, %41 : vector<16x32xf32>
    %c0_16 = arith.constant 0 : index
    %c0_17 = arith.constant 0 : index
    %c0_18 = arith.constant 0 : index
    %c0_19 = arith.constant 0 : index
    %43 = vector.load %arg4[%c0_16, %c0_17, %c0_18, %c0_19] : memref<1x2x1x32xf32, #tpu.memory_space<vmem>>, vector<1x1x1x32xf32>
    %44 = vector.shape_cast %43 : vector<1x1x1x32xf32> to vector<1x32xf32>
    %c0_20 = arith.constant 0 : index
    %c0_21 = arith.constant 0 : index
    %c0_22 = arith.constant 0 : index
    %c0_23 = arith.constant 0 : index
    %45 = vector.load %arg5[%c0_20, %c0_21, %c0_22, %c0_23] : memref<1x2x1x32xf32, #tpu.memory_space<vmem>>, vector<1x1x1x32xf32>
    %46 = vector.shape_cast %45 : vector<1x1x1x32xf32> to vector<1x32xf32>
    %47 = vector.extract_strided_slice %42 {offsets = [0, 0], sizes = [8, 32], strides = [1, 1]} : vector<16x32xf32> to vector<8x32xf32>
    %cst_24 = arith.constant dense<0.000000e+00> : vector<32xf32>
    %48 = vector.multi_reduction <add>, %47, %cst_24 [0] : vector<8x32xf32> to vector<32xf32>
    %49 = vector.shape_cast %48 : vector<32xf32> to vector<1x32xf32>
    %cst_25 = arith.constant 1.250000e-01 : f32
    %50 = vector.broadcast %cst_25 : f32 to vector<1x32xf32>
    %51 = arith.mulf %49, %50 : vector<1x32xf32>
    %52 = vector.broadcast %51 : vector<1x32xf32> to vector<8x32xf32>
    %53 = arith.subf %47, %52 : vector<8x32xf32>
    %54 = arith.mulf %53, %53 : vector<8x32xf32>
    %cst_26 = arith.constant dense<0.000000e+00> : vector<32xf32>
    %55 = vector.multi_reduction <add>, %54, %cst_26 [0] : vector<8x32xf32> to vector<32xf32>
    %56 = vector.shape_cast %55 : vector<32xf32> to vector<1x32xf32>
    %cst_27 = arith.constant 1.250000e-01 : f32
    %57 = vector.broadcast %cst_27 : f32 to vector<1x32xf32>
    %58 = arith.mulf %56, %57 : vector<1x32xf32>
    %cst_28 = arith.constant 9.99999974E-6 : f32
    %59 = vector.broadcast %cst_28 : f32 to vector<1x32xf32>
    %60 = arith.addf %58, %59 : vector<1x32xf32>
    %61 = math.rsqrt %60 : vector<1x32xf32>
    %62 = vector.broadcast %61 : vector<1x32xf32> to vector<8x32xf32>
    %63 = arith.mulf %53, %62 : vector<8x32xf32>
    %64 = vector.broadcast %44 : vector<1x32xf32> to vector<8x32xf32>
    %65 = arith.mulf %63, %64 : vector<8x32xf32>
    %66 = vector.broadcast %46 : vector<1x32xf32> to vector<8x32xf32>
    %67 = arith.addf %65, %66 : vector<8x32xf32>
    %cst_29 = arith.constant 0.000000e+00 : f32
    %68 = vector.broadcast %cst_29 : f32 to vector<8x32xf32>
    %69 = arith.maximumf %67, %68 : vector<8x32xf32>
    %70 = vector.extract_strided_slice %42 {offsets = [8, 0], sizes = [8, 32], strides = [1, 1]} : vector<16x32xf32> to vector<8x32xf32>
    %cst_30 = arith.constant dense<0.000000e+00> : vector<32xf32>
    %71 = vector.multi_reduction <add>, %70, %cst_30 [0] : vector<8x32xf32> to vector<32xf32>
    %72 = vector.shape_cast %71 : vector<32xf32> to vector<1x32xf32>
    %cst_31 = arith.constant 1.250000e-01 : f32
    %73 = vector.broadcast %cst_31 : f32 to vector<1x32xf32>
    %74 = arith.mulf %72, %73 : vector<1x32xf32>
    %75 = vector.broadcast %74 : vector<1x32xf32> to vector<8x32xf32>
    %76 = arith.subf %70, %75 : vector<8x32xf32>
    %77 = arith.mulf %76, %76 : vector<8x32xf32>
    %cst_32 = arith.constant dense<0.000000e+00> : vector<32xf32>
    %78 = vector.multi_reduction <add>, %77, %cst_32 [0] : vector<8x32xf32> to vector<32xf32>
    %79 = vector.shape_cast %78 : vector<32xf32> to vector<1x32xf32>
    %cst_33 = arith.constant 1.250000e-01 : f32
    %80 = vector.broadcast %cst_33 : f32 to vector<1x32xf32>
    %81 = arith.mulf %79, %80 : vector<1x32xf32>
    %cst_34 = arith.constant 9.99999974E-6 : f32
    %82 = vector.broadcast %cst_34 : f32 to vector<1x32xf32>
    %83 = arith.addf %81, %82 : vector<1x32xf32>
    %84 = math.rsqrt %83 : vector<1x32xf32>
    %85 = vector.broadcast %84 : vector<1x32xf32> to vector<8x32xf32>
    %86 = arith.mulf %76, %85 : vector<8x32xf32>
    %87 = vector.broadcast %44 : vector<1x32xf32> to vector<8x32xf32>
    %88 = arith.mulf %86, %87 : vector<8x32xf32>
    %89 = vector.broadcast %46 : vector<1x32xf32> to vector<8x32xf32>
    %90 = arith.addf %88, %89 : vector<8x32xf32>
    %cst_35 = arith.constant 0.000000e+00 : f32
    %91 = vector.broadcast %cst_35 : f32 to vector<8x32xf32>
    %92 = arith.maximumf %90, %91 : vector<8x32xf32>
    %93 = tpu.concatenate %69, %92 in 0 : vector<8x32xf32>, vector<8x32xf32> -> vector<16x32xf32>
    %94 = tpu.iota {dimensions = array<i32: 0>} : vector<16x1xi32>
    %c8_i32_36 = arith.constant 8 : i32
    %c0_i32_37 = arith.constant 0 : i32
    %95 = arith.cmpi eq, %c8_i32_36, %c0_i32_37 : i32
    %c1_i32_38 = arith.constant 1 : i32
    %96 = arith.select %95, %c1_i32_38, %c8_i32_36 : i32
    %97 = vector.broadcast %96 : i32 to vector<16x1xi32>
    %98 = arith.remsi %94, %97 : vector<16x1xi32>
    %c0_i32_39 = arith.constant 0 : i32
    %99 = vector.broadcast %c0_i32_39 : i32 to vector<16x1xi32>
    %100 = arith.cmpi ne, %98, %99 : vector<16x1xi32>
    %c0_i32_40 = arith.constant 0 : i32
    %101 = vector.broadcast %c0_i32_40 : i32 to vector<16x1xi32>
    %102 = arith.cmpi slt, %98, %101 : vector<16x1xi32>
    %c0_i32_41 = arith.constant 0 : i32
    %103 = arith.cmpi slt, %96, %c0_i32_41 : i32
    %104 = vector.broadcast %103 : i1 to vector<16x1xi1>
    %105 = vector.broadcast %104 : vector<16x1xi1> to vector<16x1xi1>
    %106 = arith.xori %102, %105 : vector<16x1xi1>
    %107 = arith.andi %106, %100 : vector<16x1xi1>
    %108 = vector.broadcast %96 : i32 to vector<16x1xi32>
    %109 = arith.addi %98, %108 : vector<16x1xi32>
    %110 = arith.select %107, %109, %98 : vector<16x1xi1>, vector<16x1xi32>
    %cst_42 = arith.constant 0.000000e+00 : f32
    %111 = vector.broadcast %cst_42 : f32 to vector<1x32xf32>
    %112 = vector.extract_strided_slice %93 {offsets = [0, 0], sizes = [15, 32], strides = [1, 1]} : vector<16x32xf32> to vector<15x32xf32>
    %113 = tpu.concatenate %111, %112 in 0 : vector<1x32xf32>, vector<15x32xf32> -> vector<16x32xf32>
    %114 = vector.extract_strided_slice %93 {offsets = [1, 0], sizes = [15, 32], strides = [1, 1]} : vector<16x32xf32> to vector<15x32xf32>
    %115 = tpu.concatenate %114, %111 in 0 : vector<15x32xf32>, vector<1x32xf32> -> vector<16x32xf32>
    %c0_i32_43 = arith.constant 0 : i32
    %116 = vector.broadcast %c0_i32_43 : i32 to vector<16x1xi32>
    %117 = arith.cmpi eq, %110, %116 : vector<16x1xi32>
    %cst_44 = arith.constant 0.000000e+00 : f32
    %118 = vector.broadcast %cst_44 : f32 to vector<16x32xf32>
    %119 = vector.shape_cast %117 : vector<16x1xi1> to vector<16x1xi1>
    %120 = vector.broadcast %119 : vector<16x1xi1> to vector<16x32xi1>
    %121 = arith.select %120, %118, %113 : vector<16x32xi1>, vector<16x32xf32>
    %c7_i32_45 = arith.constant 7 : i32
    %122 = vector.broadcast %c7_i32_45 : i32 to vector<16x1xi32>
    %123 = arith.cmpi eq, %110, %122 : vector<16x1xi32>
    %cst_46 = arith.constant 0.000000e+00 : f32
    %124 = vector.broadcast %cst_46 : f32 to vector<16x32xf32>
    %125 = vector.shape_cast %123 : vector<16x1xi1> to vector<16x1xi1>
    %126 = vector.broadcast %125 : vector<16x1xi1> to vector<16x32xi1>
    %127 = arith.select %126, %124, %115 : vector<16x32xi1>, vector<16x32xf32>
    %128 = tpu.concatenate %121, %93, %127 in 1 : vector<16x32xf32>, vector<16x32xf32>, vector<16x32xf32> -> vector<16x96xf32>
    %c0_47 = arith.constant 0 : index
    %c1 = arith.constant 1 : index
    %c0_48 = arith.constant 0 : index
    %c0_49 = arith.constant 0 : index
    %129 = vector.load %arg2[%c0_47, %c1, %c0_48, %c0_49] : memref<1x2x96x32xf32, #tpu.memory_space<vmem>>, vector<1x1x96x32xf32>
    %130 = vector.shape_cast %129 : vector<1x1x96x32xf32> to vector<96x32xf32>
    %cst_50 = arith.constant dense<0.000000e+00> : vector<16x32xf32>
    %131 = tpu.matmul %128, %130, %cst_50 {dimension_numbers = #tpu.dot_dimension_numbers<[1], [0], [0], [1], [0, 0, 1, 1], [], []>} : vector<16x96xf32>, vector<96x32xf32>, vector<16x32xf32> -> vector<16x32xf32>
    %c0_51 = arith.constant 0 : index
    %c1_52 = arith.constant 1 : index
    %c0_53 = arith.constant 0 : index
    %c0_54 = arith.constant 0 : index
    %132 = vector.load %arg3[%c0_51, %c1_52, %c0_53, %c0_54] : memref<1x2x1x32xf32, #tpu.memory_space<vmem>>, vector<1x1x1x32xf32>
    %133 = vector.shape_cast %132 : vector<1x1x1x32xf32> to vector<1x32xf32>
    %134 = vector.broadcast %133 : vector<1x32xf32> to vector<16x32xf32>
    %135 = arith.addf %131, %134 : vector<16x32xf32>
    %c0_55 = arith.constant 0 : index
    %c1_56 = arith.constant 1 : index
    %c0_57 = arith.constant 0 : index
    %c0_58 = arith.constant 0 : index
    %136 = vector.load %arg4[%c0_55, %c1_56, %c0_57, %c0_58] : memref<1x2x1x32xf32, #tpu.memory_space<vmem>>, vector<1x1x1x32xf32>
    %137 = vector.shape_cast %136 : vector<1x1x1x32xf32> to vector<1x32xf32>
    %c0_59 = arith.constant 0 : index
    %c1_60 = arith.constant 1 : index
    %c0_61 = arith.constant 0 : index
    %c0_62 = arith.constant 0 : index
    %138 = vector.load %arg5[%c0_59, %c1_60, %c0_61, %c0_62] : memref<1x2x1x32xf32, #tpu.memory_space<vmem>>, vector<1x1x1x32xf32>
    %139 = vector.shape_cast %138 : vector<1x1x1x32xf32> to vector<1x32xf32>
    %140 = vector.extract_strided_slice %135 {offsets = [0, 0], sizes = [8, 32], strides = [1, 1]} : vector<16x32xf32> to vector<8x32xf32>
    %cst_63 = arith.constant dense<0.000000e+00> : vector<32xf32>
    %141 = vector.multi_reduction <add>, %140, %cst_63 [0] : vector<8x32xf32> to vector<32xf32>
    %142 = vector.shape_cast %141 : vector<32xf32> to vector<1x32xf32>
    %cst_64 = arith.constant 1.250000e-01 : f32
    %143 = vector.broadcast %cst_64 : f32 to vector<1x32xf32>
    %144 = arith.mulf %142, %143 : vector<1x32xf32>
    %145 = vector.broadcast %144 : vector<1x32xf32> to vector<8x32xf32>
    %146 = arith.subf %140, %145 : vector<8x32xf32>
    %147 = arith.mulf %146, %146 : vector<8x32xf32>
    %cst_65 = arith.constant dense<0.000000e+00> : vector<32xf32>
    %148 = vector.multi_reduction <add>, %147, %cst_65 [0] : vector<8x32xf32> to vector<32xf32>
    %149 = vector.shape_cast %148 : vector<32xf32> to vector<1x32xf32>
    %cst_66 = arith.constant 1.250000e-01 : f32
    %150 = vector.broadcast %cst_66 : f32 to vector<1x32xf32>
    %151 = arith.mulf %149, %150 : vector<1x32xf32>
    %cst_67 = arith.constant 9.99999974E-6 : f32
    %152 = vector.broadcast %cst_67 : f32 to vector<1x32xf32>
    %153 = arith.addf %151, %152 : vector<1x32xf32>
    %154 = math.rsqrt %153 : vector<1x32xf32>
    %155 = vector.broadcast %154 : vector<1x32xf32> to vector<8x32xf32>
    %156 = arith.mulf %146, %155 : vector<8x32xf32>
    %157 = vector.broadcast %137 : vector<1x32xf32> to vector<8x32xf32>
    %158 = arith.mulf %156, %157 : vector<8x32xf32>
    %159 = vector.broadcast %139 : vector<1x32xf32> to vector<8x32xf32>
    %160 = arith.addf %158, %159 : vector<8x32xf32>
    %cst_68 = arith.constant 0.000000e+00 : f32
    %161 = vector.broadcast %cst_68 : f32 to vector<8x32xf32>
    %162 = arith.maximumf %160, %161 : vector<8x32xf32>
    %163 = vector.extract_strided_slice %135 {offsets = [8, 0], sizes = [8, 32], strides = [1, 1]} : vector<16x32xf32> to vector<8x32xf32>
    %cst_69 = arith.constant dense<0.000000e+00> : vector<32xf32>
    %164 = vector.multi_reduction <add>, %163, %cst_69 [0] : vector<8x32xf32> to vector<32xf32>
    %165 = vector.shape_cast %164 : vector<32xf32> to vector<1x32xf32>
    %cst_70 = arith.constant 1.250000e-01 : f32
    %166 = vector.broadcast %cst_70 : f32 to vector<1x32xf32>
    %167 = arith.mulf %165, %166 : vector<1x32xf32>
    %168 = vector.broadcast %167 : vector<1x32xf32> to vector<8x32xf32>
    %169 = arith.subf %163, %168 : vector<8x32xf32>
    %170 = arith.mulf %169, %169 : vector<8x32xf32>
    %cst_71 = arith.constant dense<0.000000e+00> : vector<32xf32>
    %171 = vector.multi_reduction <add>, %170, %cst_71 [0] : vector<8x32xf32> to vector<32xf32>
    %172 = vector.shape_cast %171 : vector<32xf32> to vector<1x32xf32>
    %cst_72 = arith.constant 1.250000e-01 : f32
    %173 = vector.broadcast %cst_72 : f32 to vector<1x32xf32>
    %174 = arith.mulf %172, %173 : vector<1x32xf32>
    %cst_73 = arith.constant 9.99999974E-6 : f32
    %175 = vector.broadcast %cst_73 : f32 to vector<1x32xf32>
    %176 = arith.addf %174, %175 : vector<1x32xf32>
    %177 = math.rsqrt %176 : vector<1x32xf32>
    %178 = vector.broadcast %177 : vector<1x32xf32> to vector<8x32xf32>
    %179 = arith.mulf %169, %178 : vector<8x32xf32>
    %180 = vector.broadcast %137 : vector<1x32xf32> to vector<8x32xf32>
    %181 = arith.mulf %179, %180 : vector<8x32xf32>
    %182 = vector.broadcast %139 : vector<1x32xf32> to vector<8x32xf32>
    %183 = arith.addf %181, %182 : vector<8x32xf32>
    %cst_74 = arith.constant 0.000000e+00 : f32
    %184 = vector.broadcast %cst_74 : f32 to vector<8x32xf32>
    %185 = arith.maximumf %183, %184 : vector<8x32xf32>
    %186 = tpu.concatenate %162, %185 in 0 : vector<8x32xf32>, vector<8x32xf32> -> vector<16x32xf32>
    %187 = tpu.iota {dimensions = array<i32: 0>} : vector<16x1xi32>
    %c8_i32_75 = arith.constant 8 : i32
    %c0_i32_76 = arith.constant 0 : i32
    %188 = arith.cmpi eq, %c8_i32_75, %c0_i32_76 : i32
    %c1_i32_77 = arith.constant 1 : i32
    %189 = arith.select %188, %c1_i32_77, %c8_i32_75 : i32
    %190 = vector.broadcast %189 : i32 to vector<16x1xi32>
    %191 = arith.remsi %187, %190 : vector<16x1xi32>
    %c0_i32_78 = arith.constant 0 : i32
    %192 = vector.broadcast %c0_i32_78 : i32 to vector<16x1xi32>
    %193 = arith.cmpi ne, %191, %192 : vector<16x1xi32>
    %c0_i32_79 = arith.constant 0 : i32
    %194 = vector.broadcast %c0_i32_79 : i32 to vector<16x1xi32>
    %195 = arith.cmpi slt, %191, %194 : vector<16x1xi32>
    %c0_i32_80 = arith.constant 0 : i32
    %196 = arith.cmpi slt, %189, %c0_i32_80 : i32
    %197 = vector.broadcast %196 : i1 to vector<16x1xi1>
    %198 = vector.broadcast %197 : vector<16x1xi1> to vector<16x1xi1>
    %199 = arith.xori %195, %198 : vector<16x1xi1>
    %200 = arith.andi %199, %193 : vector<16x1xi1>
    %201 = vector.broadcast %189 : i32 to vector<16x1xi32>
    %202 = arith.addi %191, %201 : vector<16x1xi32>
    %203 = arith.select %200, %202, %191 : vector<16x1xi1>, vector<16x1xi32>
    %cst_81 = arith.constant 0.000000e+00 : f32
    %204 = vector.broadcast %cst_81 : f32 to vector<1x32xf32>
    %205 = vector.extract_strided_slice %186 {offsets = [0, 0], sizes = [15, 32], strides = [1, 1]} : vector<16x32xf32> to vector<15x32xf32>
    %206 = tpu.concatenate %204, %205 in 0 : vector<1x32xf32>, vector<15x32xf32> -> vector<16x32xf32>
    %207 = vector.extract_strided_slice %186 {offsets = [1, 0], sizes = [15, 32], strides = [1, 1]} : vector<16x32xf32> to vector<15x32xf32>
    %208 = tpu.concatenate %207, %204 in 0 : vector<15x32xf32>, vector<1x32xf32> -> vector<16x32xf32>
    %c0_i32_82 = arith.constant 0 : i32
    %209 = vector.broadcast %c0_i32_82 : i32 to vector<16x1xi32>
    %210 = arith.cmpi eq, %203, %209 : vector<16x1xi32>
    %cst_83 = arith.constant 0.000000e+00 : f32
    %211 = vector.broadcast %cst_83 : f32 to vector<16x32xf32>
    %212 = vector.shape_cast %210 : vector<16x1xi1> to vector<16x1xi1>
    %213 = vector.broadcast %212 : vector<16x1xi1> to vector<16x32xi1>
    %214 = arith.select %213, %211, %206 : vector<16x32xi1>, vector<16x32xf32>
    %c7_i32_84 = arith.constant 7 : i32
    %215 = vector.broadcast %c7_i32_84 : i32 to vector<16x1xi32>
    %216 = arith.cmpi eq, %203, %215 : vector<16x1xi32>
    %cst_85 = arith.constant 0.000000e+00 : f32
    %217 = vector.broadcast %cst_85 : f32 to vector<16x32xf32>
    %218 = vector.shape_cast %216 : vector<16x1xi1> to vector<16x1xi1>
    %219 = vector.broadcast %218 : vector<16x1xi1> to vector<16x32xi1>
    %220 = arith.select %219, %217, %208 : vector<16x32xi1>, vector<16x32xf32>
    %221 = tpu.concatenate %214, %186, %220 in 1 : vector<16x32xf32>, vector<16x32xf32>, vector<16x32xf32> -> vector<16x96xf32>
    %c0_86 = arith.constant 0 : index
    %c0_87 = arith.constant 0 : index
    %c0_88 = arith.constant 0 : index
    %222 = vector.load %arg6[%c0_86, %c0_87, %c0_88] : memref<1x96x8xf32, #tpu.memory_space<vmem>>, vector<1x96x8xf32>
    %223 = vector.shape_cast %222 : vector<1x96x8xf32> to vector<96x8xf32>
    %cst_89 = arith.constant dense<0.000000e+00> : vector<16x8xf32>
    %224 = tpu.matmul %221, %223, %cst_89 {dimension_numbers = #tpu.dot_dimension_numbers<[1], [0], [0], [1], [0, 0, 1, 1], [], []>} : vector<16x96xf32>, vector<96x8xf32>, vector<16x8xf32> -> vector<16x8xf32>
    %c0_90 = arith.constant 0 : index
    %c0_91 = arith.constant 0 : index
    %c0_92 = arith.constant 0 : index
    %225 = vector.load %arg7[%c0_90, %c0_91, %c0_92] : memref<1x1x8xf32, #tpu.memory_space<vmem>>, vector<1x1x8xf32>
    %226 = vector.shape_cast %225 : vector<1x1x8xf32> to vector<1x8xf32>
    %227 = vector.broadcast %226 : vector<1x8xf32> to vector<16x8xf32>
    %228 = arith.addf %224, %227 : vector<16x8xf32>
    %c0_i32_93 = arith.constant 0 : i32
    %229 = arith.cmpi eq, %arg0, %c0_i32_93 : i32
    %230 = arith.extui %229 : i1 to i32
    %c0_i32_94 = arith.constant 0 : i32
    %231 = arith.cmpi ne, %230, %c0_i32_94 : i32
    scf.if %231 {
      %235 = math.exp %228 : vector<16x8xf32>
      %c0_97 = arith.constant 0 : index
      %c0_98 = arith.constant 0 : index
      %c0_99 = arith.constant 0 : index
      %236 = vector.load %arg8[%c0_97, %c0_98, %c0_99] : memref<1x16x8xf32, #tpu.memory_space<vmem>>, vector<1x16x8xf32>
      %237 = vector.shape_cast %236 : vector<1x16x8xf32> to vector<16x8xf32>
      %238 = vector.shape_cast %235 : vector<16x8xf32> to vector<1x16x8xf32>
      tpu.vector_store %arg8[%c0_97, %c0_98, %c0_99], %238 {strides = array<i32>} : memref<1x16x8xf32, #tpu.memory_space<vmem>>, vector<1x16x8xf32>,
    } else {
    }
    %c1_i32_95 = arith.constant 1 : i32
    %232 = arith.cmpi eq, %arg0, %c1_i32_95 : i32
    %233 = arith.extui %232 : i1 to i32
    %c0_i32_96 = arith.constant 0 : i32
    %234 = arith.cmpi ne, %233, %c0_i32_96 : i32
    scf.if %234 {
      %c0_97 = arith.constant 0 : index
      %c0_98 = arith.constant 0 : index
      %c0_99 = arith.constant 0 : index
      %235 = vector.load %arg8[%c0_97, %c0_98, %c0_99] : memref<1x16x8xf32, #tpu.memory_space<vmem>>, vector<1x16x8xf32>
      %236 = vector.shape_cast %235 : vector<1x16x8xf32> to vector<16x8xf32>
      %237 = vector.shape_cast %228 : vector<16x8xf32> to vector<1x16x8xf32>
      tpu.vector_store %arg8[%c0_97, %c0_98, %c0_99], %237 {strides = array<i32>} : memref<1x16x8xf32, #tpu.memory_space<vmem>>, vector<1x16x8xf32>,
    } else {
    }
    return
  }
  func.func @transform_0(%arg0: i32) -> (i32, i32) {
    %c0_i32 = arith.constant 0 : i32
    %c0_i32_0 = arith.constant 0 : i32
    %c0_i32_1 = arith.constant 0 : i32
    return %c0_i32, %c0_i32_0 : i32, i32
  }
  func.func @transform_1(%arg0: i32) -> (i32, i32, i32, i32) {
    %c0_i32 = arith.constant 0 : i32
    %c0_i32_0 = arith.constant 0 : i32
    %c0_i32_1 = arith.constant 0 : i32
    %c0_i32_2 = arith.constant 0 : i32
    return %arg0, %c0_i32, %c0_i32_0, %c0_i32_1 : i32, i32, i32, i32
  }
  func.func @transform_2(%arg0: i32) -> (i32, i32, i32, i32) {
    %c0_i32 = arith.constant 0 : i32
    %c0_i32_0 = arith.constant 0 : i32
    %c0_i32_1 = arith.constant 0 : i32
    %c0_i32_2 = arith.constant 0 : i32
    return %arg0, %c0_i32, %c0_i32_0, %c0_i32_1 : i32, i32, i32, i32
  }
  func.func @transform_3(%arg0: i32) -> (i32, i32, i32, i32) {
    %c0_i32 = arith.constant 0 : i32
    %c0_i32_0 = arith.constant 0 : i32
    %c0_i32_1 = arith.constant 0 : i32
    %c0_i32_2 = arith.constant 0 : i32
    return %arg0, %c0_i32, %c0_i32_0, %c0_i32_1 : i32, i32, i32, i32
  }
  func.func @transform_4(%arg0: i32) -> (i32, i32, i32, i32) {
    %c0_i32 = arith.constant 0 : i32
    %c0_i32_0 = arith.constant 0 : i32
    %c0_i32_1 = arith.constant 0 : i32
    %c0_i32_2 = arith.constant 0 : i32
    return %arg0, %c0_i32, %c0_i32_0, %c0_i32_1 : i32, i32, i32, i32
  }
  func.func @transform_5(%arg0: i32) -> (i32, i32, i32) {
    %c0_i32 = arith.constant 0 : i32
    %c0_i32_0 = arith.constant 0 : i32
    %c0_i32_1 = arith.constant 0 : i32
    return %arg0, %c0_i32, %c0_i32_0 : i32, i32, i32
  }
  func.func @transform_6(%arg0: i32) -> (i32, i32, i32) {
    %c0_i32 = arith.constant 0 : i32
    %c0_i32_0 = arith.constant 0 : i32
    %c0_i32_1 = arith.constant 0 : i32
    return %arg0, %c0_i32, %c0_i32_0 : i32, i32, i32
  }
  func.func @transform_7(%arg0: i32) -> (i32, i32, i32) {
    %c0_i32 = arith.constant 0 : i32
    %c0_i32_0 = arith.constant 0 : i32
    %c0_i32_1 = arith.constant 0 : i32
    return %arg0, %c0_i32, %c0_i32_0 : i32, i32, i32
  }
}

</mosaic_0001>

<llo_original>
// kernel: coarse_pyramid_forward.5
$region0: #{coarse_pyramid_forward.5}
  #allocation0 [shape = 'u32[]', space=smem, size = 0x4, offset = 0x4, fixed_abs, tag = 'smem constant byte address 0x4 - core index']
  #allocation1 [shape = 'u32[144,128]{1,0:T(1,128)}', space=vmem, size = 0x12000, scoped, tag = 'internal scratch']
  %s0 = inlined_call_operand.vmem [shape: f32[32,64], index: 0, kind: input, shape index: {}]
  %s1 = inlined_call_operand.vmem [shape: f32[64,32], index: 1, kind: input, shape index: {}]
  %s2 = inlined_call_operand.vmem [shape: f32[1,32], index: 2, kind: input, shape index: {}]
  %s3 = inlined_call_operand.vmem [shape: f32[1,32], index: 3, kind: input, shape index: {}]
  %s4 = inlined_call_operand.vmem [shape: f32[1,32], index: 4, kind: input, shape index: {}]
  %s5 = inlined_call_operand.vmem [shape: f32[32,32], index: 5, kind: output, shape index: {}]
  %s6 = sld [smem:[#allocation0]]
  $region30: #{coarse_pyramid_forward.5} parent=0
    _
  %s8 = ssub.s32 1, %s6
  %s9 = scalar_select 0, %s8, %s6
  // Predicated region
  $region2: #{coarse_pyramid_forward.5} parent=0 // pred_check
    _
  $region3: #{coarse_pyramid_forward.5} parent=0 // pred_check_branch
    %11 = sbr.rel (0) target = $region5
  $region4: #{coarse_pyramid_forward.5} parent=0 // pred_region
    _
  $region5: #{coarse_pyramid_forward.5} parent=0 // pred_fallthru
    _
  // Predicated region
  $region6: #{coarse_pyramid_forward.5} parent=0 // pred_check
    _
  $region7: #{coarse_pyramid_forward.5} parent=0 // pred_check_branch
    %13 = sbr.rel (0) target = $region9
  $region8: #{coarse_pyramid_forward.5} parent=0 // pred_region
    _
  $region9: #{coarse_pyramid_forward.5} parent=0 // pred_fallthru
    _
  // Predicated region
  $region10: #{coarse_pyramid_forward.5} parent=0 // pred_check
    _
  $region11: #{coarse_pyramid_forward.5} parent=0 // pred_check_branch
    %15 = sbr.rel (0) target = $region13
  $region12: #{coarse_pyramid_forward.5} parent=0 // pred_region
    _
  $region13: #{coarse_pyramid_forward.5} parent=0 // pred_fallthru
    _
  // Predicated region
  $region14: #{coarse_pyramid_forward.5} parent=0 // pred_check
    _
  $region15: #{coarse_pyramid_forward.5} parent=0 // pred_check_branch
    %17 = sbr.rel (0) target = $region17
  $region16: #{coarse_pyramid_forward.5} parent=0 // pred_region
    _
  $region17: #{coarse_pyramid_forward.5} parent=0 // pred_fallthru
    _
  // Predicated region
  $region18: #{coarse_pyramid_forward.5} parent=0 // pred_check
    _
  $region19: #{coarse_pyramid_forward.5} parent=0 // pred_check_branch
    %19 = sbr.rel (0) target = $region21
  $region20: #{coarse_pyramid_forward.5} parent=0 // pred_region
    _
  $region21: #{coarse_pyramid_forward.5} parent=0 // pred_fallthru
    _
  %v20 = vld [vmem:[%s0] sm:$0xff]
  %v21 = vld [vmem:[%s0 + $0x8] sm:$0xff]
  %v22 = vld [vmem:[%s0 + $0x10] sm:$0xff]
  %v23 = vld [vmem:[%s0 + $0x18] sm:$0xff]
  %v24 = vld [vmem:[%s1] sm:$0xff]
  %v25 = vld [vmem:[%s1 + $0x8] sm:$0xff]
  %v26 = vld [vmem:[%s1 + $0x10] sm:$0xff]
  %v27 = vld [vmem:[%s1 + $0x18] sm:$0xff]
  %v28 = vld [vmem:[%s1 + $0x20] sm:$0xff]
  %v29 = vld [vmem:[%s1 + $0x28] sm:$0xff]
  %v30 = vld [vmem:[%s1 + $0x30] sm:$0xff]
  %v31 = vld [vmem:[%s1 + $0x38] sm:$0xff]
  %v32 = vld [vmem:[%s2] sm:$0x1]
  %v34 = vlaneseq
  %v35 = vshrl.u32 %v34, 7
  %v36 = vsub.s32 0, %v35
  %v37 = vrot.slane %v32, %v36
  %vm39 = vcmask 523264
  %v41 = vsel %vm39, %v20, 0
  %v44 = vsel %vm39, %v21, 0
  %v47 = vsel %vm39, %v22, 0
  %v50 = vsel %vm39, %v23, 0
  %52 = vmatprep.subr.mxu0 0.0
  %53 = vmatpush1.msra.mxu0 %v24
  %54 = vmatprep.subr.mxu0 0.0
  %55 = vmatpush1.msra.mxu0 %v25
  %56 = vmatprep.subr.mxu0 0.0
  %57 = vmatpush1.msra.mxu0 %v26
  %58 = vmatprep.subr.mxu0 0.0
  %59 = vmatpush1.msra.mxu0 %v27
  %60 = vmatprep.subr.mxu0 0.0
  %61 = vmatpush1.msra.mxu0 %v28
  %62 = vmatprep.subr.mxu0 0.0
  %63 = vmatpush1.msra.mxu0 %v29
  %64 = vmatprep.subr.mxu0 0.0
  %65 = vmatpush1.msra.mxu0 %v30
  %66 = vmatprep.subr.mxu0 0.0
  %67 = vmatpush1.msra.mxu0 %v31
  %68 = vmatprep.subr.mxu0 0.0
  %69 = vmatpush1.msra.mxu0 0.0
  %70 = vmatprep.subr.mxu0 0.0
  %71 = vmatpush1.msra.mxu0 0.0
  %72 = vmatprep.subr.mxu0 0.0
  %73 = vmatpush1.msra.mxu0 0.0
  %74 = vmatprep.subr.mxu0 0.0
  %75 = vmatpush1.msra.mxu0 0.0
  %76 = vmatprep.subr.mxu0 0.0
  %77 = vmatpush1.msra.mxu0 0.0
  %78 = vmatprep.subr.mxu0 0.0
  %79 = vmatpush1.msra.mxu0 0.0
  %80 = vmatprep.subr.mxu0 0.0
  %81 = vmatpush1.msra.mxu0 0.0
  %82 = vmatprep.subr.mxu0 0.0
  %83 = vmatpush1.msra.mxu0 0.0
  %84 = vmatprep.subr.mxu0 0.0
  %85 = vmatpush1.msra.mxu0 0.0
  %86 = vmatprep.subr.mxu0 0.0
  %87 = vmatpush1.msra.mxu0 0.0
  %88 = vmatprep.subr.mxu0 0.0
  %89 = vmatpush1.msra.mxu0 0.0
  %90 = vmatprep.subr.mxu0 0.0
  %91 = vmatpush1.msra.mxu0 0.0
  %92 = vmatprep.subr.mxu0 0.0
  %93 = vmatpush1.msra.mxu0 0.0
  %94 = vmatprep.subr.mxu0 0.0
  %95 = vmatpush1.msra.mxu0 0.0
  %96 = vmatprep.subr.mxu0 0.0
  %97 = vmatpush1.msra.mxu0 0.0
  %98 = vmatprep.subr.mxu0 0.0
  %99 = vmatpush1.msra.mxu0 0.0
  %100 = vmatprep.subr.mxu0 0.0
  %101 = vmatpush1.msra.mxu0 0.0
  %102 = vmatprep.subr.mxu0 0.0
  %103 = vmatpush1.msra.mxu0 0.0
  %104 = vmatprep.subr.mxu0 0.0
  %105 = vmatpush1.msra.mxu0 0.0
  %106 = vmatprep.subr.mxu0 0.0
  %107 = vmatpush1.msra.mxu0 0.0
  %108 = vmatprep.subr.mxu0 0.0
  %109 = vmatpush1.msra.mxu0 0.0
  %110 = vmatprep.subr.mxu0 0.0
  %111 = vmatpush1.msra.mxu0 0.0
  %112 = vmatprep.subr.mxu0 0.0
  %113 = vmatpush1.msra.mxu0 0.0
  %114 = vmatprep.subr.mxu0 0.0
  %115 = vmatpush1.msra.mxu0 0.0
  %116 = vmatprep.mubr.f32.mxu0 0.0
  %117 = vmatmul.mubr.f32.gmra.mrb[0].mxu0 %v41
  %v118 = vpop.f32.mrb[0].mxu0
  %v119 = vadd.f32 %v37, %v118
  %v120 = vpop.f32.mrb[0].mxu0
  %121 = vmatprep.mubr.f32.mxu0 0.0
  %122 = vmatmul.mubr.f32.gmra.mrb[0].mxu0 %v44
  %v123 = vpop.f32.mrb[0].mxu0
  %v124 = vadd.f32 %v37, %v123
  %v125 = vpop.f32.mrb[0].mxu0
  %126 = vmatprep.mubr.f32.mxu0 0.0
  %127 = vmatmul.mubr.f32.gmra.mrb[0].mxu0 %v47
  %v128 = vpop.f32.mrb[0].mxu0
  %v129 = vadd.f32 %v37, %v128
  %v130 = vpop.f32.mrb[0].mxu0
  %131 = vmatprep.mubr.f32.mxu0 0.0
  %132 = vmatmul.mubr.f32.gmra.mrb[0].mxu0 %v50
  %v133 = vpop.f32.mrb[0].mxu0
  %v134 = vadd.f32 %v37, %v133
  %v135 = vpop.f32.mrb[0].mxu0
  %136 = vdwg.mxu0
  %v137 = vld [vmem:[%s3] sm:$0x1]
  %v138 = vld [vmem:[%s4] sm:$0x1]
  %vm139 = vcmask 261120
  %v140 = vsel %vm139, %v119, 0.0
  %v141 = vsel %vm139, %v124, 0.0
  %v142 = vadd.f32 %v140, %v141
  %v143 = vrot.slane %v142, 4
  %v144 = vadd.f32 %v142, %v143
  %v145 = vrot.slane %v144, 2
  %v146 = vadd.f32 %v144, %v145
  %v147 = vrot.slane %v146, 1
  %v148 = vadd.f32 %v146, %v147
  %v149 = vmul.f32 %v148, 0.0625
  %v150 = vsub.f32 %v119, %v149
  %v151 = vsub.f32 %v124, %v149
  %v152 = vmul.f32 %v150, %v150
  %v153 = vmul.f32 %v151, %v151
  %v154 = vsel %vm139, %v152, 0.0
  %v155 = vsel %vm139, %v153, 0.0
  %v156 = vadd.f32 %v154, %v155
  %v157 = vrot.slane %v156, 4
  %v158 = vadd.f32 %v156, %v157
  %v159 = vrot.slane %v158, 2
  %v160 = vadd.f32 %v158, %v159
  %v161 = vrot.slane %v160, 1
  %v162 = vadd.f32 %v160, %v161
  %v163 = vmul.f32 %v162, 0.0625
  %v164 = vadd.f32 %v163, 1e-05
  %v165 = vrsqrt.pop %v164
  %v166 = vmul.f32 %v150, %v165
  %v167 = vmul.f32 %v151, %v165
  %v169 = vlaneseq
  %v170 = vshrl.u32 %v169, 7
  %v171 = vsub.s32 0, %v170
  %v172 = vrot.slane %v137, %v171
  %v174 = vmul.f32 %v166, %v172
  %v175 = vmul.f32 %v167, %v172
  %v177 = vlaneseq
  %v178 = vshrl.u32 %v177, 7
  %v179 = vsub.s32 0, %v178
  %v180 = vrot.slane %v138, %v179
  %v182 = vadd.f32 %v174, %v180
  %v183 = vadd.f32 %v175, %v180
  %v184 = vmax.f32 %v182, 0.0
  %v185 = vmax.f32 %v183, 0.0
  %v186 = vsel %vm139, %v129, 0.0
  %v187 = vsel %vm139, %v134, 0.0
  %v188 = vadd.f32 %v186, %v187
  %v189 = vrot.slane %v188, 4
  %v190 = vadd.f32 %v188, %v189
  %v191 = vrot.slane %v190, 2
  %v192 = vadd.f32 %v190, %v191
  %v193 = vrot.slane %v192, 1
  %v194 = vadd.f32 %v192, %v193
  %v195 = vmul.f32 %v194, 0.0625
  %v196 = vsub.f32 %v129, %v195
  %v197 = vsub.f32 %v134, %v195
  %v198 = vmul.f32 %v196, %v196
  %v199 = vmul.f32 %v197, %v197
  %v200 = vsel %vm139, %v198, 0.0
  %v201 = vsel %vm139, %v199, 0.0
  %v202 = vadd.f32 %v200, %v201
  %v203 = vrot.slane %v202, 4
  %v204 = vadd.f32 %v202, %v203
  %v205 = vrot.slane %v204, 2
  %v206 = vadd.f32 %v204, %v205
  %v207 = vrot.slane %v206, 1
  %v208 = vadd.f32 %v206, %v207
  %v209 = vmul.f32 %v208, 0.0625
  %v210 = vadd.f32 %v209, 1e-05
  %v211 = vrsqrt.pop %v210
  %v212 = vmul.f32 %v196, %v211
  %v213 = vmul.f32 %v197, %v211
  %v214 = vmul.f32 %v212, %v172
  %v215 = vmul.f32 %v213, %v172
  %v216 = vadd.f32 %v214, %v180
  %v217 = vadd.f32 %v215, %v180
  %v218 = vmax.f32 %v216, 0.0
  %v219 = vmax.f32 %v217, 0.0
  %220 = vst.msk [vmem:[%s5] sm:$0xff] %vm139, %v184
  %221 = vst.msk [vmem:[%s5 + $0x8] sm:$0xff] %vm139, %v185
  %222 = vst.msk [vmem:[%s5 + $0x10] sm:$0xff] %vm139, %v218
  %223 = vst.msk [vmem:[%s5 + $0x18] sm:$0xff] %vm139, %v219
  // Predicated region
  $region22: #{coarse_pyramid_forward.5} parent=0 // pred_check
    _
  $region23: #{coarse_pyramid_forward.5} parent=0 // pred_check_branch
    %225 = sbr.rel (0) target = $region25
  $region24: #{coarse_pyramid_forward.5} parent=0 // pred_region
    _
  $region25: #{coarse_pyramid_forward.5} parent=0 // pred_fallthru
    _
  // Predicated region
  $region26: #{coarse_pyramid_forward.5} parent=0 // pred_check
    _
  $region27: #{coarse_pyramid_forward.5} parent=0 // pred_check_branch
    %227 = sbr.rel (0) target = $region29
  $region28: #{coarse_pyramid_forward.5} parent=0 // pred_region
    _
  $region29: #{coarse_pyramid_forward.5} parent=0 // pred_fallthru
    _

// kernel: coarse_pyramid_forward.6
$region0: #{coarse_pyramid_forward.6}
  #allocation0 [shape = 'u32[]', space=smem, size = 0x4, offset = 0x4, fixed_abs, tag = 'smem constant byte address 0x4 - core index']
  #allocation1 [shape = 'u32[144,128]{1,0:T(1,128)}', space=vmem, size = 0x12000, scoped, tag = 'internal scratch']
  %s0 = inlined_call_operand.vmem [shape: f32[16,96], index: 0, kind: input, shape index: {}]
  %s1 = inlined_call_operand.vmem [shape: f32[96,32], index: 1, kind: input, shape index: {}]
  %s2 = inlined_call_operand.vmem [shape: f32[1,32], index: 2, kind: input, shape index: {}]
  %s3 = inlined_call_operand.vmem [shape: f32[1,32], index: 3, kind: input, shape index: {}]
  %s4 = inlined_call_operand.vmem [shape: f32[1,32], index: 4, kind: input, shape index: {}]
  %s5 = inlined_call_operand.vmem [shape: f32[16,32], index: 5, kind: output, shape index: {}]
  %s6 = sld [smem:[#allocation0]]
  $region30: #{coarse_pyramid_forward.6} parent=0
    _
  %s8 = ssub.s32 1, %s6
  %s9 = scalar_select 0, %s8, %s6
  // Predicated region
  $region2: #{coarse_pyramid_forward.6} parent=0 // pred_check
    _
  $region3: #{coarse_pyramid_forward.6} parent=0 // pred_check_branch
    %11 = sbr.rel (0) target = $region5
  $region4: #{coarse_pyramid_forward.6} parent=0 // pred_region
    _
  $region5: #{coarse_pyramid_forward.6} parent=0 // pred_fallthru
    _
  // Predicated region
  $region6: #{coarse_pyramid_forward.6} parent=0 // pred_check
    _
  $region7: #{coarse_pyramid_forward.6} parent=0 // pred_check_branch
    %13 = sbr.rel (0) target = $region9
  $region8: #{coarse_pyramid_forward.6} parent=0 // pred_region
    _
  $region9: #{coarse_pyramid_forward.6} parent=0 // pred_fallthru
    _
  // Predicated region
  $region10: #{coarse_pyramid_forward.6} parent=0 // pred_check
    _
  $region11: #{coarse_pyramid_forward.6} parent=0 // pred_check_branch
    %15 = sbr.rel (0) target = $region13
  $region12: #{coarse_pyramid_forward.6} parent=0 // pred_region
    _
  $region13: #{coarse_pyramid_forward.6} parent=0 // pred_fallthru
    _
  // Predicated region
  $region14: #{coarse_pyramid_forward.6} parent=0 // pred_check
    _
  $region15: #{coarse_pyramid_forward.6} parent=0 // pred_check_branch
    %17 = sbr.rel (0) target = $region17
  $region16: #{coarse_pyramid_forward.6} parent=0 // pred_region
    _
  $region17: #{coarse_pyramid_forward.6} parent=0 // pred_fallthru
    _
  // Predicated region
  $region18: #{coarse_pyramid_forward.6} parent=0 // pred_check
    _
  $region19: #{coarse_pyramid_forward.6} parent=0 // pred_check_branch
    %19 = sbr.rel (0) target = $region21
  $region20: #{coarse_pyramid_forward.6} parent=0 // pred_region
    _
  $region21: #{coarse_pyramid_forward.6} parent=0 // pred_fallthru
    _
  %v20 = vld [vmem:[%s0] sm:$0xff]
  %v21 = vld [vmem:[%s0 + $0x8] sm:$0xff]
  %v22 = vld [vmem:[%s1] sm:$0xff]
  %v23 = vld [vmem:[%s1 + $0x8] sm:$0xff]
  %v24 = vld [vmem:[%s1 + $0x10] sm:$0xff]
  %v25 = vld [vmem:[%s1 + $0x18] sm:$0xff]
  %v26 = vld [vmem:[%s1 + $0x20] sm:$0xff]
  %v27 = vld [vmem:[%s1 + $0x28] sm:$0xff]
  %v28 = vld [vmem:[%s1 + $0x30] sm:$0xff]
  %v29 = vld [vmem:[%s1 + $0x38] sm:$0xff]
  %v30 = vld [vmem:[%s1 + $0x40] sm:$0xff]
  %v31 = vld [vmem:[%s1 + $0x48] sm:$0xff]
  %v32 = vld [vmem:[%s1 + $0x50] sm:$0xff]
  %v33 = vld [vmem:[%s1 + $0x58] sm:$0xff]
  %v34 = vld [vmem:[%s2] sm:$0x1]
  %v36 = vlaneseq
  %v37 = vshrl.u32 %v36, 7
  %v38 = vsub.s32 0, %v37
  %v39 = vrot.slane %v34, %v38
  %vm41 = vcmask 785408
  %v43 = vsel %vm41, %v20, 0
  %v46 = vsel %vm41, %v21, 0
  %48 = vmatprep.subr.mxu0 0.0
  %49 = vmatpush1.msra.mxu0 %v22
  %50 = vmatprep.subr.mxu0 0.0
  %51 = vmatpush1.msra.mxu0 %v23
  %52 = vmatprep.subr.mxu0 0.0
  %53 = vmatpush1.msra.mxu0 %v24
  %54 = vmatprep.subr.mxu0 0.0
  %55 = vmatpush1.msra.mxu0 %v25
  %56 = vmatprep.subr.mxu0 0.0
  %57 = vmatpush1.msra.mxu0 %v26
  %58 = vmatprep.subr.mxu0 0.0
  %59 = vmatpush1.msra.mxu0 %v27
  %60 = vmatprep.subr.mxu0 0.0
  %61 = vmatpush1.msra.mxu0 %v28
  %62 = vmatprep.subr.mxu0 0.0
  %63 = vmatpush1.msra.mxu0 %v29
  %64 = vmatprep.subr.mxu0 0.0
  %65 = vmatpush1.msra.mxu0 %v30
  %66 = vmatprep.subr.mxu0 0.0
  %67 = vmatpush1.msra.mxu0 %v31
  %68 = vmatprep.subr.mxu0 0.0
  %69 = vmatpush1.msra.mxu0 %v32
  %70 = vmatprep.subr.mxu0 0.0
  %71 = vmatpush1.msra.mxu0 %v33
  %72 = vmatprep.subr.mxu0 0.0
  %73 = vmatpush1.msra.mxu0 0.0
  %74 = vmatprep.subr.mxu0 0.0
  %75 = vmatpush1.msra.mxu0 0.0
  %76 = vmatprep.subr.mxu0 0.0
  %77 = vmatpush1.msra.mxu0 0.0
  %78 = vmatprep.subr.mxu0 0.0
  %79 = vmatpush1.msra.mxu0 0.0
  %80 = vmatprep.subr.mxu0 0.0
  %81 = vmatpush1.msra.mxu0 0.0
  %82 = vmatprep.subr.mxu0 0.0
  %83 = vmatpush1.msra.mxu0 0.0
  %84 = vmatprep.subr.mxu0 0.0
  %85 = vmatpush1.msra.mxu0 0.0
  %86 = vmatprep.subr.mxu0 0.0
  %87 = vmatpush1.msra.mxu0 0.0
  %88 = vmatprep.subr.mxu0 0.0
  %89 = vmatpush1.msra.mxu0 0.0
  %90 = vmatprep.subr.mxu0 0.0
  %91 = vmatpush1.msra.mxu0 0.0
  %92 = vmatprep.subr.mxu0 0.0
  %93 = vmatpush1.msra.mxu0 0.0
  %94 = vmatprep.subr.mxu0 0.0
  %95 = vmatpush1.msra.mxu0 0.0
  %96 = vmatprep.subr.mxu0 0.0
  %97 = vmatpush1.msra.mxu0 0.0
  %98 = vmatprep.subr.mxu0 0.0
  %99 = vmatpush1.msra.mxu0 0.0
  %100 = vmatprep.subr.mxu0 0.0
  %101 = vmatpush1.msra.mxu0 0.0
  %102 = vmatprep.subr.mxu0 0.0
  %103 = vmatpush1.msra.mxu0 0.0
  %104 = vmatprep.subr.mxu0 0.0
  %105 = vmatpush1.msra.mxu0 0.0
  %106 = vmatprep.subr.mxu0 0.0
  %107 = vmatpush1.msra.mxu0 0.0
  %108 = vmatprep.subr.mxu0 0.0
  %109 = vmatpush1.msra.mxu0 0.0
  %110 = vmatprep.subr.mxu0 0.0
  %111 = vmatpush1.msra.mxu0 0.0
  %112 = vmatprep.mubr.f32.mxu0 0.0
  %113 = vmatmul.mubr.f32.gmra.mrb[0].mxu0 %v43
  %v114 = vpop.f32.mrb[0].mxu0
  %v115 = vadd.f32 %v39, %v114
  %v116 = vpop.f32.mrb[0].mxu0
  %117 = vmatprep.mubr.f32.mxu0 0.0
  %118 = vmatmul.mubr.f32.gmra.mrb[0].mxu0 %v46
  %v119 = vpop.f32.mrb[0].mxu0
  %v120 = vadd.f32 %v39, %v119
  %v121 = vpop.f32.mrb[0].mxu0
  %122 = vdwg.mxu0
  %v123 = vld [vmem:[%s3] sm:$0x1]
  %v124 = vld [vmem:[%s4] sm:$0x1]
  %vm125 = vcmask 261120
  %v126 = vsel %vm125, %v115, 0.0
  %v127 = vrot.slane %v126, 4
  %v128 = vadd.f32 %v126, %v127
  %v129 = vrot.slane %v128, 2
  %v130 = vadd.f32 %v128, %v129
  %v131 = vrot.slane %v130, 1
  %v132 = vadd.f32 %v130, %v131
  %v133 = vmul.f32 %v132, 0.125
  %v134 = vsub.f32 %v115, %v133
  %v135 = vmul.f32 %v134, %v134
  %v136 = vsel %vm125, %v135, 0.0
  %v137 = vrot.slane %v136, 4
  %v138 = vadd.f32 %v136, %v137
  %v139 = vrot.slane %v138, 2
  %v140 = vadd.f32 %v138, %v139
  %v141 = vrot.slane %v140, 1
  %v142 = vadd.f32 %v140, %v141
  %v143 = vmul.f32 %v142, 0.125
  %v144 = vadd.f32 %v143, 1e-05
  %v145 = vrsqrt.pop %v144
  %v146 = vmul.f32 %v134, %v145
  %v148 = vlaneseq
  %v149 = vshrl.u32 %v148, 7
  %v150 = vsub.s32 0, %v149
  %v151 = vrot.slane %v123, %v150
  %v153 = vmul.f32 %v146, %v151
  %v155 = vlaneseq
  %v156 = vshrl.u32 %v155, 7
  %v157 = vsub.s32 0, %v156
  %v158 = vrot.slane %v124, %v157
  %v160 = vadd.f32 %v153, %v158
  %v161 = vmax.f32 %v160, 0.0
  %v162 = vsel %vm125, %v120, 0.0
  %v163 = vrot.slane %v162, 4
  %v164 = vadd.f32 %v162, %v163
  %v165 = vrot.slane %v164, 2
  %v166 = vadd.f32 %v164, %v165
  %v167 = vrot.slane %v166, 1
  %v168 = vadd.f32 %v166, %v167
  %v169 = vmul.f32 %v168, 0.125
  %v170 = vsub.f32 %v120, %v169
  %v171 = vmul.f32 %v170, %v170
  %v172 = vsel %vm125, %v171, 0.0
  %v173 = vrot.slane %v172, 4
  %v174 = vadd.f32 %v172, %v173
  %v175 = vrot.slane %v174, 2
  %v176 = vadd.f32 %v174, %v175
  %v177 = vrot.slane %v176, 1
  %v178 = vadd.f32 %v176, %v177
  %v179 = vmul.f32 %v178, 0.125
  %v180 = vadd.f32 %v179, 1e-05
  %v181 = vrsqrt.pop %v180
  %v182 = vmul.f32 %v170, %v181
  %v183 = vmul.f32 %v182, %v151
  %v184 = vadd.f32 %v183, %v158
  %v185 = vmax.f32 %v184, 0.0
  %186 = vst.msk [vmem:[%s5] sm:$0xff] %vm125, %v161
  %187 = vst.msk [vmem:[%s5 + $0x8] sm:$0xff] %vm125, %v185
  // Predicated region
  $region22: #{coarse_pyramid_forward.6} parent=0 // pred_check
    _
  $region23: #{coarse_pyramid_forward.6} parent=0 // pred_check_branch
    %189 = sbr.rel (0) target = $region25
  $region24: #{coarse_pyramid_forward.6} parent=0 // pred_region
    _
  $region25: #{coarse_pyramid_forward.6} parent=0 // pred_fallthru
    _
  // Predicated region
  $region26: #{coarse_pyramid_forward.6} parent=0 // pred_check
    _
  $region27: #{coarse_pyramid_forward.6} parent=0 // pred_check_branch
    %191 = sbr.rel (0) target = $region29
  $region28: #{coarse_pyramid_forward.6} parent=0 // pred_region
    _
  $region29: #{coarse_pyramid_forward.6} parent=0 // pred_fallthru
    _

// kernel: coarse_pyramid_forward.7
$region0: #{coarse_pyramid_forward.7}
  #allocation0 [shape = 'u32[]', space=smem, size = 0x4, offset = 0x4, fixed_abs, tag = 'smem constant byte address 0x4 - core index']
  #allocation1 [shape = 'u32[144,128]{1,0:T(1,128)}', space=vmem, size = 0x12000, scoped, tag = 'internal scratch']
  %s0 = inlined_call_operand.vmem [shape: f32[8,96], index: 0, kind: input, shape index: {}]
  %s1 = inlined_call_operand.vmem [shape: f32[96,32], index: 1, kind: input, shape index: {}]
  %s2 = inlined_call_operand.vmem [shape: f32[1,32], index: 2, kind: input, shape index: {}]
  %s3 = inlined_call_operand.vmem [shape: f32[1,32], index: 3, kind: input, shape index: {}]
  %s4 = inlined_call_operand.vmem [shape: f32[1,32], index: 4, kind: input, shape index: {}]
  %s5 = inlined_call_operand.vmem [shape: f32[8,32], index: 5, kind: output, shape index: {}]
  %s6 = sld [smem:[#allocation0]]
  $region30: #{coarse_pyramid_forward.7} parent=0
    _
  %s8 = ssub.s32 1, %s6
  %s9 = scalar_select 0, %s8, %s6
  // Predicated region
  $region2: #{coarse_pyramid_forward.7} parent=0 // pred_check
    _
  $region3: #{coarse_pyramid_forward.7} parent=0 // pred_check_branch
    %11 = sbr.rel (0) target = $region5
  $region4: #{coarse_pyramid_forward.7} parent=0 // pred_region
    _
  $region5: #{coarse_pyramid_forward.7} parent=0 // pred_fallthru
    _
  // Predicated region
  $region6: #{coarse_pyramid_forward.7} parent=0 // pred_check
    _
  $region7: #{coarse_pyramid_forward.7} parent=0 // pred_check_branch
    %13 = sbr.rel (0) target = $region9
  $region8: #{coarse_pyramid_forward.7} parent=0 // pred_region
    _
  $region9: #{coarse_pyramid_forward.7} parent=0 // pred_fallthru
    _
  // Predicated region
  $region10: #{coarse_pyramid_forward.7} parent=0 // pred_check
    _
  $region11: #{coarse_pyramid_forward.7} parent=0 // pred_check_branch
    %15 = sbr.rel (0) target = $region13
  $region12: #{coarse_pyramid_forward.7} parent=0 // pred_region
    _
  $region13: #{coarse_pyramid_forward.7} parent=0 // pred_fallthru
    _
  // Predicated region
  $region14: #{coarse_pyramid_forward.7} parent=0 // pred_check
    _
  $region15: #{coarse_pyramid_forward.7} parent=0 // pred_check_branch
    %17 = sbr.rel (0) target = $region17
  $region16: #{coarse_pyramid_forward.7} parent=0 // pred_region
    _
  $region17: #{coarse_pyramid_forward.7} parent=0 // pred_fallthru
    _
  // Predicated region
  $region18: #{coarse_pyramid_forward.7} parent=0 // pred_check
    _
  $region19: #{coarse_pyramid_forward.7} parent=0 // pred_check_branch
    %19 = sbr.rel (0) target = $region21
  $region20: #{coarse_pyramid_forward.7} parent=0 // pred_region
    _
  $region21: #{coarse_pyramid_forward.7} parent=0 // pred_fallthru
    _
  %v20 = vld [vmem:[%s0] sm:$0xff]
  %v21 = vld [vmem:[%s1] sm:$0xff]
  %v22 = vld [vmem:[%s1 + $0x8] sm:$0xff]
  %v23 = vld [vmem:[%s1 + $0x10] sm:$0xff]
  %v24 = vld [vmem:[%s1 + $0x18] sm:$0xff]
  %v25 = vld [vmem:[%s1 + $0x20] sm:$0xff]
  %v26 = vld [vmem:[%s1 + $0x28] sm:$0xff]
  %v27 = vld [vmem:[%s1 + $0x30] sm:$0xff]
  %v28 = vld [vmem:[%s1 + $0x38] sm:$0xff]
  %v29 = vld [vmem:[%s1 + $0x40] sm:$0xff]
  %v30 = vld [vmem:[%s1 + $0x48] sm:$0xff]
  %v31 = vld [vmem:[%s1 + $0x50] sm:$0xff]
  %v32 = vld [vmem:[%s1 + $0x58] sm:$0xff]
  %v33 = vld [vmem:[%s2] sm:$0x1]
  %v35 = vlaneseq
  %v36 = vshrl.u32 %v35, 7
  %v37 = vsub.s32 0, %v36
  %v38 = vrot.slane %v33, %v37
  %vm40 = vcmask 785408
  %v42 = vsel %vm40, %v20, 0
  %44 = vmatprep.subr.mxu0 0.0
  %45 = vmatpush1.msra.mxu0 %v21
  %46 = vmatprep.subr.mxu0 0.0
  %47 = vmatpush1.msra.mxu0 %v22
  %48 = vmatprep.subr.mxu0 0.0
  %49 = vmatpush1.msra.mxu0 %v23
  %50 = vmatprep.subr.mxu0 0.0
  %51 = vmatpush1.msra.mxu0 %v24
  %52 = vmatprep.subr.mxu0 0.0
  %53 = vmatpush1.msra.mxu0 %v25
  %54 = vmatprep.subr.mxu0 0.0
  %55 = vmatpush1.msra.mxu0 %v26
  %56 = vmatprep.subr.mxu0 0.0
  %57 = vmatpush1.msra.mxu0 %v27
  %58 = vmatprep.subr.mxu0 0.0
  %59 = vmatpush1.msra.mxu0 %v28
  %60 = vmatprep.subr.mxu0 0.0
  %61 = vmatpush1.msra.mxu0 %v29
  %62 = vmatprep.subr.mxu0 0.0
  %63 = vmatpush1.msra.mxu0 %v30
  %64 = vmatprep.subr.mxu0 0.0
  %65 = vmatpush1.msra.mxu0 %v31
  %66 = vmatprep.subr.mxu0 0.0
  %67 = vmatpush1.msra.mxu0 %v32
  %68 = vmatprep.subr.mxu0 0.0
  %69 = vmatpush1.msra.mxu0 0.0
  %70 = vmatprep.subr.mxu0 0.0
  %71 = vmatpush1.msra.mxu0 0.0
  %72 = vmatprep.subr.mxu0 0.0
  %73 = vmatpush1.msra.mxu0 0.0
  %74 = vmatprep.subr.mxu0 0.0
  %75 = vmatpush1.msra.mxu0 0.0
  %76 = vmatprep.subr.mxu0 0.0
  %77 = vmatpush1.msra.mxu0 0.0
  %78 = vmatprep.subr.mxu0 0.0
  %79 = vmatpush1.msra.mxu0 0.0
  %80 = vmatprep.subr.mxu0 0.0
  %81 = vmatpush1.msra.mxu0 0.0
  %82 = vmatprep.subr.mxu0 0.0
  %83 = vmatpush1.msra.mxu0 0.0
  %84 = vmatprep.subr.mxu0 0.0
  %85 = vmatpush1.msra.mxu0 0.0
  %86 = vmatprep.subr.mxu0 0.0
  %87 = vmatpush1.msra.mxu0 0.0
  %88 = vmatprep.subr.mxu0 0.0
  %89 = vmatpush1.msra.mxu0 0.0
  %90 = vmatprep.subr.mxu0 0.0
  %91 = vmatpush1.msra.mxu0 0.0
  %92 = vmatprep.subr.mxu0 0.0
  %93 = vmatpush1.msra.mxu0 0.0
  %94 = vmatprep.subr.mxu0 0.0
  %95 = vmatpush1.msra.mxu0 0.0
  %96 = vmatprep.subr.mxu0 0.0
  %97 = vmatpush1.msra.mxu0 0.0
  %98 = vmatprep.subr.mxu0 0.0
  %99 = vmatpush1.msra.mxu0 0.0
  %100 = vmatprep.subr.mxu0 0.0
  %101 = vmatpush1.msra.mxu0 0.0
  %102 = vmatprep.subr.mxu0 0.0
  %103 = vmatpush1.msra.mxu0 0.0
  %104 = vmatprep.subr.mxu0 0.0
  %105 = vmatpush1.msra.mxu0 0.0
  %106 = vmatprep.subr.mxu0 0.0
  %107 = vmatpush1.msra.mxu0 0.0
  %108 = vmatprep.mubr.f32.mxu0 0.0
  %109 = vmatmul.mubr.f32.gmra.mrb[0].mxu0 %v42
  %v110 = vpop.f32.mrb[0].mxu0
  %v111 = vadd.f32 %v38, %v110
  %v112 = vpop.f32.mrb[0].mxu0
  %113 = vdwg.mxu0
  %v114 = vld [vmem:[%s3] sm:$0x1]
  %v115 = vld [vmem:[%s4] sm:$0x1]
  %vm116 = vcmask 257024
  %v117 = vsel %vm116, %v111, 0.0
  %v118 = vrot.slane %v117, 4
  %v119 = vadd.f32 %v117, %v118
  %v120 = vrot.slane %v119, 2
  %v121 = vadd.f32 %v119, %v120
  %v122 = vrot.slane %v121, 1
  %v123 = vadd.f32 %v121, %v122
  %v124 = vmul.f32 %v123, 0.25
  %v125 = vsub.f32 %v111, %v124
  %v126 = vmul.f32 %v125, %v125
  %v127 = vsel %vm116, %v126, 0.0
  %v128 = vrot.slane %v127, 4
  %v129 = vadd.f32 %v127, %v128
  %v130 = vrot.slane %v129, 2
  %v131 = vadd.f32 %v129, %v130
  %v132 = vrot.slane %v131, 1
  %v133 = vadd.f32 %v131, %v132
  %v134 = vmul.f32 %v133, 0.25
  %v135 = vadd.f32 %v134, 1e-05
  %v136 = vrsqrt.pop %v135
  %v137 = vmul.f32 %v125, %v136
  %v139 = vlaneseq
  %v140 = vshrl.u32 %v139, 7
  %v141 = vsub.s32 0, %v140
  %v142 = vrot.slane %v114, %v141
  %v144 = vmul.f32 %v137, %v142
  %v146 = vlaneseq
  %v147 = vshrl.u32 %v146, 7
  %v148 = vsub.s32 0, %v147
  %v149 = vrot.slane %v115, %v148
  %v151 = vadd.f32 %v144, %v149
  %v152 = vmax.f32 %v151, 0.0
  %v154 = vrot.slane %v111, 4
  %v156 = vsel %vm116, %v154, 0.0
  %v157 = vrot.slane %v156, 4
  %v158 = vadd.f32 %v156, %v157
  %v159 = vrot.slane %v158, 2
  %v160 = vadd.f32 %v158, %v159
  %v161 = vrot.slane %v160, 1
  %v162 = vadd.f32 %v160, %v161
  %v163 = vmul.f32 %v162, 0.25
  %v164 = vsub.f32 %v111, %v163
  %v165 = vmul.f32 %v164, %v164
  %v167 = vrot.slane %v165, 4
  %v169 = vsel %vm116, %v167, 0.0
  %v170 = vrot.slane %v169, 4
  %v171 = vadd.f32 %v169, %v170
  %v172 = vrot.slane %v171, 2
  %v173 = vadd.f32 %v171, %v172
  %v174 = vrot.slane %v173, 1
  %v175 = vadd.f32 %v173, %v174
  %v176 = vmul.f32 %v175, 0.25
  %v177 = vadd.f32 %v176, 1e-05
  %v178 = vrsqrt.pop %v177
  %v179 = vmul.f32 %v164, %v178
  %v180 = vmul.f32 %v179, %v142
  %v181 = vadd.f32 %v180, %v149
  %v182 = vmax.f32 %v181, 0.0
  %vm183 = vcmask 1043456
  %v184 = vsel %vm183, %v152, %v182
  %vm185 = vcmask 261120
  %186 = vst.msk [vmem:[%s5] sm:$0xff] %vm185, %v184
  // Predicated region
  $region22: #{coarse_pyramid_forward.7} parent=0 // pred_check
    _
  $region23: #{coarse_pyramid_forward.7} parent=0 // pred_check_branch
    %188 = sbr.rel (0) target = $region25
  $region24: #{coarse_pyramid_forward.7} parent=0 // pred_region
    _
  $region25: #{coarse_pyramid_forward.7} parent=0 // pred_fallthru
    _
  // Predicated region
  $region26: #{coarse_pyramid_forward.7} parent=0 // pred_check
    _
  $region27: #{coarse_pyramid_forward.7} parent=0 // pred_check_branch
    %190 = sbr.rel (0) target = $region29
  $region28: #{coarse_pyramid_forward.7} parent=0 // pred_region
    _
  $region29: #{coarse_pyramid_forward.7} parent=0 // pred_fallthru
    _

// kernel: coarse_pyramid_forward.8
$region0: #{coarse_pyramid_forward.8}
  #allocation0 [shape = 'u32[]', space=smem, size = 0x4, offset = 0x4, fixed_abs, tag = 'smem constant byte address 0x4 - core index']
  #allocation1 [shape = 'u32[144,128]{1,0:T(1,128)}', space=vmem, size = 0x12000, scoped, tag = 'internal scratch']
  %s0 = inlined_call_operand.vmem [shape: f32[16,32], index: 0, kind: input, shape index: {}]
  %s1 = inlined_call_operand.vmem [shape: f32[2,2,96,32], index: 1, kind: input, shape index: {}]
  %s2 = inlined_call_operand.vmem [shape: f32[2,2,1,32], index: 2, kind: input, shape index: {}]
  %s3 = inlined_call_operand.vmem [shape: f32[2,2,1,32], index: 3, kind: input, shape index: {}]
  %s4 = inlined_call_operand.vmem [shape: f32[2,2,1,32], index: 4, kind: input, shape index: {}]
  %s5 = inlined_call_operand.vmem [shape: f32[2,96,8], index: 5, kind: input, shape index: {}]
  %s6 = inlined_call_operand.vmem [shape: f32[2,1,8], index: 6, kind: input, shape index: {}]
  %s7 = inlined_call_operand.vmem [shape: f32[2,16,8], index: 7, kind: output, shape index: {}]
  %s8 = sld [smem:[#allocation0]]
  $region69: #{coarse_pyramid_forward.8} parent=0
    _
  %s10 = ssub.s32 1, %s8
  %s11 = scalar_select 0, %s10, %s8
  loop: start=0, step=1, limit=4
  $region2: #{coarse_pyramid_forward.8} parent=0 // loop_pre_header
    _
  $region3: #{coarse_pyramid_forward.8} parent=0 // loop_header
    %s13 = sphi 0, %s17
    %p14 = scmp.ge.s32.totalorder %s13, 4
    %s21 = sphi 0, %s21
    %s23 = sphi 0, %s21
    %s24 = sphi 0, %s23
    %s38 = sphi 0, %s24
    %s44 = sphi 0, %s46
    %s47 = sphi 0, %s44
    %s48 = sphi 0, %s47
    %s64 = sphi 0, %s48
    %s70 = sphi 0, %s72
    %s73 = sphi 0, %s70
    %s74 = sphi 0, %s73
    %s90 = sphi 0, %s74
    %s96 = sphi 0, %s98
    %s99 = sphi 0, %s96
    %s100 = sphi 0, %s99
    %s116 = sphi 0, %s100
    %s122 = sphi 0, %s124
    %s125 = sphi 0, %s122
    %s126 = sphi 0, %s125
    %s142 = sphi 0, %s126
    %s148 = sphi 0, %s150
    %s151 = sphi 0, %s148
    %s152 = sphi 0, %s151
    %s168 = sphi 0, %s152
    %s174 = sphi 0, %s176
    %s177 = sphi 0, %s174
    %s178 = sphi 0, %s177
    %s194 = sphi 0, %s178
    %s200 = sphi 0, %s202
    %s203 = sphi 0, %s200
    %s204 = sphi 0, %s203
    %s220 = sphi 0, %s204
  $region4: #{coarse_pyramid_forward.8} parent=0 // loop_header_branch
    %16 = sbr.rel (%p14) target = $region8
  $region5: #{coarse_pyramid_forward.8} parent=0 // loop_body
    %s18 = ssub.s32 %s13, 1
    %s19 = ssub.s32 %s13, 2
    %s20 = sadd.s32 %s13, 1
    %s22 = sadd.s32 %s21, 1
    %p25 = scmp.eq.s32.totalorder %s13, 1
    %p26 = scmp.ne.s32.totalorder %s21, %s23
    %p27 = scmp.eq.s32.totalorder %s13, 0
    %p28 = por %p26, %p27
    %p29 = scmp.ne.s32.totalorder %s21, %s23
    %p30 = scmp.eq.s32.totalorder %s18, 1
    %p31 = por %p29, %p30
    %p32 = scmp.ne.s32.totalorder %s23, %s24
    %p33 = scmp.eq.s32.totalorder %s18, 0
    %p34 = por %p32, %p33
    %p35 = scmp.ne.s32.totalorder %s23, %s24
    %p36 = scmp.eq.s32.totalorder %s19, 1
    %p37 = por %p35, %p36
    %p39 = scmp.ne.s32.totalorder %s24, %s38
    %p40 = scmp.eq.s32.totalorder %s19, 0
    %p41 = por %p39, %p40
    %s42 = ssub.s32 %s13, %s20
    %p43 = scmp.eq.s32.totalorder %s42, 0
    %s45 = sadd.s32 %s44, 1
    %s46 = scalar_select %p43, %s44, %s45
    %p49 = pneg %p43
    %p50 = scmp.eq.s32.totalorder %s13, 1
    %p51 = por %p49, %p50
    %p52 = scmp.ne.s32.totalorder %s44, %s47
    %p53 = scmp.eq.s32.totalorder %s13, 0
    %p54 = por %p52, %p53
    %p55 = scmp.ne.s32.totalorder %s44, %s47
    %p56 = scmp.eq.s32.totalorder %s18, 1
    %p57 = por %p55, %p56
    %p58 = scmp.ne.s32.totalorder %s47, %s48
    %p59 = scmp.eq.s32.totalorder %s18, 0
    %p60 = por %p58, %p59
    %p61 = scmp.ne.s32.totalorder %s47, %s48
    %p62 = scmp.eq.s32.totalorder %s19, 1
    %p63 = por %p61, %p62
    %p65 = scmp.ne.s32.totalorder %s48, %s64
    %p66 = scmp.eq.s32.totalorder %s19, 0
    %p67 = por %p65, %p66
    %s68 = ssub.s32 %s13, %s20
    %p69 = scmp.eq.s32.totalorder %s68, 0
    %s71 = sadd.s32 %s70, 1
    %s72 = scalar_select %p69, %s70, %s71
    %p75 = pneg %p69
    %p76 = scmp.eq.s32.totalorder %s13, 1
    %p77 = por %p75, %p76
    %p78 = scmp.ne.s32.totalorder %s70, %s73
    %p79 = scmp.eq.s32.totalorder %s13, 0
    %p80 = por %p78, %p79
    %p81 = scmp.ne.s32.totalorder %s70, %s73
    %p82 = scmp.eq.s32.totalorder %s18, 1
    %p83 = por %p81, %p82
    %p84 = scmp.ne.s32.totalorder %s73, %s74
    %p85 = scmp.eq.s32.totalorder %s18, 0
    %p86 = por %p84, %p85
    %p87 = scmp.ne.s32.totalorder %s73, %s74
    %p88 = scmp.eq.s32.totalorder %s19, 1
    %p89 = por %p87, %p88
    %p91 = scmp.ne.s32.totalorder %s74, %s90
    %p92 = scmp.eq.s32.totalorder %s19, 0
    %p93 = por %p91, %p92
    %s94 = ssub.s32 %s13, %s20
    %p95 = scmp.eq.s32.totalorder %s94, 0
    %s97 = sadd.s32 %s96, 1
    %s98 = scalar_select %p95, %s96, %s97
    %p101 = pneg %p95
    %p102 = scmp.eq.s32.totalorder %s13, 1
    %p103 = por %p101, %p102
    %p104 = scmp.ne.s32.totalorder %s96, %s99
    %p105 = scmp.eq.s32.totalorder %s13, 0
    %p106 = por %p104, %p105
    %p107 = scmp.ne.s32.totalorder %s96, %s99
    %p108 = scmp.eq.s32.totalorder %s18, 1
    %p109 = por %p107, %p108
    %p110 = scmp.ne.s32.totalorder %s99, %s100
    %p111 = scmp.eq.s32.totalorder %s18, 0
    %p112 = por %p110, %p111
    %p113 = scmp.ne.s32.totalorder %s99, %s100
    %p114 = scmp.eq.s32.totalorder %s19, 1
    %p115 = por %p113, %p114
    %p117 = scmp.ne.s32.totalorder %s100, %s116
    %p118 = scmp.eq.s32.totalorder %s19, 0
    %p119 = por %p117, %p118
    %s120 = ssub.s32 %s13, %s20
    %p121 = scmp.eq.s32.totalorder %s120, 0
    %s123 = sadd.s32 %s122, 1
    %s124 = scalar_select %p121, %s122, %s123
    %p127 = pneg %p121
    %p128 = scmp.eq.s32.totalorder %s13, 1
    %p129 = por %p127, %p128
    %p130 = scmp.ne.s32.totalorder %s122, %s125
    %p131 = scmp.eq.s32.totalorder %s13, 0
    %p132 = por %p130, %p131
    %p133 = scmp.ne.s32.totalorder %s122, %s125
    %p134 = scmp.eq.s32.totalorder %s18, 1
    %p135 = por %p133, %p134
    %p136 = scmp.ne.s32.totalorder %s125, %s126
    %p137 = scmp.eq.s32.totalorder %s18, 0
    %p138 = por %p136, %p137
    %p139 = scmp.ne.s32.totalorder %s125, %s126
    %p140 = scmp.eq.s32.totalorder %s19, 1
    %p141 = por %p139, %p140
    %p143 = scmp.ne.s32.totalorder %s126, %s142
    %p144 = scmp.eq.s32.totalorder %s19, 0
    %p145 = por %p143, %p144
    %s146 = ssub.s32 %s13, %s20
    %p147 = scmp.eq.s32.totalorder %s146, 0
    %s149 = sadd.s32 %s148, 1
    %s150 = scalar_select %p147, %s148, %s149
    %p153 = pneg %p147
    %p154 = scmp.eq.s32.totalorder %s13, 1
    %p155 = por %p153, %p154
    %p156 = scmp.ne.s32.totalorder %s148, %s151
    %p157 = scmp.eq.s32.totalorder %s13, 0
    %p158 = por %p156, %p157
    %p159 = scmp.ne.s32.totalorder %s148, %s151
    %p160 = scmp.eq.s32.totalorder %s18, 1
    %p161 = por %p159, %p160
    %p162 = scmp.ne.s32.totalorder %s151, %s152
    %p163 = scmp.eq.s32.totalorder %s18, 0
    %p164 = por %p162, %p163
    %p165 = scmp.ne.s32.totalorder %s151, %s152
    %p166 = scmp.eq.s32.totalorder %s19, 1
    %p167 = por %p165, %p166
    %p169 = scmp.ne.s32.totalorder %s152, %s168
    %p170 = scmp.eq.s32.totalorder %s19, 0
    %p171 = por %p169, %p170
    %s172 = ssub.s32 %s13, %s20
    %p173 = scmp.eq.s32.totalorder %s172, 0
    %s175 = sadd.s32 %s174, 1
    %s176 = scalar_select %p173, %s174, %s175
    %p179 = pneg %p173
    %p180 = scmp.eq.s32.totalorder %s13, 1
    %p181 = por %p179, %p180
    %p182 = scmp.ne.s32.totalorder %s174, %s177
    %p183 = scmp.eq.s32.totalorder %s13, 0
    %p184 = por %p182, %p183
    %p185 = scmp.ne.s32.totalorder %s174, %s177
    %p186 = scmp.eq.s32.totalorder %s18, 1
    %p187 = por %p185, %p186
    %p188 = scmp.ne.s32.totalorder %s177, %s178
    %p189 = scmp.eq.s32.totalorder %s18, 0
    %p190 = por %p188, %p189
    %p191 = scmp.ne.s32.totalorder %s177, %s178
    %p192 = scmp.eq.s32.totalorder %s19, 1
    %p193 = por %p191, %p192
    %p195 = scmp.ne.s32.totalorder %s178, %s194
    %p196 = scmp.eq.s32.totalorder %s19, 0
    %p197 = por %p195, %p196
    %s198 = ssub.s32 %s13, %s20
    %p199 = scmp.eq.s32.totalorder %s198, 0
    %s201 = sadd.s32 %s200, 1
    %s202 = scalar_select %p199, %s200, %s201
    %p205 = pneg %p199
    %p206 = scmp.eq.s32.totalorder %s13, 1
    %p207 = por %p205, %p206
    %p208 = scmp.ne.s32.totalorder %s200, %s203
    %p209 = scmp.eq.s32.totalorder %s13, 0
    %p210 = por %p208, %p209
    %p211 = scmp.ne.s32.totalorder %s200, %s203
    %p212 = scmp.eq.s32.totalorder %s18, 1
    %p213 = por %p211, %p212
    %p214 = scmp.ne.s32.totalorder %s203, %s204
    %p215 = scmp.eq.s32.totalorder %s18, 0
    %p216 = por %p214, %p215
    %p217 = scmp.ne.s32.totalorder %s203, %s204
    %p218 = scmp.eq.s32.totalorder %s19, 1
    %p219 = por %p217, %p218
    %p221 = scmp.ne.s32.totalorder %s204, %s220
    %p222 = scmp.eq.s32.totalorder %s19, 0
    %p223 = por %p221, %p222
    %p224 = scmp.le.s32.totalorder 1, %s13
    %p225 = scmp.lt.s32.totalorder %s13, 3
    %p226 = pnand %p224, %p225
    %p227 = pneg %p226
    // Predicated region
    $region9: #{coarse_pyramid_forward.8} parent=5 // pred_check
      _
    $region10: #{coarse_pyramid_forward.8} parent=5 // pred_check_branch
      %229 = sbr.rel (%p226) target = $region12
    $region11: #{coarse_pyramid_forward.8} parent=5 // pred_region
      %s230 = ssub.s32 %s13, 1
      // Predicated region
      $region13: #{coarse_pyramid_forward.8} parent=11 // pred_check
        %p231 = pneg %p34
      $region14: #{coarse_pyramid_forward.8} parent=11 // pred_check_branch
        %233 = sbr.rel (%p231) target = $region16
      $region15: #{coarse_pyramid_forward.8} parent=11 // pred_region
        _
      $region16: #{coarse_pyramid_forward.8} parent=11 // pred_fallthru
        _
    $region12: #{coarse_pyramid_forward.8} parent=5 // pred_fallthru
      _
    %p234 = scmp.lt.s32.totalorder %s13, 2
    // Predicated region
    $region17: #{coarse_pyramid_forward.8} parent=5 // pred_check
      %p235 = pneg %p234
    $region18: #{coarse_pyramid_forward.8} parent=5 // pred_check_branch
      %237 = sbr.rel (%p235) target = $region20
    $region19: #{coarse_pyramid_forward.8} parent=5 // pred_region
      // Predicated region
      $region21: #{coarse_pyramid_forward.8} parent=19 // pred_check
        %p238 = pneg %p54
      $region22: #{coarse_pyramid_forward.8} parent=19 // pred_check_branch
        %240 = sbr.rel (%p238) target = $region24
      $region23: #{coarse_pyramid_forward.8} parent=19 // pred_region
        %p241 = scmp.lt.s32.totalorder %s13, 1
        %s242 = scalar_select %p241, %s13, 1
        %s243 = smul.addr %s242, 24
        %s244 = smul.addr %s243, 8
        %s245 = scalar_lea.vmem %s1, %s244
      $region24: #{coarse_pyramid_forward.8} parent=19 // pred_fallthru
        _
      // Predicated region
      $region25: #{coarse_pyramid_forward.8} parent=19 // pred_check
        %p246 = pneg %p80
      $region26: #{coarse_pyramid_forward.8} parent=19 // pred_check_branch
        %248 = sbr.rel (%p246) target = $region28
      $region27: #{coarse_pyramid_forward.8} parent=19 // pred_region
        %p249 = scmp.lt.s32.totalorder %s13, 1
        %s250 = scalar_select %p249, %s13, 1
        %s251 = smul.addr %s250, 2
        %s252 = scalar_lea.vmem %s2, %s251
      $region28: #{coarse_pyramid_forward.8} parent=19 // pred_fallthru
        _
      // Predicated region
      $region29: #{coarse_pyramid_forward.8} parent=19 // pred_check
        %p253 = pneg %p106
      $region30: #{coarse_pyramid_forward.8} parent=19 // pred_check_branch
        %255 = sbr.rel (%p253) target = $region32
      $region31: #{coarse_pyramid_forward.8} parent=19 // pred_region
        %p256 = scmp.lt.s32.totalorder %s13, 1
        %s257 = scalar_select %p256, %s13, 1
        %s258 = smul.addr %s257, 2
        %s259 = scalar_lea.vmem %s3, %s258
      $region32: #{coarse_pyramid_forward.8} parent=19 // pred_fallthru
        _
      // Predicated region
      $region33: #{coarse_pyramid_forward.8} parent=19 // pred_check
        %p260 = pneg %p132
      $region34: #{coarse_pyramid_forward.8} parent=19 // pred_check_branch
        %262 = sbr.rel (%p260) target = $region36
      $region35: #{coarse_pyramid_forward.8} parent=19 // pred_region
        %p263 = scmp.lt.s32.totalorder %s13, 1
        %s264 = scalar_select %p263, %s13, 1
        %s265 = smul.addr %s264, 2
        %s266 = scalar_lea.vmem %s4, %s265
      $region36: #{coarse_pyramid_forward.8} parent=19 // pred_fallthru
        _
      // Predicated region
      $region37: #{coarse_pyramid_forward.8} parent=19 // pred_check
        %p267 = pneg %p158
      $region38: #{coarse_pyramid_forward.8} parent=19 // pred_check_branch
        %269 = sbr.rel (%p267) target = $region40
      $region39: #{coarse_pyramid_forward.8} parent=19 // pred_region
        %p270 = scmp.lt.s32.totalorder %s13, 1
        %s271 = scalar_select %p270, %s13, 1
        %s272 = smul.addr %s271, 12
        %s273 = smul.addr %s272, 8
        %s274 = scalar_lea.vmem %s5, %s273
      $region40: #{coarse_pyramid_forward.8} parent=19 // pred_fallthru
        _
      // Predicated region
      $region41: #{coarse_pyramid_forward.8} parent=19 // pred_check
        %p275 = pneg %p184
      $region42: #{coarse_pyramid_forward.8} parent=19 // pred_check_branch
        %277 = sbr.rel (%p275) target = $region44
      $region43: #{coarse_pyramid_forward.8} parent=19 // pred_region
        %p278 = scmp.lt.s32.totalorder %s13, 1
        %s279 = scalar_select %p278, %s13, 1
        %s280 = scalar_lea.vmem %s6, %s279
      $region44: #{coarse_pyramid_forward.8} parent=19 // pred_fallthru
        _
    $region20: #{coarse_pyramid_forward.8} parent=5 // pred_fallthru
      _
    %p281 = scmp.le.s32.totalorder 1, %s13
    %p282 = scmp.lt.s32.totalorder %s13, 3
    %p283 = pnand %p281, %p282
    %p284 = pneg %p283
    // Predicated region
    $region45: #{coarse_pyramid_forward.8} parent=5 // pred_check
      _
    $region46: #{coarse_pyramid_forward.8} parent=5 // pred_check_branch
      %286 = sbr.rel (%p283) target = $region48
    $region47: #{coarse_pyramid_forward.8} parent=5 // pred_region
      %s287 = ssub.s32 %s13, 1
      %p288 = pneg %p34
      %p289 = pneg %p31
      %p290 = scmp.lt.s32.totalorder %s18, 1
      %s291 = scalar_select %p290, %s18, 1
      %s292 = smul.addr %s291, 24
      %s293 = smul.addr %s292, 8
      %s294 = scalar_lea.vmem %s1, %s293
      %p295 = pneg %p60
      %p296 = pneg %p57
      %p297 = scmp.lt.s32.totalorder %s18, 1
      %s298 = scalar_select %p297, %s18, 1
      %s299 = smul.addr %s298, 2
      %s300 = scalar_lea.vmem %s2, %s299
      %p301 = pneg %p86
      %p302 = pneg %p83
      %p303 = scmp.lt.s32.totalorder %s18, 1
      %s304 = scalar_select %p303, %s18, 1
      %s305 = smul.addr %s304, 2
      %s306 = scalar_lea.vmem %s3, %s305
      %p307 = pneg %p112
      %p308 = pneg %p109
      %p309 = scmp.lt.s32.totalorder %s18, 1
      %s310 = scalar_select %p309, %s18, 1
      %s311 = smul.addr %s310, 2
      %s312 = scalar_lea.vmem %s4, %s311
      %p313 = pneg %p138
      %p314 = pneg %p135
      %p315 = scmp.lt.s32.totalorder %s18, 1
      %s316 = scalar_select %p315, %s18, 1
      %s317 = smul.addr %s316, 12
      %s318 = smul.addr %s317, 8
      %s319 = scalar_lea.vmem %s5, %s318
      %p320 = pneg %p164
      %p321 = pneg %p161
      %p322 = scmp.lt.s32.totalorder %s18, 1
      %s323 = scalar_select %p322, %s18, 1
      %s324 = scalar_lea.vmem %s6, %s323
      %p325 = pneg %p190
      %p326 = pneg %p187
      %p327 = pneg %p216
      %p328 = pneg %p213
      %p329 = scmp.lt.s32.totalorder %s18, 1
      %s330 = scalar_select %p329, %s18, 1
      %s331 = smul.addr %s330, 2
      %s332 = smul.addr %s331, 8
      %s333 = scalar_lea.vmem %s7, %s332
      %p334 = scmp.lt.s32.totalorder %s18, 1
      %s335 = scalar_select %p334, %s18, 1
      %s336 = smul.addr %s335, 24
      %s337 = smul.addr %s336, 8
      %s338 = scalar_lea.vmem %s1, %s337
      %p339 = scmp.lt.s32.totalorder %s18, 1
      %s340 = scalar_select %p339, %s18, 1
      %s341 = smul.addr %s340, 2
      %s342 = scalar_lea.vmem %s2, %s341
      %p343 = scmp.lt.s32.totalorder %s18, 1
      %s344 = scalar_select %p343, %s18, 1
      %s345 = smul.addr %s344, 2
      %s346 = scalar_lea.vmem %s3, %s345
      %p347 = scmp.lt.s32.totalorder %s18, 1
      %s348 = scalar_select %p347, %s18, 1
      %s349 = smul.addr %s348, 2
      %s350 = scalar_lea.vmem %s4, %s349
      %p351 = scmp.lt.s32.totalorder %s18, 1
      %s352 = scalar_select %p351, %s18, 1
      %s353 = smul.addr %s352, 12
      %s354 = smul.addr %s353, 8
      %s355 = scalar_lea.vmem %s5, %s354
      %p356 = scmp.lt.s32.totalorder %s18, 1
      %s357 = scalar_select %p356, %s18, 1
      %s358 = scalar_lea.vmem %s6, %s357
      %p359 = scmp.lt.s32.totalorder %s18, 1
      %s360 = scalar_select %p359, %s18, 1
      %s361 = smul.addr %s360, 2
      %s362 = smul.addr %s361, 8
      %s363 = scalar_lea.vmem %s7, %s362
      %v364 = vld [vmem:[%s0] sm:$0xff]
      %v365 = vld [vmem:[%s0 + $0x8] sm:$0xff]
      %v366 = vlaneseq
      %v367 = vshrl.u32 %v366, 7
      %v368 = vadd.s32 %v367, 8
      %vm369 = vcmp.lt.s32.totalorder %v367, 0
      %v370 = vsub.s32 0, %v367
      %v371 = vsel %vm369, %v370, %v367
      %v372 = vshrl.u32 %v371, 3
      %v373 = vand.u32 %v371, 7
      %v374 = vsub.s32 0, %v373
      %v375 = vsel %vm369, %v374, %v373
      %vm376 = vcmp.lt.s32.totalorder %v368, 0
      %v377 = vsub.s32 0, %v368
      %v378 = vsel %vm376, %v377, %v368
      %v379 = vshrl.u32 %v378, 3
      %v380 = vand.u32 %v378, 7
      %v381 = vsub.s32 0, %v380
      %v382 = vsel %vm376, %v381, %v380
      %vm383 = vcmp.ne.s32.totalorder %v375, 0
      %vm384 = vcmp.ne.s32.totalorder %v382, 0
      %vm385 = vcmp.lt.s32.totalorder %v375, 0
      %vm386 = vcmp.lt.s32.totalorder %v382, 0
      %vm387 = vmand %vm385, %vm383
      %vm388 = vmand %vm386, %vm384
      %v389 = vadd.s32 %v375, 8
      %v390 = vadd.s32 %v382, 8
      %v391 = vsel %vm387, %v389, %v375
      %v392 = vsel %vm388, %v390, %v382
      %vm395 = vcmask 1040384
      %v396 = vrot.slane %v364, 7
      %v397 = vrot.slane %v365, 7
      %v398 = vsel %vm395, %v396, %v397
      %v401 = vsel %vm395, 0.0, %v396
      %vm402 = vcmask 1046528
      %v403 = vrot.slane %v364, 1
      %v404 = vrot.slane %v365, 1
      %v405 = vsel %vm402, %v403, %v404
      %v408 = vsel %vm402, %v404, 0.0
      %vm409 = vcmp.eq.s32.totalorder %v391, 0
      %vm410 = vcmp.eq.s32.totalorder %v392, 0
      %v411 = vsel %vm409, 1, 0
      %v412 = vsel %vm410, 1, 0
      %vm413 = vcmp.eq.s32.totalorder %v411, 1
      %vm414 = vcmp.eq.s32.totalorder %v412, 1
      %v415 = vsel %vm413, 0.0, %v401
      %v416 = vsel %vm414, 0.0, %v398
      %vm417 = vcmp.eq.s32.totalorder %v391, 7
      %vm418 = vcmp.eq.s32.totalorder %v392, 7
      %v419 = vsel %vm417, 1, 0
      %v420 = vsel %vm418, 1, 0
      %vm421 = vcmp.eq.s32.totalorder %v419, 1
      %vm422 = vcmp.eq.s32.totalorder %v420, 1
      %v423 = vsel %vm421, 0.0, %v405
      %v424 = vsel %vm422, 0.0, %v408
      %425 = vrot.lane.b32.xlu0 %v364, 32
      %v426 = vpop.permute.xlu0 %425
      %427 = vrot.lane.b32.xlu0 %v365, 32
      %v428 = vpop.permute.xlu0 %427
      %433 = vrot.lane.b32.xlu0 %v423, 64
      %v434 = vpop.permute.xlu0 %433
      %435 = vrot.lane.b32.xlu0 %v424, 64
      %v436 = vpop.permute.xlu0 %435
      %vm439 = vcmask 261120
      %v440 = vsel %vm439, %v415, %v426
      %v441 = vsel %vm439, %v416, %v428
      %vm442 = vcmask 523264
      %v443 = vsel %vm442, %v440, %v434
      %v444 = vsel %vm442, %v441, %v436
      %v445 = vld [vmem:[%s338] sm:$0xff]
      %v446 = vld [vmem:[%s338 + $0x8] sm:$0xff]
      %v447 = vld [vmem:[%s338 + $0x10] sm:$0xff]
      %v448 = vld [vmem:[%s338 + $0x18] sm:$0xff]
      %v449 = vld [vmem:[%s338 + $0x20] sm:$0xff]
      %v450 = vld [vmem:[%s338 + $0x28] sm:$0xff]
      %v451 = vld [vmem:[%s338 + $0x30] sm:$0xff]
      %v452 = vld [vmem:[%s338 + $0x38] sm:$0xff]
      %v453 = vld [vmem:[%s338 + $0x40] sm:$0xff]
      %v454 = vld [vmem:[%s338 + $0x48] sm:$0xff]
      %v455 = vld [vmem:[%s338 + $0x50] sm:$0xff]
      %v456 = vld [vmem:[%s338 + $0x58] sm:$0xff]
      %v457 = vld [vmem:[%s342] sm:$0x1]
      %v459 = vlaneseq
      %v460 = vshrl.u32 %v459, 7
      %v461 = vsub.s32 0, %v460
      %v462 = vrot.slane %v457, %v461
      %vm464 = vcmask 785408
      %v466 = vsel %vm464, %v443, 0
      %v469 = vsel %vm464, %v444, 0
      %471 = vmatprep.subr.mxu0 0.0
      %472 = vmatpush1.msra.mxu0 %v445
      %473 = vmatprep.subr.mxu0 0.0
      %474 = vmatpush1.msra.mxu0 %v446
      %475 = vmatprep.subr.mxu0 0.0
      %476 = vmatpush1.msra.mxu0 %v447
      %477 = vmatprep.subr.mxu0 0.0
      %478 = vmatpush1.msra.mxu0 %v448
      %479 = vmatprep.subr.mxu0 0.0
      %480 = vmatpush1.msra.mxu0 %v449
      %481 = vmatprep.subr.mxu0 0.0
      %482 = vmatpush1.msra.mxu0 %v450
      %483 = vmatprep.subr.mxu0 0.0
      %484 = vmatpush1.msra.mxu0 %v451
      %485 = vmatprep.subr.mxu0 0.0
      %486 = vmatpush1.msra.mxu0 %v452
      %487 = vmatprep.subr.mxu0 0.0
      %488 = vmatpush1.msra.mxu0 %v453
      %489 = vmatprep.subr.mxu0 0.0
      %490 = vmatpush1.msra.mxu0 %v454
      %491 = vmatprep.subr.mxu0 0.0
      %492 = vmatpush1.msra.mxu0 %v455
      %493 = vmatprep.subr.mxu0 0.0
      %494 = vmatpush1.msra.mxu0 %v456
      %495 = vmatprep.subr.mxu0 0.0
      %496 = vmatpush1.msra.mxu0 0.0
      %497 = vmatprep.subr.mxu0 0.0
      %498 = vmatpush1.msra.mxu0 0.0
      %499 = vmatprep.subr.mxu0 0.0
      %500 = vmatpush1.msra.mxu0 0.0
      %501 = vmatprep.subr.mxu0 0.0
      %502 = vmatpush1.msra.mxu0 0.0
      %503 = vmatprep.subr.mxu0 0.0
      %504 = vmatpush1.msra.mxu0 0.0
      %505 = vmatprep.subr.mxu0 0.0
      %506 = vmatpush1.msra.mxu0 0.0
      %507 = vmatprep.subr.mxu0 0.0
      %508 = vmatpush1.msra.mxu0 0.0
      %509 = vmatprep.subr.mxu0 0.0
      %510 = vmatpush1.msra.mxu0 0.0
      %511 = vmatprep.subr.mxu0 0.0
      %512 = vmatpush1.msra.mxu0 0.0
      %513 = vmatprep.subr.mxu0 0.0
      %514 = vmatpush1.msra.mxu0 0.0
      %515 = vmatprep.subr.mxu0 0.0
      %516 = vmatpush1.msra.mxu0 0.0
      %517 = vmatprep.subr.mxu0 0.0
      %518 = vmatpush1.msra.mxu0 0.0
      %519 = vmatprep.subr.mxu0 0.0
      %520 = vmatpush1.msra.mxu0 0.0
      %521 = vmatprep.subr.mxu0 0.0
      %522 = vmatpush1.msra.mxu0 0.0
      %523 = vmatprep.subr.mxu0 0.0
      %524 = vmatpush1.msra.mxu0 0.0
      %525 = vmatprep.subr.mxu0 0.0
      %526 = vmatpush1.msra.mxu0 0.0
      %527 = vmatprep.subr.mxu0 0.0
      %528 = vmatpush1.msra.mxu0 0.0
      %529 = vmatprep.subr.mxu0 0.0
      %530 = vmatpush1.msra.mxu0 0.0
      %531 = vmatprep.subr.mxu0 0.0
      %532 = vmatpush1.msra.mxu0 0.0
      %533 = vmatprep.subr.mxu0 0.0
      %534 = vmatpush1.msra.mxu0 0.0
      %535 = vmatprep.mubr.f32.mxu0 0.0
      %536 = vmatmul.mubr.f32.gmra.mrb[0].mxu0 %v466
      %v537 = vpop.f32.mrb[0].mxu0
      %v538 = vadd.f32 %v462, %v537
      %v539 = vpop.f32.mrb[0].mxu0
      %540 = vmatprep.mubr.f32.mxu0 0.0
      %541 = vmatmul.mubr.f32.gmra.mrb[0].mxu0 %v469
      %v542 = vpop.f32.mrb[0].mxu0
      %v543 = vadd.f32 %v462, %v542
      %v544 = vpop.f32.mrb[0].mxu0
      %545 = vdwg.mxu0
      %v546 = vld [vmem:[%s346] sm:$0x1]
      %v547 = vld [vmem:[%s350] sm:$0x1]
      %v548 = vsel %vm439, %v538, 0.0
      %v549 = vrot.slane %v548, 4
      %v550 = vadd.f32 %v548, %v549
      %v551 = vrot.slane %v550, 2
      %v552 = vadd.f32 %v550, %v551
      %v553 = vrot.slane %v552, 1
      %v554 = vadd.f32 %v552, %v553
      %v555 = vmul.f32 %v554, 0.125
      %v556 = vsub.f32 %v538, %v555
      %v557 = vmul.f32 %v556, %v556
      %v558 = vsel %vm439, %v557, 0.0
      %v559 = vrot.slane %v558, 4
      %v560 = vadd.f32 %v558, %v559
      %v561 = vrot.slane %v560, 2
      %v562 = vadd.f32 %v560, %v561
      %v563 = vrot.slane %v562, 1
      %v564 = vadd.f32 %v562, %v563
      %v565 = vmul.f32 %v564, 0.125
      %v566 = vadd.f32 %v565, 1e-05
      %v567 = vrsqrt.pop %v566
      %v568 = vmul.f32 %v556, %v567
      %v570 = vlaneseq
      %v571 = vshrl.u32 %v570, 7
      %v572 = vsub.s32 0, %v571
      %v573 = vrot.slane %v546, %v572
      %v575 = vmul.f32 %v568, %v573
      %v577 = vlaneseq
      %v578 = vshrl.u32 %v577, 7
      %v579 = vsub.s32 0, %v578
      %v580 = vrot.slane %v547, %v579
      %v582 = vadd.f32 %v575, %v580
      %v583 = vmax.f32 %v582, 0.0
      %v584 = vsel %vm439, %v543, 0.0
      %v585 = vrot.slane %v584, 4
      %v586 = vadd.f32 %v584, %v585
      %v587 = vrot.slane %v586, 2
      %v588 = vadd.f32 %v586, %v587
      %v589 = vrot.slane %v588, 1
      %v590 = vadd.f32 %v588, %v589
      %v591 = vmul.f32 %v590, 0.125
      %v592 = vsub.f32 %v543, %v591
      %v593 = vmul.f32 %v592, %v592
      %v594 = vsel %vm439, %v593, 0.0
      %v595 = vrot.slane %v594, 4
      %v596 = vadd.f32 %v594, %v595
      %v597 = vrot.slane %v596, 2
      %v598 = vadd.f32 %v596, %v597
      %v599 = vrot.slane %v598, 1
      %v600 = vadd.f32 %v598, %v599
      %v601 = vmul.f32 %v600, 0.125
      %v602 = vadd.f32 %v601, 1e-05
      %v603 = vrsqrt.pop %v602
      %v604 = vmul.f32 %v592, %v603
      %v605 = vmul.f32 %v604, %v573
      %v606 = vadd.f32 %v605, %v580
      %v607 = vmax.f32 %v606, 0.0
      %v610 = vrot.slane %v583, 7
      %v611 = vrot.slane %v607, 7
      %v612 = vsel %vm395, %v610, %v611
      %v615 = vsel %vm395, 0.0, %v610
      %v616 = vrot.slane %v583, 1
      %v617 = vrot.slane %v607, 1
      %v618 = vsel %vm402, %v616, %v617
      %v621 = vsel %vm402, %v617, 0.0
      %v622 = vsel %vm413, 0.0, %v615
      %v623 = vsel %vm414, 0.0, %v612
      %v624 = vsel %vm421, 0.0, %v618
      %v625 = vsel %vm422, 0.0, %v621
      %626 = vrot.lane.b32.xlu0 %v583, 32
      %v627 = vpop.permute.xlu0 %626
      %628 = vrot.lane.b32.xlu0 %v607, 32
      %v629 = vpop.permute.xlu0 %628
      %634 = vrot.lane.b32.xlu0 %v624, 64
      %v635 = vpop.permute.xlu0 %634
      %636 = vrot.lane.b32.xlu0 %v625, 64
      %v637 = vpop.permute.xlu0 %636
      %v640 = vsel %vm439, %v622, %v627
      %v641 = vsel %vm439, %v623, %v629
      %v642 = vsel %vm442, %v640, %v635
      %v643 = vsel %vm442, %v641, %v637
      %s644 = scalar_lea.vmem %s338, 96
      %v645 = vld [vmem:[%s644] sm:$0xff]
      %v646 = vld [vmem:[%s644 + $0x8] sm:$0xff]
      %v647 = vld [vmem:[%s644 + $0x10] sm:$0xff]
      %v648 = vld [vmem:[%s644 + $0x18] sm:$0xff]
      %v649 = vld [vmem:[%s644 + $0x20] sm:$0xff]
      %v650 = vld [vmem:[%s644 + $0x28] sm:$0xff]
      %v651 = vld [vmem:[%s644 + $0x30] sm:$0xff]
      %v652 = vld [vmem:[%s644 + $0x38] sm:$0xff]
      %v653 = vld [vmem:[%s644 + $0x40] sm:$0xff]
      %v654 = vld [vmem:[%s644 + $0x48] sm:$0xff]
      %v655 = vld [vmem:[%s644 + $0x50] sm:$0xff]
      %v656 = vld [vmem:[%s644 + $0x58] sm:$0xff]
      %s657 = scalar_lea.vmem %s342, 1
      %v658 = vld [vmem:[%s657] sm:$0x1]
      %v660 = vlaneseq
      %v661 = vshrl.u32 %v660, 7
      %v662 = vsub.s32 0, %v661
      %v663 = vrot.slane %v658, %v662
      %v666 = vsel %vm464, %v642, 0
      %v669 = vsel %vm464, %v643, 0
      %671 = vmatprep.subr.mxu0 0.0
      %672 = vmatpush1.msra.mxu0 %v645
      %673 = vmatprep.subr.mxu0 0.0
      %674 = vmatpush1.msra.mxu0 %v646
      %675 = vmatprep.subr.mxu0 0.0
      %676 = vmatpush1.msra.mxu0 %v647
      %677 = vmatprep.subr.mxu0 0.0
      %678 = vmatpush1.msra.mxu0 %v648
      %679 = vmatprep.subr.mxu0 0.0
      %680 = vmatpush1.msra.mxu0 %v649
      %681 = vmatprep.subr.mxu0 0.0
      %682 = vmatpush1.msra.mxu0 %v650
      %683 = vmatprep.subr.mxu0 0.0
      %684 = vmatpush1.msra.mxu0 %v651
      %685 = vmatprep.subr.mxu0 0.0
      %686 = vmatpush1.msra.mxu0 %v652
      %687 = vmatprep.subr.mxu0 0.0
      %688 = vmatpush1.msra.mxu0 %v653
      %689 = vmatprep.subr.mxu0 0.0
      %690 = vmatpush1.msra.mxu0 %v654
      %691 = vmatprep.subr.mxu0 0.0
      %692 = vmatpush1.msra.mxu0 %v655
      %693 = vmatprep.subr.mxu0 0.0
      %694 = vmatpush1.msra.mxu0 %v656
      %695 = vmatprep.subr.mxu0 0.0
      %696 = vmatpush1.msra.mxu0 0.0
      %697 = vmatprep.subr.mxu0 0.0
      %698 = vmatpush1.msra.mxu0 0.0
      %699 = vmatprep.subr.mxu0 0.0
      %700 = vmatpush1.msra.mxu0 0.0
      %701 = vmatprep.subr.mxu0 0.0
      %702 = vmatpush1.msra.mxu0 0.0
      %703 = vmatprep.subr.mxu0 0.0
      %704 = vmatpush1.msra.mxu0 0.0
      %705 = vmatprep.subr.mxu0 0.0
      %706 = vmatpush1.msra.mxu0 0.0
      %707 = vmatprep.subr.mxu0 0.0
      %708 = vmatpush1.msra.mxu0 0.0
      %709 = vmatprep.subr.mxu0 0.0
      %710 = vmatpush1.msra.mxu0 0.0
      %711 = vmatprep.subr.mxu0 0.0
      %712 = vmatpush1.msra.mxu0 0.0
      %713 = vmatprep.subr.mxu0 0.0
      %714 = vmatpush1.msra.mxu0 0.0
      %715 = vmatprep.subr.mxu0 0.0
      %716 = vmatpush1.msra.mxu0 0.0
      %717 = vmatprep.subr.mxu0 0.0
      %718 = vmatpush1.msra.mxu0 0.0
      %719 = vmatprep.subr.mxu0 0.0
      %720 = vmatpush1.msra.mxu0 0.0
      %721 = vmatprep.subr.mxu0 0.0
      %722 = vmatpush1.msra.mxu0 0.0
      %723 = vmatprep.subr.mxu0 0.0
      %724 = vmatpush1.msra.mxu0 0.0
      %725 = vmatprep.subr.mxu0 0.0
      %726 = vmatpush1.msra.mxu0 0.0
      %727 = vmatprep.subr.mxu0 0.0
      %728 = vmatpush1.msra.mxu0 0.0
      %729 = vmatprep.subr.mxu0 0.0
      %730 = vmatpush1.msra.mxu0 0.0
      %731 = vmatprep.subr.mxu0 0.0
      %732 = vmatpush1.msra.mxu0 0.0
      %733 = vmatprep.subr.mxu0 0.0
      %734 = vmatpush1.msra.mxu0 0.0
      %735 = vmatprep.mubr.f32.mxu0 0.0
      %736 = vmatmul.mubr.f32.gmra.mrb[0].mxu0 %v666
      %v737 = vpop.f32.mrb[0].mxu0
      %v738 = vadd.f32 %v663, %v737
      %v739 = vpop.f32.mrb[0].mxu0
      %740 = vmatprep.mubr.f32.mxu0 0.0
      %741 = vmatmul.mubr.f32.gmra.mrb[0].mxu0 %v669
      %v742 = vpop.f32.mrb[0].mxu0
      %v743 = vadd.f32 %v663, %v742
      %v744 = vpop.f32.mrb[0].mxu0
      %745 = vdwg.mxu0
      %s746 = scalar_lea.vmem %s346, 1
      %v747 = vld [vmem:[%s746] sm:$0x1]
      %s748 = scalar_lea.vmem %s350, 1
      %v749 = vld [vmem:[%s748] sm:$0x1]
      %v750 = vsel %vm439, %v738, 0.0
      %v751 = vrot.slane %v750, 4
      %v752 = vadd.f32 %v750, %v751
      %v753 = vrot.slane %v752, 2
      %v754 = vadd.f32 %v752, %v753
      %v755 = vrot.slane %v754, 1
      %v756 = vadd.f32 %v754, %v755
      %v757 = vmul.f32 %v756, 0.125
      %v758 = vsub.f32 %v738, %v757
      %v759 = vmul.f32 %v758, %v758
      %v760 = vsel %vm439, %v759, 0.0
      %v761 = vrot.slane %v760, 4
      %v762 = vadd.f32 %v760, %v761
      %v763 = vrot.slane %v762, 2
      %v764 = vadd.f32 %v762, %v763
      %v765 = vrot.slane %v764, 1
      %v766 = vadd.f32 %v764, %v765
      %v767 = vmul.f32 %v766, 0.125
      %v768 = vadd.f32 %v767, 1e-05
      %v769 = vrsqrt.pop %v768
      %v770 = vmul.f32 %v758, %v769
      %v772 = vlaneseq
      %v773 = vshrl.u32 %v772, 7
      %v774 = vsub.s32 0, %v773
      %v775 = vrot.slane %v747, %v774
      %v777 = vmul.f32 %v770, %v775
      %v779 = vlaneseq
      %v780 = vshrl.u32 %v779, 7
      %v781 = vsub.s32 0, %v780
      %v782 = vrot.slane %v749, %v781
      %v784 = vadd.f32 %v777, %v782
      %v785 = vmax.f32 %v784, 0.0
      %v786 = vsel %vm439, %v743, 0.0
      %v787 = vrot.slane %v786, 4
      %v788 = vadd.f32 %v786, %v787
      %v789 = vrot.slane %v788, 2
      %v790 = vadd.f32 %v788, %v789
      %v791 = vrot.slane %v790, 1
      %v792 = vadd.f32 %v790, %v791
      %v793 = vmul.f32 %v792, 0.125
      %v794 = vsub.f32 %v743, %v793
      %v795 = vmul.f32 %v794, %v794
      %v796 = vsel %vm439, %v795, 0.0
      %v797 = vrot.slane %v796, 4
      %v798 = vadd.f32 %v796, %v797
      %v799 = vrot.slane %v798, 2
      %v800 = vadd.f32 %v798, %v799
      %v801 = vrot.slane %v800, 1
      %v802 = vadd.f32 %v800, %v801
      %v803 = vmul.f32 %v802, 0.125
      %v804 = vadd.f32 %v803, 1e-05
      %v805 = vrsqrt.pop %v804
      %v806 = vmul.f32 %v794, %v805
      %v807 = vmul.f32 %v806, %v775
      %v808 = vadd.f32 %v807, %v782
      %v809 = vmax.f32 %v808, 0.0
      %v812 = vrot.slane %v785, 7
      %v813 = vrot.slane %v809, 7
      %v814 = vsel %vm395, %v812, %v813
      %v817 = vsel %vm395, 0.0, %v812
      %v818 = vrot.slane %v785, 1
      %v819 = vrot.slane %v809, 1
      %v820 = vsel %vm402, %v818, %v819
      %v823 = vsel %vm402, %v819, 0.0
      %v824 = vsel %vm413, 0.0, %v817
      %v825 = vsel %vm414, 0.0, %v814
      %v826 = vsel %vm421, 0.0, %v820
      %v827 = vsel %vm422, 0.0, %v823
      %828 = vrot.lane.b32.xlu0 %v785, 32
      %v829 = vpop.permute.xlu0 %828
      %830 = vrot.lane.b32.xlu0 %v809, 32
      %v831 = vpop.permute.xlu0 %830
      %836 = vrot.lane.b32.xlu0 %v826, 64
      %v837 = vpop.permute.xlu0 %836
      %838 = vrot.lane.b32.xlu0 %v827, 64
      %v839 = vpop.permute.xlu0 %838
      %v842 = vsel %vm439, %v824, %v829
      %v843 = vsel %vm439, %v825, %v831
      %v844 = vsel %vm442, %v842, %v837
      %v845 = vsel %vm442, %v843, %v839
      %v846 = vld [vmem:[%s355] sm:$0xff]
      %v847 = vld [vmem:[%s355 + $0x8] sm:$0xff]
      %v848 = vld [vmem:[%s355 + $0x10] sm:$0xff]
      %v849 = vld [vmem:[%s355 + $0x18] sm:$0xff]
      %v850 = vld [vmem:[%s355 + $0x20] sm:$0xff]
      %v851 = vld [vmem:[%s355 + $0x28] sm:$0xff]
      %v852 = vld [vmem:[%s355 + $0x30] sm:$0xff]
      %v853 = vld [vmem:[%s355 + $0x38] sm:$0xff]
      %v854 = vld [vmem:[%s355 + $0x40] sm:$0xff]
      %v855 = vld [vmem:[%s355 + $0x48] sm:$0xff]
      %v856 = vld [vmem:[%s355 + $0x50] sm:$0xff]
      %v857 = vld [vmem:[%s355 + $0x58] sm:$0xff]
      %v858 = vld [vmem:[%s358] sm:$0x1]
      %v860 = vlaneseq
      %v861 = vshrl.u32 %v860, 7
      %v862 = vsub.s32 0, %v861
      %v863 = vrot.slane %v858, %v862
      %v866 = vsel %vm464, %v844, 0
      %v869 = vsel %vm464, %v845, 0
      %871 = vmatprep.subr.mxu0 0.0
      %872 = vmatpush1.msra.mxu0 %v846
      %873 = vmatprep.subr.mxu0 0.0
      %874 = vmatpush1.msra.mxu0 %v847
      %875 = vmatprep.subr.mxu0 0.0
      %876 = vmatpush1.msra.mxu0 %v848
      %877 = vmatprep.subr.mxu0 0.0
      %878 = vmatpush1.msra.mxu0 %v849
      %879 = vmatprep.subr.mxu0 0.0
      %880 = vmatpush1.msra.mxu0 %v850
      %881 = vmatprep.subr.mxu0 0.0
      %882 = vmatpush1.msra.mxu0 %v851
      %883 = vmatprep.subr.mxu0 0.0
      %884 = vmatpush1.msra.mxu0 %v852
      %885 = vmatprep.subr.mxu0 0.0
      %886 = vmatpush1.msra.mxu0 %v853
      %887 = vmatprep.subr.mxu0 0.0
      %888 = vmatpush1.msra.mxu0 %v854
      %889 = vmatprep.subr.mxu0 0.0
      %890 = vmatpush1.msra.mxu0 %v855
      %891 = vmatprep.subr.mxu0 0.0
      %892 = vmatpush1.msra.mxu0 %v856
      %893 = vmatprep.subr.mxu0 0.0
      %894 = vmatpush1.msra.mxu0 %v857
      %895 = vmatprep.subr.mxu0 0.0
      %896 = vmatpush1.msra.mxu0 0.0
      %897 = vmatprep.subr.mxu0 0.0
      %898 = vmatpush1.msra.mxu0 0.0
      %899 = vmatprep.subr.mxu0 0.0
      %900 = vmatpush1.msra.mxu0 0.0
      %901 = vmatprep.subr.mxu0 0.0
      %902 = vmatpush1.msra.mxu0 0.0
      %903 = vmatprep.subr.mxu0 0.0
      %904 = vmatpush1.msra.mxu0 0.0
      %905 = vmatprep.subr.mxu0 0.0
      %906 = vmatpush1.msra.mxu0 0.0
      %907 = vmatprep.subr.mxu0 0.0
      %908 = vmatpush1.msra.mxu0 0.0
      %909 = vmatprep.subr.mxu0 0.0
      %910 = vmatpush1.msra.mxu0 0.0
      %911 = vmatprep.subr.mxu0 0.0
      %912 = vmatpush1.msra.mxu0 0.0
      %913 = vmatprep.subr.mxu0 0.0
      %914 = vmatpush1.msra.mxu0 0.0
      %915 = vmatprep.subr.mxu0 0.0
      %916 = vmatpush1.msra.mxu0 0.0
      %917 = vmatprep.subr.mxu0 0.0
      %918 = vmatpush1.msra.mxu0 0.0
      %919 = vmatprep.subr.mxu0 0.0
      %920 = vmatpush1.msra.mxu0 0.0
      %921 = vmatprep.subr.mxu0 0.0
      %922 = vmatpush1.msra.mxu0 0.0
      %923 = vmatprep.subr.mxu0 0.0
      %924 = vmatpush1.msra.mxu0 0.0
      %925 = vmatprep.subr.mxu0 0.0
      %926 = vmatpush1.msra.mxu0 0.0
      %927 = vmatprep.subr.mxu0 0.0
      %928 = vmatpush1.msra.mxu0 0.0
      %929 = vmatprep.subr.mxu0 0.0
      %930 = vmatpush1.msra.mxu0 0.0
      %931 = vmatprep.subr.mxu0 0.0
      %932 = vmatpush1.msra.mxu0 0.0
      %933 = vmatprep.subr.mxu0 0.0
      %934 = vmatpush1.msra.mxu0 0.0
      %935 = vmatprep.mubr.f32.mxu0 0.0
      %936 = vmatmul.mubr.f32.gmra.mrb[0].mxu0 %v866
      %v937 = vpop.f32.mrb[0].mxu0
      %v938 = vadd.f32 %v863, %v937
      %v939 = vpop.f32.mrb[0].mxu0
      %940 = vmatprep.mubr.f32.mxu0 0.0
      %941 = vmatmul.mubr.f32.gmra.mrb[0].mxu0 %v869
      %v942 = vpop.f32.mrb[0].mxu0
      %v943 = vadd.f32 %v863, %v942
      %v944 = vpop.f32.mrb[0].mxu0
      %945 = vdwg.mxu0
      %p946 = scmp.eq.s32.totalorder %s18, 0
      // Predicated region
      $region49: #{coarse_pyramid_forward.8} parent=47 // pred_check
        %p947 = pneg %p946
      $region50: #{coarse_pyramid_forward.8} parent=47 // pred_check_branch
        %949 = sbr.rel (%p947) target = $region52
      $region51: #{coarse_pyramid_forward.8} parent=47 // pred_region
        %v950 = vmul.f32 %v938, 1.442695
        %v951 = vpow.pop %v950
        %v952 = vmul.f32 %v943, 1.442695
        %v953 = vpow.pop %v952
        %vm954 = vcmask 64512
        %955 = vst.msk [vmem:[%s363] sm:$0xff] %vm954, %v951
        %956 = vst.msk [vmem:[%s363 + $0x8] sm:$0xff] %vm954, %v953
      $region52: #{coarse_pyramid_forward.8} parent=47 // pred_fallthru
        _
      %p957 = scmp.eq.s32.totalorder %s18, 1
      // Predicated region
      $region53: #{coarse_pyramid_forward.8} parent=47 // pred_check
        %p958 = pneg %p957
      $region54: #{coarse_pyramid_forward.8} parent=47 // pred_check_branch
        %960 = sbr.rel (%p958) target = $region56
      $region55: #{coarse_pyramid_forward.8} parent=47 // pred_region
        %vm961 = vcmask 64512
        %962 = vst.msk [vmem:[%s363] sm:$0xff] %vm961, %v938
        %963 = vst.msk [vmem:[%s363 + $0x8] sm:$0xff] %vm961, %v943
      $region56: #{coarse_pyramid_forward.8} parent=47 // pred_fallthru
        _
      %p964 = scmp.lt.s32.totalorder %s18, 1
      %s965 = scalar_select %p964, %s18, 1
      %s966 = smul.addr %s965, 2
      %s967 = smul.addr %s966, 8
      %s968 = scalar_lea.vmem %s7, %s967
      // Predicated region
      $region57: #{coarse_pyramid_forward.8} parent=47 // pred_check
        %p969 = pneg %p213
      $region58: #{coarse_pyramid_forward.8} parent=47 // pred_check_branch
        %971 = sbr.rel (%p969) target = $region60
      $region59: #{coarse_pyramid_forward.8} parent=47 // pred_region
        _
      $region60: #{coarse_pyramid_forward.8} parent=47 // pred_fallthru
        _
    $region48: #{coarse_pyramid_forward.8} parent=5 // pred_fallthru
      _
    %p972 = scmp.le.s32.totalorder 2, %s13
    // Predicated region
    $region61: #{coarse_pyramid_forward.8} parent=5 // pred_check
      %p973 = pneg %p972
    $region62: #{coarse_pyramid_forward.8} parent=5 // pred_check_branch
      %975 = sbr.rel (%p973) target = $region64
    $region63: #{coarse_pyramid_forward.8} parent=5 // pred_region
      %s976 = ssub.s32 %s13, 2
      // Predicated region
      $region65: #{coarse_pyramid_forward.8} parent=63 // pred_check
        %p977 = pneg %p219
      $region66: #{coarse_pyramid_forward.8} parent=63 // pred_check_branch
        %979 = sbr.rel (%p977) target = $region68
      $region67: #{coarse_pyramid_forward.8} parent=63 // pred_region
        %p980 = scmp.lt.s32.totalorder %s19, 1
        %s981 = scalar_select %p980, %s19, 1
        %s982 = smul.addr %s981, 2
        %s983 = smul.addr %s982, 8
        %s984 = scalar_lea.vmem %s7, %s983
      $region68: #{coarse_pyramid_forward.8} parent=63 // pred_fallthru
        _
    $region64: #{coarse_pyramid_forward.8} parent=5 // pred_fallthru
      _
  $region6: #{coarse_pyramid_forward.8} parent=0 // loop_footer
    %s17 = sadd.s32 1, %s13
  $region7: #{coarse_pyramid_forward.8} parent=0 // loop_footer_branch
    %12 = sbr.rel target = $region3
  $region8: #{coarse_pyramid_forward.8} parent=0 // loop_exit
    _

// kernel: coarse_pyramid_forward.9
$region0: #{coarse_pyramid_forward.9}
  #allocation0 [shape = 'u32[]', space=smem, size = 0x4, offset = 0x4, fixed_abs, tag = 'smem constant byte address 0x4 - core index']
  #allocation1 [shape = 'u32[144,128]{1,0:T(1,128)}', space=vmem, size = 0x12000, scoped, tag = 'internal scratch']
  %s0 = inlined_call_operand.vmem [shape: f32[8,32], index: 0, kind: input, shape index: {}]
  %s1 = inlined_call_operand.vmem [shape: f32[2,2,96,32], index: 1, kind: input, shape index: {}]
  %s2 = inlined_call_operand.vmem [shape: f32[2,2,1,32], index: 2, kind: input, shape index: {}]
  %s3 = inlined_call_operand.vmem [shape: f32[2,2,1,32], index: 3, kind: input, shape index: {}]
  %s4 = inlined_call_operand.vmem [shape: f32[2,2,1,32], index: 4, kind: input, shape index: {}]
  %s5 = inlined_call_operand.vmem [shape: f32[2,96,8], index: 5, kind: input, shape index: {}]
  %s6 = inlined_call_operand.vmem [shape: f32[2,1,8], index: 6, kind: input, shape index: {}]
  %s7 = inlined_call_operand.vmem [shape: f32[2,8,8], index: 7, kind: output, shape index: {}]
  %s8 = sld [smem:[#allocation0]]
  $region69: #{coarse_pyramid_forward.9} parent=0
    _
  %s10 = ssub.s32 1, %s8
  %s11 = scalar_select 0, %s10, %s8
  loop: start=0, step=1, limit=4
  $region2: #{coarse_pyramid_forward.9} parent=0 // loop_pre_header
    _
  $region3: #{coarse_pyramid_forward.9} parent=0 // loop_header
    %s13 = sphi 0, %s17
    %p14 = scmp.ge.s32.totalorder %s13, 4
    %s21 = sphi 0, %s21
    %s23 = sphi 0, %s21
    %s24 = sphi 0, %s23
    %s38 = sphi 0, %s24
    %s44 = sphi 0, %s46
    %s47 = sphi 0, %s44
    %s48 = sphi 0, %s47
    %s64 = sphi 0, %s48
    %s70 = sphi 0, %s72
    %s73 = sphi 0, %s70
    %s74 = sphi 0, %s73
    %s90 = sphi 0, %s74
    %s96 = sphi 0, %s98
    %s99 = sphi 0, %s96
    %s100 = sphi 0, %s99
    %s116 = sphi 0, %s100
    %s122 = sphi 0, %s124
    %s125 = sphi 0, %s122
    %s126 = sphi 0, %s125
    %s142 = sphi 0, %s126
    %s148 = sphi 0, %s150
    %s151 = sphi 0, %s148
    %s152 = sphi 0, %s151
    %s168 = sphi 0, %s152
    %s174 = sphi 0, %s176
    %s177 = sphi 0, %s174
    %s178 = sphi 0, %s177
    %s194 = sphi 0, %s178
    %s200 = sphi 0, %s202
    %s203 = sphi 0, %s200
    %s204 = sphi 0, %s203
    %s220 = sphi 0, %s204
  $region4: #{coarse_pyramid_forward.9} parent=0 // loop_header_branch
    %16 = sbr.rel (%p14) target = $region8
  $region5: #{coarse_pyramid_forward.9} parent=0 // loop_body
    %s18 = ssub.s32 %s13, 1
    %s19 = ssub.s32 %s13, 2
    %s20 = sadd.s32 %s13, 1
    %s22 = sadd.s32 %s21, 1
    %p25 = scmp.eq.s32.totalorder %s13, 1
    %p26 = scmp.ne.s32.totalorder %s21, %s23
    %p27 = scmp.eq.s32.totalorder %s13, 0
    %p28 = por %p26, %p27
    %p29 = scmp.ne.s32.totalorder %s21, %s23
    %p30 = scmp.eq.s32.totalorder %s18, 1
    %p31 = por %p29, %p30
    %p32 = scmp.ne.s32.totalorder %s23, %s24
    %p33 = scmp.eq.s32.totalorder %s18, 0
    %p34 = por %p32, %p33
    %p35 = scmp.ne.s32.totalorder %s23, %s24
    %p36 = scmp.eq.s32.totalorder %s19, 1
    %p37 = por %p35, %p36
    %p39 = scmp.ne.s32.totalorder %s24, %s38
    %p40 = scmp.eq.s32.totalorder %s19, 0
    %p41 = por %p39, %p40
    %s42 = ssub.s32 %s13, %s20
    %p43 = scmp.eq.s32.totalorder %s42, 0
    %s45 = sadd.s32 %s44, 1
    %s46 = scalar_select %p43, %s44, %s45
    %p49 = pneg %p43
    %p50 = scmp.eq.s32.totalorder %s13, 1
    %p51 = por %p49, %p50
    %p52 = scmp.ne.s32.totalorder %s44, %s47
    %p53 = scmp.eq.s32.totalorder %s13, 0
    %p54 = por %p52, %p53
    %p55 = scmp.ne.s32.totalorder %s44, %s47
    %p56 = scmp.eq.s32.totalorder %s18, 1
    %p57 = por %p55, %p56
    %p58 = scmp.ne.s32.totalorder %s47, %s48
    %p59 = scmp.eq.s32.totalorder %s18, 0
    %p60 = por %p58, %p59
    %p61 = scmp.ne.s32.totalorder %s47, %s48
    %p62 = scmp.eq.s32.totalorder %s19, 1
    %p63 = por %p61, %p62
    %p65 = scmp.ne.s32.totalorder %s48, %s64
    %p66 = scmp.eq.s32.totalorder %s19, 0
    %p67 = por %p65, %p66
    %s68 = ssub.s32 %s13, %s20
    %p69 = scmp.eq.s32.totalorder %s68, 0
    %s71 = sadd.s32 %s70, 1
    %s72 = scalar_select %p69, %s70, %s71
    %p75 = pneg %p69
    %p76 = scmp.eq.s32.totalorder %s13, 1
    %p77 = por %p75, %p76
    %p78 = scmp.ne.s32.totalorder %s70, %s73
    %p79 = scmp.eq.s32.totalorder %s13, 0
    %p80 = por %p78, %p79
    %p81 = scmp.ne.s32.totalorder %s70, %s73
    %p82 = scmp.eq.s32.totalorder %s18, 1
    %p83 = por %p81, %p82
    %p84 = scmp.ne.s32.totalorder %s73, %s74
    %p85 = scmp.eq.s32.totalorder %s18, 0
    %p86 = por %p84, %p85
    %p87 = scmp.ne.s32.totalorder %s73, %s74
    %p88 = scmp.eq.s32.totalorder %s19, 1
    %p89 = por %p87, %p88
    %p91 = scmp.ne.s32.totalorder %s74, %s90
    %p92 = scmp.eq.s32.totalorder %s19, 0
    %p93 = por %p91, %p92
    %s94 = ssub.s32 %s13, %s20
    %p95 = scmp.eq.s32.totalorder %s94, 0
    %s97 = sadd.s32 %s96, 1
    %s98 = scalar_select %p95, %s96, %s97
    %p101 = pneg %p95
    %p102 = scmp.eq.s32.totalorder %s13, 1
    %p103 = por %p101, %p102
    %p104 = scmp.ne.s32.totalorder %s96, %s99
    %p105 = scmp.eq.s32.totalorder %s13, 0
    %p106 = por %p104, %p105
    %p107 = scmp.ne.s32.totalorder %s96, %s99
    %p108 = scmp.eq.s32.totalorder %s18, 1
    %p109 = por %p107, %p108
    %p110 = scmp.ne.s32.totalorder %s99, %s100
    %p111 = scmp.eq.s32.totalorder %s18, 0
    %p112 = por %p110, %p111
    %p113 = scmp.ne.s32.totalorder %s99, %s100
    %p114 = scmp.eq.s32.totalorder %s19, 1
    %p115 = por %p113, %p114
    %p117 = scmp.ne.s32.totalorder %s100, %s116
    %p118 = scmp.eq.s32.totalorder %s19, 0
    %p119 = por %p117, %p118
    %s120 = ssub.s32 %s13, %s20
    %p121 = scmp.eq.s32.totalorder %s120, 0
    %s123 = sadd.s32 %s122, 1
    %s124 = scalar_select %p121, %s122, %s123
    %p127 = pneg %p121
    %p128 = scmp.eq.s32.totalorder %s13, 1
    %p129 = por %p127, %p128
    %p130 = scmp.ne.s32.totalorder %s122, %s125
    %p131 = scmp.eq.s32.totalorder %s13, 0
    %p132 = por %p130, %p131
    %p133 = scmp.ne.s32.totalorder %s122, %s125
    %p134 = scmp.eq.s32.totalorder %s18, 1
    %p135 = por %p133, %p134
    %p136 = scmp.ne.s32.totalorder %s125, %s126
    %p137 = scmp.eq.s32.totalorder %s18, 0
    %p138 = por %p136, %p137
    %p139 = scmp.ne.s32.totalorder %s125, %s126
    %p140 = scmp.eq.s32.totalorder %s19, 1
    %p141 = por %p139, %p140
    %p143 = scmp.ne.s32.totalorder %s126, %s142
    %p144 = scmp.eq.s32.totalorder %s19, 0
    %p145 = por %p143, %p144
    %s146 = ssub.s32 %s13, %s20
    %p147 = scmp.eq.s32.totalorder %s146, 0
    %s149 = sadd.s32 %s148, 1
    %s150 = scalar_select %p147, %s148, %s149
    %p153 = pneg %p147
    %p154 = scmp.eq.s32.totalorder %s13, 1
    %p155 = por %p153, %p154
    %p156 = scmp.ne.s32.totalorder %s148, %s151
    %p157 = scmp.eq.s32.totalorder %s13, 0
    %p158 = por %p156, %p157
    %p159 = scmp.ne.s32.totalorder %s148, %s151
    %p160 = scmp.eq.s32.totalorder %s18, 1
    %p161 = por %p159, %p160
    %p162 = scmp.ne.s32.totalorder %s151, %s152
    %p163 = scmp.eq.s32.totalorder %s18, 0
    %p164 = por %p162, %p163
    %p165 = scmp.ne.s32.totalorder %s151, %s152
    %p166 = scmp.eq.s32.totalorder %s19, 1
    %p167 = por %p165, %p166
    %p169 = scmp.ne.s32.totalorder %s152, %s168
    %p170 = scmp.eq.s32.totalorder %s19, 0
    %p171 = por %p169, %p170
    %s172 = ssub.s32 %s13, %s20
    %p173 = scmp.eq.s32.totalorder %s172, 0
    %s175 = sadd.s32 %s174, 1
    %s176 = scalar_select %p173, %s174, %s175
    %p179 = pneg %p173
    %p180 = scmp.eq.s32.totalorder %s13, 1
    %p181 = por %p179, %p180
    %p182 = scmp.ne.s32.totalorder %s174, %s177
    %p183 = scmp.eq.s32.totalorder %s13, 0
    %p184 = por %p182, %p183
    %p185 = scmp.ne.s32.totalorder %s174, %s177
    %p186 = scmp.eq.s32.totalorder %s18, 1
    %p187 = por %p185, %p186
    %p188 = scmp.ne.s32.totalorder %s177, %s178
    %p189 = scmp.eq.s32.totalorder %s18, 0
    %p190 = por %p188, %p189
    %p191 = scmp.ne.s32.totalorder %s177, %s178
    %p192 = scmp.eq.s32.totalorder %s19, 1
    %p193 = por %p191, %p192
    %p195 = scmp.ne.s32.totalorder %s178, %s194
    %p196 = scmp.eq.s32.totalorder %s19, 0
    %p197 = por %p195, %p196
    %s198 = ssub.s32 %s13, %s20
    %p199 = scmp.eq.s32.totalorder %s198, 0
    %s201 = sadd.s32 %s200, 1
    %s202 = scalar_select %p199, %s200, %s201
    %p205 = pneg %p199
    %p206 = scmp.eq.s32.totalorder %s13, 1
    %p207 = por %p205, %p206
    %p208 = scmp.ne.s32.totalorder %s200, %s203
    %p209 = scmp.eq.s32.totalorder %s13, 0
    %p210 = por %p208, %p209
    %p211 = scmp.ne.s32.totalorder %s200, %s203
    %p212 = scmp.eq.s32.totalorder %s18, 1
    %p213 = por %p211, %p212
    %p214 = scmp.ne.s32.totalorder %s203, %s204
    %p215 = scmp.eq.s32.totalorder %s18, 0
    %p216 = por %p214, %p215
    %p217 = scmp.ne.s32.totalorder %s203, %s204
    %p218 = scmp.eq.s32.totalorder %s19, 1
    %p219 = por %p217, %p218
    %p221 = scmp.ne.s32.totalorder %s204, %s220
    %p222 = scmp.eq.s32.totalorder %s19, 0
    %p223 = por %p221, %p222
    %p224 = scmp.le.s32.totalorder 1, %s13
    %p225 = scmp.lt.s32.totalorder %s13, 3
    %p226 = pnand %p224, %p225
    %p227 = pneg %p226
    // Predicated region
    $region9: #{coarse_pyramid_forward.9} parent=5 // pred_check
      _
    $region10: #{coarse_pyramid_forward.9} parent=5 // pred_check_branch
      %229 = sbr.rel (%p226) target = $region12
    $region11: #{coarse_pyramid_forward.9} parent=5 // pred_region
      %s230 = ssub.s32 %s13, 1
      // Predicated region
      $region13: #{coarse_pyramid_forward.9} parent=11 // pred_check
        %p231 = pneg %p34
      $region14: #{coarse_pyramid_forward.9} parent=11 // pred_check_branch
        %233 = sbr.rel (%p231) target = $region16
      $region15: #{coarse_pyramid_forward.9} parent=11 // pred_region
        _
      $region16: #{coarse_pyramid_forward.9} parent=11 // pred_fallthru
        _
    $region12: #{coarse_pyramid_forward.9} parent=5 // pred_fallthru
      _
    %p234 = scmp.lt.s32.totalorder %s13, 2
    // Predicated region
    $region17: #{coarse_pyramid_forward.9} parent=5 // pred_check
      %p235 = pneg %p234
    $region18: #{coarse_pyramid_forward.9} parent=5 // pred_check_branch
      %237 = sbr.rel (%p235) target = $region20
    $region19: #{coarse_pyramid_forward.9} parent=5 // pred_region
      // Predicated region
      $region21: #{coarse_pyramid_forward.9} parent=19 // pred_check
        %p238 = pneg %p54
      $region22: #{coarse_pyramid_forward.9} parent=19 // pred_check_branch
        %240 = sbr.rel (%p238) target = $region24
      $region23: #{coarse_pyramid_forward.9} parent=19 // pred_region
        %p241 = scmp.lt.s32.totalorder %s13, 1
        %s242 = scalar_select %p241, %s13, 1
        %s243 = smul.addr %s242, 24
        %s244 = smul.addr %s243, 8
        %s245 = scalar_lea.vmem %s1, %s244
      $region24: #{coarse_pyramid_forward.9} parent=19 // pred_fallthru
        _
      // Predicated region
      $region25: #{coarse_pyramid_forward.9} parent=19 // pred_check
        %p246 = pneg %p80
      $region26: #{coarse_pyramid_forward.9} parent=19 // pred_check_branch
        %248 = sbr.rel (%p246) target = $region28
      $region27: #{coarse_pyramid_forward.9} parent=19 // pred_region
        %p249 = scmp.lt.s32.totalorder %s13, 1
        %s250 = scalar_select %p249, %s13, 1
        %s251 = smul.addr %s250, 2
        %s252 = scalar_lea.vmem %s2, %s251
      $region28: #{coarse_pyramid_forward.9} parent=19 // pred_fallthru
        _
      // Predicated region
      $region29: #{coarse_pyramid_forward.9} parent=19 // pred_check
        %p253 = pneg %p106
      $region30: #{coarse_pyramid_forward.9} parent=19 // pred_check_branch
        %255 = sbr.rel (%p253) target = $region32
      $region31: #{coarse_pyramid_forward.9} parent=19 // pred_region
        %p256 = scmp.lt.s32.totalorder %s13, 1
        %s257 = scalar_select %p256, %s13, 1
        %s258 = smul.addr %s257, 2
        %s259 = scalar_lea.vmem %s3, %s258
      $region32: #{coarse_pyramid_forward.9} parent=19 // pred_fallthru
        _
      // Predicated region
      $region33: #{coarse_pyramid_forward.9} parent=19 // pred_check
        %p260 = pneg %p132
      $region34: #{coarse_pyramid_forward.9} parent=19 // pred_check_branch
        %262 = sbr.rel (%p260) target = $region36
      $region35: #{coarse_pyramid_forward.9} parent=19 // pred_region
        %p263 = scmp.lt.s32.totalorder %s13, 1
        %s264 = scalar_select %p263, %s13, 1
        %s265 = smul.addr %s264, 2
        %s266 = scalar_lea.vmem %s4, %s265
      $region36: #{coarse_pyramid_forward.9} parent=19 // pred_fallthru
        _
      // Predicated region
      $region37: #{coarse_pyramid_forward.9} parent=19 // pred_check
        %p267 = pneg %p158
      $region38: #{coarse_pyramid_forward.9} parent=19 // pred_check_branch
        %269 = sbr.rel (%p267) target = $region40
      $region39: #{coarse_pyramid_forward.9} parent=19 // pred_region
        %p270 = scmp.lt.s32.totalorder %s13, 1
        %s271 = scalar_select %p270, %s13, 1
        %s272 = smul.addr %s271, 12
        %s273 = smul.addr %s272, 8
        %s274 = scalar_lea.vmem %s5, %s273
      $region40: #{coarse_pyramid_forward.9} parent=19 // pred_fallthru
        _
      // Predicated region
      $region41: #{coarse_pyramid_forward.9} parent=19 // pred_check
        %p275 = pneg %p184
      $region42: #{coarse_pyramid_forward.9} parent=19 // pred_check_branch
        %277 = sbr.rel (%p275) target = $region44
      $region43: #{coarse_pyramid_forward.9} parent=19 // pred_region
        %p278 = scmp.lt.s32.totalorder %s13, 1
        %s279 = scalar_select %p278, %s13, 1
        %s280 = scalar_lea.vmem %s6, %s279
      $region44: #{coarse_pyramid_forward.9} parent=19 // pred_fallthru
        _
    $region20: #{coarse_pyramid_forward.9} parent=5 // pred_fallthru
      _
    %p281 = scmp.le.s32.totalorder 1, %s13
    %p282 = scmp.lt.s32.totalorder %s13, 3
    %p283 = pnand %p281, %p282
    %p284 = pneg %p283
    // Predicated region
    $region45: #{coarse_pyramid_forward.9} parent=5 // pred_check
      _
    $region46: #{coarse_pyramid_forward.9} parent=5 // pred_check_branch
      %286 = sbr.rel (%p283) target = $region48
    $region47: #{coarse_pyramid_forward.9} parent=5 // pred_region
      %s287 = ssub.s32 %s13, 1
      %p288 = pneg %p34
      %p289 = pneg %p31
      %p290 = scmp.lt.s32.totalorder %s18, 1
      %s291 = scalar_select %p290, %s18, 1
      %s292 = smul.addr %s291, 24
      %s293 = smul.addr %s292, 8
      %s294 = scalar_lea.vmem %s1, %s293
      %p295 = pneg %p60
      %p296 = pneg %p57
      %p297 = scmp.lt.s32.totalorder %s18, 1
      %s298 = scalar_select %p297, %s18, 1
      %s299 = smul.addr %s298, 2
      %s300 = scalar_lea.vmem %s2, %s299
      %p301 = pneg %p86
      %p302 = pneg %p83
      %p303 = scmp.lt.s32.totalorder %s18, 1
      %s304 = scalar_select %p303, %s18, 1
      %s305 = smul.addr %s304, 2
      %s306 = scalar_lea.vmem %s3, %s305
      %p307 = pneg %p112
      %p308 = pneg %p109
      %p309 = scmp.lt.s32.totalorder %s18, 1
      %s310 = scalar_select %p309, %s18, 1
      %s311 = smul.addr %s310, 2
      %s312 = scalar_lea.vmem %s4, %s311
      %p313 = pneg %p138
      %p314 = pneg %p135
      %p315 = scmp.lt.s32.totalorder %s18, 1
      %s316 = scalar_select %p315, %s18, 1
      %s317 = smul.addr %s316, 12
      %s318 = smul.addr %s317, 8
      %s319 = scalar_lea.vmem %s5, %s318
      %p320 = pneg %p164
      %p321 = pneg %p161
      %p322 = scmp.lt.s32.totalorder %s18, 1
      %s323 = scalar_select %p322, %s18, 1
      %s324 = scalar_lea.vmem %s6, %s323
      %p325 = pneg %p190
      %p326 = pneg %p187
      %p327 = pneg %p216
      %p328 = pneg %p213
      %p329 = scmp.lt.s32.totalorder %s18, 1
      %s330 = scalar_select %p329, %s18, 1
      %s331 = smul.addr %s330, 8
      %s332 = scalar_lea.vmem %s7, %s331
      %p333 = scmp.lt.s32.totalorder %s18, 1
      %s334 = scalar_select %p333, %s18, 1
      %s335 = smul.addr %s334, 24
      %s336 = smul.addr %s335, 8
      %s337 = scalar_lea.vmem %s1, %s336
      %p338 = scmp.lt.s32.totalorder %s18, 1
      %s339 = scalar_select %p338, %s18, 1
      %s340 = smul.addr %s339, 2
      %s341 = scalar_lea.vmem %s2, %s340
      %p342 = scmp.lt.s32.totalorder %s18, 1
      %s343 = scalar_select %p342, %s18, 1
      %s344 = smul.addr %s343, 2
      %s345 = scalar_lea.vmem %s3, %s344
      %p346 = scmp.lt.s32.totalorder %s18, 1
      %s347 = scalar_select %p346, %s18, 1
      %s348 = smul.addr %s347, 2
      %s349 = scalar_lea.vmem %s4, %s348
      %p350 = scmp.lt.s32.totalorder %s18, 1
      %s351 = scalar_select %p350, %s18, 1
      %s352 = smul.addr %s351, 12
      %s353 = smul.addr %s352, 8
      %s354 = scalar_lea.vmem %s5, %s353
      %p355 = scmp.lt.s32.totalorder %s18, 1
      %s356 = scalar_select %p355, %s18, 1
      %s357 = scalar_lea.vmem %s6, %s356
      %p358 = scmp.lt.s32.totalorder %s18, 1
      %s359 = scalar_select %p358, %s18, 1
      %s360 = smul.addr %s359, 8
      %s361 = scalar_lea.vmem %s7, %s360
      %v362 = vld [vmem:[%s0] sm:$0xff]
      %v363 = vlaneseq
      %v364 = vshrl.u32 %v363, 7
      %vm365 = vcmp.lt.s32.totalorder %v364, 0
      %v366 = vsub.s32 0, %v364
      %v367 = vsel %vm365, %v366, %v364
      %v368 = vshrl.u32 %v367, 2
      %v369 = vand.u32 %v367, 3
      %v370 = vsub.s32 0, %v369
      %v371 = vsel %vm365, %v370, %v369
      %vm372 = vcmp.ne.s32.totalorder %v371, 0
      %vm373 = vcmp.lt.s32.totalorder %v371, 0
      %vm374 = vmand %vm373, %vm372
      %v375 = vadd.s32 %v371, 4
      %v376 = vsel %vm374, %v375, %v371
      %v378 = vrot.slane %v362, 7
      %vm380 = vcmask 1040384
      %v381 = vsel %vm380, 0.0, %v378
      %v382 = vrot.slane %v362, 1
      %vm384 = vcmask 1046528
      %v385 = vsel %vm384, %v382, 0.0
      %vm386 = vcmp.eq.s32.totalorder %v376, 0
      %v387 = vsel %vm386, 1, 0
      %vm388 = vcmp.eq.s32.totalorder %v387, 1
      %v389 = vsel %vm388, 0.0, %v381
      %vm390 = vcmp.eq.s32.totalorder %v376, 3
      %v391 = vsel %vm390, 1, 0
      %vm392 = vcmp.eq.s32.totalorder %v391, 1
      %v393 = vsel %vm392, 0.0, %v385
      %394 = vrot.lane.b32.xlu0 %v362, 32
      %v395 = vpop.permute.xlu0 %394
      %398 = vrot.lane.b32.xlu0 %v393, 64
      %v399 = vpop.permute.xlu0 %398
      %vm401 = vcmask 261120
      %v402 = vsel %vm401, %v389, %v395
      %vm403 = vcmask 523264
      %v404 = vsel %vm403, %v402, %v399
      %v405 = vld [vmem:[%s337] sm:$0xff]
      %v406 = vld [vmem:[%s337 + $0x8] sm:$0xff]
      %v407 = vld [vmem:[%s337 + $0x10] sm:$0xff]
      %v408 = vld [vmem:[%s337 + $0x18] sm:$0xff]
      %v409 = vld [vmem:[%s337 + $0x20] sm:$0xff]
      %v410 = vld [vmem:[%s337 + $0x28] sm:$0xff]
      %v411 = vld [vmem:[%s337 + $0x30] sm:$0xff]
      %v412 = vld [vmem:[%s337 + $0x38] sm:$0xff]
      %v413 = vld [vmem:[%s337 + $0x40] sm:$0xff]
      %v414 = vld [vmem:[%s337 + $0x48] sm:$0xff]
      %v415 = vld [vmem:[%s337 + $0x50] sm:$0xff]
      %v416 = vld [vmem:[%s337 + $0x58] sm:$0xff]
      %v417 = vld [vmem:[%s341] sm:$0x1]
      %v419 = vlaneseq
      %v420 = vshrl.u32 %v419, 7
      %v421 = vsub.s32 0, %v420
      %v422 = vrot.slane %v417, %v421
      %vm424 = vcmask 785408
      %v426 = vsel %vm424, %v404, 0
      %428 = vmatprep.subr.mxu0 0.0
      %429 = vmatpush1.msra.mxu0 %v405
      %430 = vmatprep.subr.mxu0 0.0
      %431 = vmatpush1.msra.mxu0 %v406
      %432 = vmatprep.subr.mxu0 0.0
      %433 = vmatpush1.msra.mxu0 %v407
      %434 = vmatprep.subr.mxu0 0.0
      %435 = vmatpush1.msra.mxu0 %v408
      %436 = vmatprep.subr.mxu0 0.0
      %437 = vmatpush1.msra.mxu0 %v409
      %438 = vmatprep.subr.mxu0 0.0
      %439 = vmatpush1.msra.mxu0 %v410
      %440 = vmatprep.subr.mxu0 0.0
      %441 = vmatpush1.msra.mxu0 %v411
      %442 = vmatprep.subr.mxu0 0.0
      %443 = vmatpush1.msra.mxu0 %v412
      %444 = vmatprep.subr.mxu0 0.0
      %445 = vmatpush1.msra.mxu0 %v413
      %446 = vmatprep.subr.mxu0 0.0
      %447 = vmatpush1.msra.mxu0 %v414
      %448 = vmatprep.subr.mxu0 0.0
      %449 = vmatpush1.msra.mxu0 %v415
      %450 = vmatprep.subr.mxu0 0.0
      %451 = vmatpush1.msra.mxu0 %v416
      %452 = vmatprep.subr.mxu0 0.0
      %453 = vmatpush1.msra.mxu0 0.0
      %454 = vmatprep.subr.mxu0 0.0
      %455 = vmatpush1.msra.mxu0 0.0
      %456 = vmatprep.subr.mxu0 0.0
      %457 = vmatpush1.msra.mxu0 0.0
      %458 = vmatprep.subr.mxu0 0.0
      %459 = vmatpush1.msra.mxu0 0.0
      %460 = vmatprep.subr.mxu0 0.0
      %461 = vmatpush1.msra.mxu0 0.0
      %462 = vmatprep.subr.mxu0 0.0
      %463 = vmatpush1.msra.mxu0 0.0
      %464 = vmatprep.subr.mxu0 0.0
      %465 = vmatpush1.msra.mxu0 0.0
      %466 = vmatprep.subr.mxu0 0.0
      %467 = vmatpush1.msra.mxu0 0.0
      %468 = vmatprep.subr.mxu0 0.0
      %469 = vmatpush1.msra.mxu0 0.0
      %470 = vmatprep.subr.mxu0 0.0
      %471 = vmatpush1.msra.mxu0 0.0
      %472 = vmatprep.subr.mxu0 0.0
      %473 = vmatpush1.msra.mxu0 0.0
      %474 = vmatprep.subr.mxu0 0.0
      %475 = vmatpush1.msra.mxu0 0.0
      %476 = vmatprep.subr.mxu0 0.0
      %477 = vmatpush1.msra.mxu0 0.0
      %478 = vmatprep.subr.mxu0 0.0
      %479 = vmatpush1.msra.mxu0 0.0
      %480 = vmatprep.subr.mxu0 0.0
      %481 = vmatpush1.msra.mxu0 0.0
      %482 = vmatprep.subr.mxu0 0.0
      %483 = vmatpush1.msra.mxu0 0.0
      %484 = vmatprep.subr.mxu0 0.0
      %485 = vmatpush1.msra.mxu0 0.0
      %486 = vmatprep.subr.mxu0 0.0
      %487 = vmatpush1.msra.mxu0 0.0
      %488 = vmatprep.subr.mxu0 0.0
      %489 = vmatpush1.msra.mxu0 0.0
      %490 = vmatprep.subr.mxu0 0.0
      %491 = vmatpush1.msra.mxu0 0.0
      %492 = vmatprep.mubr.f32.mxu0 0.0
      %493 = vmatmul.mubr.f32.gmra.mrb[0].mxu0 %v426
      %v494 = vpop.f32.mrb[0].mxu0
      %v495 = vadd.f32 %v422, %v494
      %v496 = vpop.f32.mrb[0].mxu0
      %497 = vdwg.mxu0
      %v498 = vld [vmem:[%s345] sm:$0x1]
      %v499 = vld [vmem:[%s349] sm:$0x1]
      %vm500 = vcmask 257024
      %v501 = vsel %vm500, %v495, 0.0
      %v502 = vrot.slane %v501, 4
      %v503 = vadd.f32 %v501, %v502
      %v504 = vrot.slane %v503, 2
      %v505 = vadd.f32 %v503, %v504
      %v506 = vrot.slane %v505, 1
      %v507 = vadd.f32 %v505, %v506
      %v508 = vmul.f32 %v507, 0.25
      %v509 = vsub.f32 %v495, %v508
      %v510 = vmul.f32 %v509, %v509
      %v511 = vsel %vm500, %v510, 0.0
      %v512 = vrot.slane %v511, 4
      %v513 = vadd.f32 %v511, %v512
      %v514 = vrot.slane %v513, 2
      %v515 = vadd.f32 %v513, %v514
      %v516 = vrot.slane %v515, 1
      %v517 = vadd.f32 %v515, %v516
      %v518 = vmul.f32 %v517, 0.25
      %v519 = vadd.f32 %v518, 1e-05
      %v520 = vrsqrt.pop %v519
      %v521 = vmul.f32 %v509, %v520
      %v523 = vlaneseq
      %v524 = vshrl.u32 %v523, 7
      %v525 = vsub.s32 0, %v524
      %v526 = vrot.slane %v498, %v525
      %v528 = vmul.f32 %v521, %v526
      %v530 = vlaneseq
      %v531 = vshrl.u32 %v530, 7
      %v532 = vsub.s32 0, %v531
      %v533 = vrot.slane %v499, %v532
      %v535 = vadd.f32 %v528, %v533
      %v536 = vmax.f32 %v535, 0.0
      %v538 = vrot.slane %v495, 4
      %v540 = vsel %vm500, %v538, 0.0
      %v541 = vrot.slane %v540, 4
      %v542 = vadd.f32 %v540, %v541
      %v543 = vrot.slane %v542, 2
      %v544 = vadd.f32 %v542, %v543
      %v545 = vrot.slane %v544, 1
      %v546 = vadd.f32 %v544, %v545
      %v547 = vmul.f32 %v546, 0.25
      %v548 = vsub.f32 %v495, %v547
      %v549 = vmul.f32 %v548, %v548
      %v551 = vrot.slane %v549, 4
      %v553 = vsel %vm500, %v551, 0.0
      %v554 = vrot.slane %v553, 4
      %v555 = vadd.f32 %v553, %v554
      %v556 = vrot.slane %v555, 2
      %v557 = vadd.f32 %v555, %v556
      %v558 = vrot.slane %v557, 1
      %v559 = vadd.f32 %v557, %v558
      %v560 = vmul.f32 %v559, 0.25
      %v561 = vadd.f32 %v560, 1e-05
      %v562 = vrsqrt.pop %v561
      %v563 = vmul.f32 %v548, %v562
      %v564 = vmul.f32 %v563, %v526
      %v565 = vadd.f32 %v564, %v533
      %v566 = vmax.f32 %v565, 0.0
      %vm567 = vcmask 1043456
      %v568 = vsel %vm567, %v536, %v566
      %v570 = vrot.slane %v568, 7
      %v572 = vsel %vm380, 0.0, %v570
      %v573 = vrot.slane %v568, 1
      %v575 = vsel %vm384, %v573, 0.0
      %v576 = vsel %vm388, 0.0, %v572
      %v577 = vsel %vm392, 0.0, %v575
      %578 = vrot.lane.b32.xlu0 %v568, 32
      %v579 = vpop.permute.xlu0 %578
      %582 = vrot.lane.b32.xlu0 %v577, 64
      %v583 = vpop.permute.xlu0 %582
      %v585 = vsel %vm401, %v576, %v579
      %v586 = vsel %vm403, %v585, %v583
      %s587 = scalar_lea.vmem %s337, 96
      %v588 = vld [vmem:[%s587] sm:$0xff]
      %v589 = vld [vmem:[%s587 + $0x8] sm:$0xff]
      %v590 = vld [vmem:[%s587 + $0x10] sm:$0xff]
      %v591 = vld [vmem:[%s587 + $0x18] sm:$0xff]
      %v592 = vld [vmem:[%s587 + $0x20] sm:$0xff]
      %v593 = vld [vmem:[%s587 + $0x28] sm:$0xff]
      %v594 = vld [vmem:[%s587 + $0x30] sm:$0xff]
      %v595 = vld [vmem:[%s587 + $0x38] sm:$0xff]
      %v596 = vld [vmem:[%s587 + $0x40] sm:$0xff]
      %v597 = vld [vmem:[%s587 + $0x48] sm:$0xff]
      %v598 = vld [vmem:[%s587 + $0x50] sm:$0xff]
      %v599 = vld [vmem:[%s587 + $0x58] sm:$0xff]
      %s600 = scalar_lea.vmem %s341, 1
      %v601 = vld [vmem:[%s600] sm:$0x1]
      %v603 = vlaneseq
      %v604 = vshrl.u32 %v603, 7
      %v605 = vsub.s32 0, %v604
      %v606 = vrot.slane %v601, %v605
      %v609 = vsel %vm424, %v586, 0
      %611 = vmatprep.subr.mxu0 0.0
      %612 = vmatpush1.msra.mxu0 %v588
      %613 = vmatprep.subr.mxu0 0.0
      %614 = vmatpush1.msra.mxu0 %v589
      %615 = vmatprep.subr.mxu0 0.0
      %616 = vmatpush1.msra.mxu0 %v590
      %617 = vmatprep.subr.mxu0 0.0
      %618 = vmatpush1.msra.mxu0 %v591
      %619 = vmatprep.subr.mxu0 0.0
      %620 = vmatpush1.msra.mxu0 %v592
      %621 = vmatprep.subr.mxu0 0.0
      %622 = vmatpush1.msra.mxu0 %v593
      %623 = vmatprep.subr.mxu0 0.0
      %624 = vmatpush1.msra.mxu0 %v594
      %625 = vmatprep.subr.mxu0 0.0
      %626 = vmatpush1.msra.mxu0 %v595
      %627 = vmatprep.subr.mxu0 0.0
      %628 = vmatpush1.msra.mxu0 %v596
      %629 = vmatprep.subr.mxu0 0.0
      %630 = vmatpush1.msra.mxu0 %v597
      %631 = vmatprep.subr.mxu0 0.0
      %632 = vmatpush1.msra.mxu0 %v598
      %633 = vmatprep.subr.mxu0 0.0
      %634 = vmatpush1.msra.mxu0 %v599
      %635 = vmatprep.subr.mxu0 0.0
      %636 = vmatpush1.msra.mxu0 0.0
      %637 = vmatprep.subr.mxu0 0.0
      %638 = vmatpush1.msra.mxu0 0.0
      %639 = vmatprep.subr.mxu0 0.0
      %640 = vmatpush1.msra.mxu0 0.0
      %641 = vmatprep.subr.mxu0 0.0
      %642 = vmatpush1.msra.mxu0 0.0
      %643 = vmatprep.subr.mxu0 0.0
      %644 = vmatpush1.msra.mxu0 0.0
      %645 = vmatprep.subr.mxu0 0.0
      %646 = vmatpush1.msra.mxu0 0.0
      %647 = vmatprep.subr.mxu0 0.0
      %648 = vmatpush1.msra.mxu0 0.0
      %649 = vmatprep.subr.mxu0 0.0
      %650 = vmatpush1.msra.mxu0 0.0
      %651 = vmatprep.subr.mxu0 0.0
      %652 = vmatpush1.msra.mxu0 0.0
      %653 = vmatprep.subr.mxu0 0.0
      %654 = vmatpush1.msra.mxu0 0.0
      %655 = vmatprep.subr.mxu0 0.0
      %656 = vmatpush1.msra.mxu0 0.0
      %657 = vmatprep.subr.mxu0 0.0
      %658 = vmatpush1.msra.mxu0 0.0
      %659 = vmatprep.subr.mxu0 0.0
      %660 = vmatpush1.msra.mxu0 0.0
      %661 = vmatprep.subr.mxu0 0.0
      %662 = vmatpush1.msra.mxu0 0.0
      %663 = vmatprep.subr.mxu0 0.0
      %664 = vmatpush1.msra.mxu0 0.0
      %665 = vmatprep.subr.mxu0 0.0
      %666 = vmatpush1.msra.mxu0 0.0
      %667 = vmatprep.subr.mxu0 0.0
      %668 = vmatpush1.msra.mxu0 0.0
      %669 = vmatprep.subr.mxu0 0.0
      %670 = vmatpush1.msra.mxu0 0.0
      %671 = vmatprep.subr.mxu0 0.0
      %672 = vmatpush1.msra.mxu0 0.0
      %673 = vmatprep.subr.mxu0 0.0
      %674 = vmatpush1.msra.mxu0 0.0
      %675 = vmatprep.mubr.f32.mxu0 0.0
      %676 = vmatmul.mubr.f32.gmra.mrb[0].mxu0 %v609
      %v677 = vpop.f32.mrb[0].mxu0
      %v678 = vadd.f32 %v606, %v677
      %v679 = vpop.f32.mrb[0].mxu0
      %680 = vdwg.mxu0
      %s681 = scalar_lea.vmem %s345, 1
      %v682 = vld [vmem:[%s681] sm:$0x1]
      %s683 = scalar_lea.vmem %s349, 1
      %v684 = vld [vmem:[%s683] sm:$0x1]
      %v685 = vsel %vm500, %v678, 0.0
      %v686 = vrot.slane %v685, 4
      %v687 = vadd.f32 %v685, %v686
      %v688 = vrot.slane %v687, 2
      %v689 = vadd.f32 %v687, %v688
      %v690 = vrot.slane %v689, 1
      %v691 = vadd.f32 %v689, %v690
      %v692 = vmul.f32 %v691, 0.25
      %v693 = vsub.f32 %v678, %v692
      %v694 = vmul.f32 %v693, %v693
      %v695 = vsel %vm500, %v694, 0.0
      %v696 = vrot.slane %v695, 4
      %v697 = vadd.f32 %v695, %v696
      %v698 = vrot.slane %v697, 2
      %v699 = vadd.f32 %v697, %v698
      %v700 = vrot.slane %v699, 1
      %v701 = vadd.f32 %v699, %v700
      %v702 = vmul.f32 %v701, 0.25
      %v703 = vadd.f32 %v702, 1e-05
      %v704 = vrsqrt.pop %v703
      %v705 = vmul.f32 %v693, %v704
      %v707 = vlaneseq
      %v708 = vshrl.u32 %v707, 7
      %v709 = vsub.s32 0, %v708
      %v710 = vrot.slane %v682, %v709
      %v712 = vmul.f32 %v705, %v710
      %v714 = vlaneseq
      %v715 = vshrl.u32 %v714, 7
      %v716 = vsub.s32 0, %v715
      %v717 = vrot.slane %v684, %v716
      %v719 = vadd.f32 %v712, %v717
      %v720 = vmax.f32 %v719, 0.0
      %v722 = vrot.slane %v678, 4
      %v724 = vsel %vm500, %v722, 0.0
      %v725 = vrot.slane %v724, 4
      %v726 = vadd.f32 %v724, %v725
      %v727 = vrot.slane %v726, 2
      %v728 = vadd.f32 %v726, %v727
      %v729 = vrot.slane %v728, 1
      %v730 = vadd.f32 %v728, %v729
      %v731 = vmul.f32 %v730, 0.25
      %v732 = vsub.f32 %v678, %v731
      %v733 = vmul.f32 %v732, %v732
      %v735 = vrot.slane %v733, 4
      %v737 = vsel %vm500, %v735, 0.0
      %v738 = vrot.slane %v737, 4
      %v739 = vadd.f32 %v737, %v738
      %v740 = vrot.slane %v739, 2
      %v741 = vadd.f32 %v739, %v740
      %v742 = vrot.slane %v741, 1
      %v743 = vadd.f32 %v741, %v742
      %v744 = vmul.f32 %v743, 0.25
      %v745 = vadd.f32 %v744, 1e-05
      %v746 = vrsqrt.pop %v745
      %v747 = vmul.f32 %v732, %v746
      %v748 = vmul.f32 %v747, %v710
      %v749 = vadd.f32 %v748, %v717
      %v750 = vmax.f32 %v749, 0.0
      %v751 = vsel %vm567, %v720, %v750
      %v753 = vrot.slane %v751, 7
      %v755 = vsel %vm380, 0.0, %v753
      %v756 = vrot.slane %v751, 1
      %v758 = vsel %vm384, %v756, 0.0
      %v759 = vsel %vm388, 0.0, %v755
      %v760 = vsel %vm392, 0.0, %v758
      %761 = vrot.lane.b32.xlu0 %v751, 32
      %v762 = vpop.permute.xlu0 %761
      %765 = vrot.lane.b32.xlu0 %v760, 64
      %v766 = vpop.permute.xlu0 %765
      %v768 = vsel %vm401, %v759, %v762
      %v769 = vsel %vm403, %v768, %v766
      %v770 = vld [vmem:[%s354] sm:$0xff]
      %v771 = vld [vmem:[%s354 + $0x8] sm:$0xff]
      %v772 = vld [vmem:[%s354 + $0x10] sm:$0xff]
      %v773 = vld [vmem:[%s354 + $0x18] sm:$0xff]
      %v774 = vld [vmem:[%s354 + $0x20] sm:$0xff]
      %v775 = vld [vmem:[%s354 + $0x28] sm:$0xff]
      %v776 = vld [vmem:[%s354 + $0x30] sm:$0xff]
      %v777 = vld [vmem:[%s354 + $0x38] sm:$0xff]
      %v778 = vld [vmem:[%s354 + $0x40] sm:$0xff]
      %v779 = vld [vmem:[%s354 + $0x48] sm:$0xff]
      %v780 = vld [vmem:[%s354 + $0x50] sm:$0xff]
      %v781 = vld [vmem:[%s354 + $0x58] sm:$0xff]
      %v782 = vld [vmem:[%s357] sm:$0x1]
      %v784 = vlaneseq
      %v785 = vshrl.u32 %v784, 7
      %v786 = vsub.s32 0, %v785
      %v787 = vrot.slane %v782, %v786
      %v790 = vsel %vm424, %v769, 0
      %792 = vmatprep.subr.mxu0 0.0
      %793 = vmatpush1.msra.mxu0 %v770
      %794 = vmatprep.subr.mxu0 0.0
      %795 = vmatpush1.msra.mxu0 %v771
      %796 = vmatprep.subr.mxu0 0.0
      %797 = vmatpush1.msra.mxu0 %v772
      %798 = vmatprep.subr.mxu0 0.0
      %799 = vmatpush1.msra.mxu0 %v773
      %800 = vmatprep.subr.mxu0 0.0
      %801 = vmatpush1.msra.mxu0 %v774
      %802 = vmatprep.subr.mxu0 0.0
      %803 = vmatpush1.msra.mxu0 %v775
      %804 = vmatprep.subr.mxu0 0.0
      %805 = vmatpush1.msra.mxu0 %v776
      %806 = vmatprep.subr.mxu0 0.0
      %807 = vmatpush1.msra.mxu0 %v777
      %808 = vmatprep.subr.mxu0 0.0
      %809 = vmatpush1.msra.mxu0 %v778
      %810 = vmatprep.subr.mxu0 0.0
      %811 = vmatpush1.msra.mxu0 %v779
      %812 = vmatprep.subr.mxu0 0.0
      %813 = vmatpush1.msra.mxu0 %v780
      %814 = vmatprep.subr.mxu0 0.0
      %815 = vmatpush1.msra.mxu0 %v781
      %816 = vmatprep.subr.mxu0 0.0
      %817 = vmatpush1.msra.mxu0 0.0
      %818 = vmatprep.subr.mxu0 0.0
      %819 = vmatpush1.msra.mxu0 0.0
      %820 = vmatprep.subr.mxu0 0.0
      %821 = vmatpush1.msra.mxu0 0.0
      %822 = vmatprep.subr.mxu0 0.0
      %823 = vmatpush1.msra.mxu0 0.0
      %824 = vmatprep.subr.mxu0 0.0
      %825 = vmatpush1.msra.mxu0 0.0
      %826 = vmatprep.subr.mxu0 0.0
      %827 = vmatpush1.msra.mxu0 0.0
      %828 = vmatprep.subr.mxu0 0.0
      %829 = vmatpush1.msra.mxu0 0.0
      %830 = vmatprep.subr.mxu0 0.0
      %831 = vmatpush1.msra.mxu0 0.0
      %832 = vmatprep.subr.mxu0 0.0
      %833 = vmatpush1.msra.mxu0 0.0
      %834 = vmatprep.subr.mxu0 0.0
      %835 = vmatpush1.msra.mxu0 0.0
      %836 = vmatprep.subr.mxu0 0.0
      %837 = vmatpush1.msra.mxu0 0.0
      %838 = vmatprep.subr.mxu0 0.0
      %839 = vmatpush1.msra.mxu0 0.0
      %840 = vmatprep.subr.mxu0 0.0
      %841 = vmatpush1.msra.mxu0 0.0
      %842 = vmatprep.subr.mxu0 0.0
      %843 = vmatpush1.msra.mxu0 0.0
      %844 = vmatprep.subr.mxu0 0.0
      %845 = vmatpush1.msra.mxu0 0.0
      %846 = vmatprep.subr.mxu0 0.0
      %847 = vmatpush1.msra.mxu0 0.0
      %848 = vmatprep.subr.mxu0 0.0
      %849 = vmatpush1.msra.mxu0 0.0
      %850 = vmatprep.subr.mxu0 0.0
      %851 = vmatpush1.msra.mxu0 0.0
      %852 = vmatprep.subr.mxu0 0.0
      %853 = vmatpush1.msra.mxu0 0.0
      %854 = vmatprep.subr.mxu0 0.0
      %855 = vmatpush1.msra.mxu0 0.0
      %856 = vmatprep.mubr.f32.mxu0 0.0
      %857 = vmatmul.mubr.f32.gmra.mrb[0].mxu0 %v790
      %v858 = vpop.f32.mrb[0].mxu0
      %v859 = vadd.f32 %v787, %v858
      %v860 = vpop.f32.mrb[0].mxu0
      %861 = vdwg.mxu0
      %p862 = scmp.eq.s32.totalorder %s18, 0
      // Predicated region
      $region49: #{coarse_pyramid_forward.9} parent=47 // pred_check
        %p863 = pneg %p862
      $region50: #{coarse_pyramid_forward.9} parent=47 // pred_check_branch
        %865 = sbr.rel (%p863) target = $region52
      $region51: #{coarse_pyramid_forward.9} parent=47 // pred_region
        %v866 = vmul.f32 %v859, 1.442695
        %v867 = vpow.pop %v866
        %vm868 = vcmask 64512
        %869 = vst.msk [vmem:[%s361] sm:$0xff] %vm868, %v867
      $region52: #{coarse_pyramid_forward.9} parent=47 // pred_fallthru
        _
      %p870 = scmp.eq.s32.totalorder %s18, 1
      // Predicated region
      $region53: #{coarse_pyramid_forward.9} parent=47 // pred_check
        %p871 = pneg %p870
      $region54: #{coarse_pyramid_forward.9} parent=47 // pred_check_branch
        %873 = sbr.rel (%p871) target = $region56
      $region55: #{coarse_pyramid_forward.9} parent=47 // pred_region
        %vm874 = vcmask 64512
        %875 = vst.msk [vmem:[%s361] sm:$0xff] %vm874, %v859
      $region56: #{coarse_pyramid_forward.9} parent=47 // pred_fallthru
        _
      %p876 = scmp.lt.s32.totalorder %s18, 1
      %s877 = scalar_select %p876, %s18, 1
      %s878 = smul.addr %s877, 8
      %s879 = scalar_lea.vmem %s7, %s878
      // Predicated region
      $region57: #{coarse_pyramid_forward.9} parent=47 // pred_check
        %p880 = pneg %p213
      $region58: #{coarse_pyramid_forward.9} parent=47 // pred_check_branch
        %882 = sbr.rel (%p880) target = $region60
      $region59: #{coarse_pyramid_forward.9} parent=47 // pred_region
        _
      $region60: #{coarse_pyramid_forward.9} parent=47 // pred_fallthru
        _
    $region48: #{coarse_pyramid_forward.9} parent=5 // pred_fallthru
      _
    %p883 = scmp.le.s32.totalorder 2, %s13
    // Predicated region
    $region61: #{coarse_pyramid_forward.9} parent=5 // pred_check
      %p884 = pneg %p883
    $region62: #{coarse_pyramid_forward.9} parent=5 // pred_check_branch
      %886 = sbr.rel (%p884) target = $region64
    $region63: #{coarse_pyramid_forward.9} parent=5 // pred_region
      %s887 = ssub.s32 %s13, 2
      // Predicated region
      $region65: #{coarse_pyramid_forward.9} parent=63 // pred_check
        %p888 = pneg %p219
      $region66: #{coarse_pyramid_forward.9} parent=63 // pred_check_branch
        %890 = sbr.rel (%p888) target = $region68
      $region67: #{coarse_pyramid_forward.9} parent=63 // pred_region
        %p891 = scmp.lt.s32.totalorder %s19, 1
        %s892 = scalar_select %p891, %s19, 1
        %s893 = smul.addr %s892, 8
        %s894 = scalar_lea.vmem %s7, %s893
      $region68: #{coarse_pyramid_forward.9} parent=63 // pred_fallthru
        _
    $region64: #{coarse_pyramid_forward.9} parent=5 // pred_fallthru
      _
  $region6: #{coarse_pyramid_forward.9} parent=0 // loop_footer
    %s17 = sadd.s32 1, %s13
  $region7: #{coarse_pyramid_forward.9} parent=0 // loop_footer_branch
    %12 = sbr.rel target = $region3
  $region8: #{coarse_pyramid_forward.9} parent=0 // loop_exit
    _

</llo_original>
